<compile_context>
chip_gen: v7x
topology: tpu7x:2x2x1
jax: 0.10.0
libtpu: 0.0.40
codegen_flags: <defaults>
</compile_context>

<pallas_src>
import numpy as np
import jax
import jax.numpy as jnp
from jax.experimental import pallas as pl
from jax.experimental.pallas import tpu as pltpu

# ----------------------------------------------------------------------------
# Synthetic residue metadata (stand-in for OpenMM `structures` / `letter_code`).
# TODO(synk): real per-letter atom counts come from OpenMM structures; fixed
# heavy-atom-count constants are used here since file/DB access is not allowed.
# ----------------------------------------------------------------------------
RES_LEN = {
    "A": 5,  "C": 6,  "D": 8,  "E": 9,  "F": 11, "G": 4,  "H": 10, "I": 8,
    "K": 9,  "L": 8,  "M": 8,  "N": 8,  "P": 7,  "Q": 9,  "R": 11, "S": 6,
    "T": 7,  "V": 7,  "W": 14, "Y": 12,
}
LETTERS = sorted(RES_LEN.keys())
INDEX_MAPPING = {}
RESLEN_MAPPING = {}
_idx = 0
for _l in LETTERS:
    INDEX_MAPPING[_l] = _idx
    RESLEN_MAPPING[_l] = RES_LEN[_l]
    _idx += RES_LEN[_l]
IDX_CURR = _idx  # total number of atom-type rows in the embedding table


def seq_to_atom_indices(seq: str) -> np.ndarray:
    """Replicates torch.cat([arange(reslen[l]) + index_mapping[l] for l in seq])."""
    chunks = [np.arange(RESLEN_MAPPING[l], dtype=np.int32) + INDEX_MAPPING[l]
              for l in seq]
    return np.concatenate(chunks, axis=0) if chunks else np.zeros((0,), np.int32)


def _round_up(x: int, m: int) -> int:
    return ((x + m - 1) // m) * m


# ----------------------------------------------------------------------------
# Kernel: per tile of TM4 packed output rows, build a (TM4, KW) one-hot on the
# VPU and gather via one MXU matmul against the resident widened table.
# ----------------------------------------------------------------------------
def _make_gather_kernel(tm4: int, kw: int, pack: int, onehot_dtype, precision):
    def kernel(widx_ref, t2_ref, out_ref):
        # widx_ref: VMEM (tm4, pack) int32 -- widened indices pack*idx[a] + (a%pack)
        # t2_ref  : VMEM (kw, pack*dim)    -- widened block-diagonal table, resident
        # out_ref : VMEM (tm4, pack*dim)   -- lane-dense packed output tile
        widx = widx_ref[...]                                           # (tm4, pack)
        m_ids = jax.lax.broadcasted_iota(jnp.int32, (tm4, kw), 1)      # (tm4, kw)
        hit = m_ids == widx[:, 0:1]
        for j in range(1, pack):                                       # unrolled
            hit = jnp.logical_or(hit, m_ids == widx[:, j:j + 1])
        onehot = hit.astype(onehot_dtype)                              # exact 0/1
        acc = jax.lax.dot_general(
            onehot, t2_ref[...],
            dimension_numbers=(((1,), (0,)), ((), ())),
            preferred_element_type=jnp.float32,
            precision=precision)
        out_ref[...] = acc.astype(out_ref.dtype)
    return kernel


class ResidueAtomEmbedPallas:
    """Pallas port of ResidueAtomEmbed: out[a, :] = embeddings[atom_indices[a], :]."""

    MAX_TM4 = 512  # packed rows per tile (= 512*pack atoms; ~2048 atoms for dim=32)

    def __init__(self, embeddings: jax.Array):
        embeddings = jnp.asarray(embeddings)
        self.n_rows, self.dim = embeddings.shape
        self.dtype = embeddings.dtype

        # Lane packing factor: how many dim-wide atom rows fill one 128-lane row.
        self.pack = 128 // self.dim if (self.dim <= 128 and 128 % self.dim == 0) else 1
        self.wdim = self.pack * self.dim
        # Pad table rows so the widened contraction dim (pack * k_pad) is a
        # multiple of 128 (not 256 -- MXU does not need 256 alignment).
        self.k_pad = _round_up(self.n_rows, max(8, 128 // self.pack))
        self.kw = self.pack * self.k_pad

        # Widened block-diagonal table, built ONCE (not per forward):
        #   t2[pack*k + j, j*dim:(j+1)*dim] = embeddings[k, :]
        emb_pad = jnp.zeros((self.k_pad, self.dim), self.dtype)
        emb_pad = emb_pad.at[:self.n_rows, :].set(embeddings)
        eye = jnp.eye(self.pack, dtype=self.dtype)
        self.t2 = jnp.einsum("kd,ij->kijd", emb_pad, eye).reshape(self.kw, self.wdim)

        # Exact selection: f32 table -> HIGHEST precision (multi-pass bf16 MXU is
        # exact for 0/1 one-hot selection); bf16 table would be native single-pass.
        self.precision = (jax.lax.Precision.HIGHEST
                          if self.dtype == jnp.float32
                          else jax.lax.Precision.DEFAULT)

    def __call__(self, atom_indices, trim: bool = True) -> jax.Array:
        atom_indices = jnp.asarray(atom_indices, jnp.int32).reshape(-1)
        num_atoms = int(atom_indices.shape[0])
        if num_atoms == 0:  # empty sequence: nothing to gather
            return jnp.zeros((0, self.dim), self.dtype)

        pack, kw, wdim = self.pack, self.kw, self.wdim
        packed_rows = pl.cdiv(num_atoms, pack)

        # Tile size: large enough to amortize per-grid-step overhead, but capped so
        # the grid has >= 2 tiles when possible (v7x: both TensorCores get work).
        if packed_rows <= 8:
            tm4 = packed_rows
        else:
            tm4 = min(self.MAX_TM4, _round_up(pl.cdiv(packed_rows, 2), 8))
        grid_rows = pl.cdiv(packed_rows, tm4)

        # Index prep (pure jnp, jit-friendly).  Pad to a whole number of tiles so
        # the index input never has a partial block; only the OUTPUT's final block
        # is partial and Pallas masks its writeback.  Padded slots gather row 0 and
        # are dropped.  Out-of-range indices are clipped (the torch module would
        # raise; clipping keeps the kernel safe).
        padded_atoms = grid_rows * tm4 * pack
        idx = jnp.zeros((padded_atoms,), jnp.int32).at[:num_atoms].set(
            jnp.clip(atom_indices, 0, self.n_rows - 1))
        widx = (pack * idx + (jnp.arange(padded_atoms, dtype=jnp.int32) % pack)
                ).reshape(grid_rows * tm4, pack)

        itemsize = jnp.dtype(self.dtype).itemsize
        cost = pl.CostEstimate(
            flops=int(2 * grid_rows * tm4 * kw * wdim),
            transcendentals=0,
            bytes_accessed=int(widx.size * 4 + self.t2.size * itemsize
                               + packed_rows * wdim * itemsize))

        out_packed = pl.pallas_call(
            _make_gather_kernel(tm4, kw, pack, self.dtype, self.precision),
            out_shape=jax.ShapeDtypeStruct((packed_rows, wdim), self.dtype),
            grid_spec=pltpu.PrefetchScalarGridSpec(
                num_scalar_prefetch=0,
                grid=(grid_rows,),
                in_specs=[
                    # per-tile widened gather indices
                    pl.BlockSpec((tm4, pack), lambda i: (i, 0)),
                    # full widened table, constant block index -> DMA'd once, resident
                    pl.BlockSpec((kw, wdim), lambda i: (0, 0)),
                ],
                out_specs=pl.BlockSpec((tm4, wdim), lambda i: (i, 0)),
            ),
            compiler_params=pltpu.CompilerParams(
                # tiles are independent -> shard across both TCs on v7x
                dimension_semantics=("parallel",)),
            cost_estimate=cost,
        )(widx, self.t2)

        # (packed_rows, pack*dim) and (packed_rows*pack, dim) share the same
        # row-major layout, so this reshape is free.
        out = out_packed.reshape(packed_rows * pack, self.dim)
        if trim and packed_rows * pack != num_atoms:
            # Only needed when num_atoms % pack != 0; callers that tolerate <pack
            # padding rows can pass trim=False and avoid the extra HBM copy.
            out = out[:num_atoms]
        return out


# ----------------------------------------------------------------------------
# Demo / self-check
# ----------------------------------------------------------------------------
if __name__ == "__main__":
    dim = 32
    key = jax.random.PRNGKey(0)
    # nn.Parameter(torch.zeros(...)) in the module; deterministic random values
    # here so the gather is actually exercised (zeros would be trivial).
    embeddings = jax.random.normal(key, (IDX_CURR, dim), dtype=jnp.float32)

    module = ResidueAtomEmbedPallas(embeddings)   # table widening happens once here

    seq = "ACDEFGHIKLMNPQRSTVWY" * 3              # 60 residues -> 501 atoms
    atom_indices = seq_to_atom_indices(seq)

    out = module(atom_indices)
    out = jax.block_until_ready(out)

    # Pure-JAX reference (matches the PyTorch forward semantics exactly).
    ref = embeddings[jnp.asarray(atom_indices)]
    assert out.shape == (atom_indices.shape[0], dim), out.shape
    # HIGHEST-precision one-hot selection of f32 rows is numerically exact; keep a
    # tiny tolerance only for last-bit slack, far below any wrong-row O(1) error.
    np.testing.assert_allclose(np.asarray(out), np.asarray(ref), rtol=1e-6, atol=1e-6)

    print("KERNEL_OK")
</pallas_src>

<mosaic_0001>
module attributes {stable_mosaic.version = 11 : i64} {
  func.func @kernel(%arg0: i32, %arg1: memref<64x4xi32, #tpu.memory_space<vmem>>, %arg2: memref<768x128xf32, #tpu.memory_space<vmem>>, %arg3: memref<64x128xf32, #tpu.memory_space<vmem>>) attributes {dimension_semantics = [#tpu.dimension_semantics<parallel>], iteration_bounds = array<i64: 2>, scalar_prefetch = 0 : i64, scratch_operands = 0 : i64, tpu.core_type = #tpu.core_type<tc>, window_params = [{transform_indices = @transform_0, window_bounds = array<i64: 64, 4>}, {pipeline_mode = #tpu.pipeline_mode<synchronous>, transform_indices = @transform_1, window_bounds = array<i64: 768, 128>}, {transform_indices = @transform_2, window_bounds = array<i64: 64, 128>}]} {
    %c0 = arith.constant 0 : index
    %c0_0 = arith.constant 0 : index
    %0 = vector.load %arg1[%c0, %c0_0] : memref<64x4xi32, #tpu.memory_space<vmem>>, vector<64x4xi32>
    %1 = tpu.iota {dimensions = array<i32: 1>} : vector<64x768xi32>
    %2 = vector.extract_strided_slice %0 {offsets = [0, 0], sizes = [64, 1], strides = [1, 1]} : vector<64x4xi32> to vector<64x1xi32>
    %3 = vector.broadcast %2 : vector<64x1xi32> to vector<64x768xi32>
    %4 = arith.cmpi eq, %1, %3 : vector<64x768xi32>
    %5 = vector.extract_strided_slice %0 {offsets = [0, 1], sizes = [64, 1], strides = [1, 1]} : vector<64x4xi32> to vector<64x1xi32>
    %6 = vector.broadcast %5 : vector<64x1xi32> to vector<64x768xi32>
    %7 = arith.cmpi eq, %1, %6 : vector<64x768xi32>
    %8 = arith.ori %4, %7 : vector<64x768xi1>
    %9 = vector.extract_strided_slice %0 {offsets = [0, 2], sizes = [64, 1], strides = [1, 1]} : vector<64x4xi32> to vector<64x1xi32>
    %10 = vector.broadcast %9 : vector<64x1xi32> to vector<64x768xi32>
    %11 = arith.cmpi eq, %1, %10 : vector<64x768xi32>
    %12 = arith.ori %8, %11 : vector<64x768xi1>
    %13 = vector.extract_strided_slice %0 {offsets = [0, 3], sizes = [64, 1], strides = [1, 1]} : vector<64x4xi32> to vector<64x1xi32>
    %14 = vector.broadcast %13 : vector<64x1xi32> to vector<64x768xi32>
    %15 = arith.cmpi eq, %1, %14 : vector<64x768xi32>
    %16 = arith.ori %12, %15 : vector<64x768xi1>
    %17 = arith.extui %16 : vector<64x768xi1> to vector<64x768xi32>
    %18 = arith.sitofp %17 : vector<64x768xi32> to vector<64x768xf32>
    %c0_1 = arith.constant 0 : index
    %c0_2 = arith.constant 0 : index
    %19 = vector.load %arg2[%c0_1, %c0_2] : memref<768x128xf32, #tpu.memory_space<vmem>>, vector<768x128xf32>
    %cst = arith.constant dense<0.000000e+00> : vector<64x128xf32>
    %20 = tpu.matmul %18, %19, %cst {dimension_numbers = #tpu.dot_dimension_numbers<[1], [0], [0], [1], [0, 0, 1, 1], [], []>, precision = #tpu.contract_precision<fp32>} : vector<64x768xf32>, vector<768x128xf32>, vector<64x128xf32> -> vector<64x128xf32>
    %c0_3 = arith.constant 0 : index
    %c0_4 = arith.constant 0 : index
    %21 = vector.load %arg3[%c0_3, %c0_4] : memref<64x128xf32, #tpu.memory_space<vmem>>, vector<64x128xf32>
    tpu.vector_store %arg3[%c0_3, %c0_4], %20 {strides = array<i32>} : memref<64x128xf32, #tpu.memory_space<vmem>>, vector<64x128xf32>,
    return
  }
  func.func @transform_0(%arg0: i32) -> (i32, i32) {
    %c0_i32 = arith.constant 0 : i32
    %c0_i32_0 = arith.constant 0 : i32
    return %arg0, %c0_i32 : i32, i32
  }
  func.func @transform_1(%arg0: i32) -> (i32, i32) {
    %c0_i32 = arith.constant 0 : i32
    %c0_i32_0 = arith.constant 0 : i32
    %c0_i32_1 = arith.constant 0 : i32
    return %c0_i32, %c0_i32_0 : i32, i32
  }
  func.func @transform_2(%arg0: i32) -> (i32, i32) {
    %c0_i32 = arith.constant 0 : i32
    %c0_i32_0 = arith.constant 0 : i32
    return %arg0, %c0_i32 : i32, i32
  }
}

</mosaic_0001>

<llo_original>
// kernel: tpu_custom_call.1
$region0: #{tpu_custom_call.1}
  #allocation0 [shape = 'u32[]', space=smem, size = 0x4, offset = 0x4, fixed_abs, tag = 'smem constant byte address 0x4 - core index']
  #allocation1 [shape = 'u32[144,128]{1,0:T(1,128)}', space=vmem, size = 0x12000, scoped, tag = 'internal scratch']
  %s0 = inlined_call_operand.vmem [shape: s32[128,4], index: 0, kind: input, shape index: {}]
  %s1 = inlined_call_operand.hbm [shape: f32[768,128], index: 1, kind: input, shape index: {}]
  %s2 = inlined_call_operand.hbm [shape: f32[126,128], index: 2, kind: output, shape index: {}]
  %s3 = sld [smem:[#allocation0]]
  $region45: #{tpu_custom_call.1} parent=0
    _
  %s5 = ssub.s32 1, %s3
  %s6 = scalar_select 0, %s5, %s3
  $region1: #{tpu_custom_call.1} parent=0
    #allocation2 [shape = 'u8[393216]{0}', space=vmem, size = 0x60000, scoped, tag = 'input window, operand 1, single buffered']
    #allocation3 [shape = 's32[2]{0}', space=sflag, size = 0x8, scoped, tag = 'scoped memory for tpu_custom_call.1']
    #allocation4 [shape = 's32[2]{0}', space=sflag, size = 0x8, scoped, tag = 'scoped memory for tpu_custom_call.1']
    #allocation5 [shape = 'u8[65536]{0}', space=vmem, size = 0x10000, scoped, tag = 'output window, operand 0']
    %7 = vsyncpa [#allocation3], 0
    %8 = vsyncpa [#allocation4], 0
    %s9 = scalar_lea.sflag [#allocation4], 1
    %10 = vsyncpa %s9, 0
    loop: start=0, step=1, limit=4
    $region2: #{tpu_custom_call.1} parent=1 // loop_pre_header
      _
    $region3: #{tpu_custom_call.1} parent=1 // loop_header
      %s12 = sphi 0, %s16
      %p13 = scmp.ge.s32.totalorder %s12, 4
      %s22 = sphi 0, %s24
      %s25 = sphi 0, %s22
      %s26 = sphi 0, %s25
      %s42 = sphi 0, %s26
      %s46 = sphi 0, %s46
      %s48 = sphi 0, %s46
      %s49 = sphi 0, %s48
      %s63 = sphi 0, %s49
      %s69 = sphi 0, %s71
      %s72 = sphi 0, %s69
      %s73 = sphi 0, %s72
      %s89 = sphi 0, %s73
    $region4: #{tpu_custom_call.1} parent=1 // loop_header_branch
      %15 = sbr.rel (%p13) target = $region8
    $region5: #{tpu_custom_call.1} parent=1 // loop_body
      %s17 = ssub.s32 %s12, 1
      %s18 = ssub.s32 %s12, 2
      %s19 = sadd.s32 %s12, 1
      %s20 = ssub.s32 %s12, %s19
      %p21 = scmp.eq.s32.totalorder %s20, 0
      %s23 = sadd.s32 %s22, 1
      %s24 = scalar_select %p21, %s22, %s23
      %p27 = pneg %p21
      %p28 = scmp.eq.s32.totalorder %s12, 1
      %p29 = por %p27, %p28
      %p30 = scmp.ne.s32.totalorder %s22, %s25
      %p31 = scmp.eq.s32.totalorder %s12, 0
      %p32 = por %p30, %p31
      %p33 = scmp.ne.s32.totalorder %s22, %s25
      %p34 = scmp.eq.s32.totalorder %s17, 1
      %p35 = por %p33, %p34
      %p36 = scmp.ne.s32.totalorder %s25, %s26
      %p37 = scmp.eq.s32.totalorder %s17, 0
      %p38 = por %p36, %p37
      %p39 = scmp.ne.s32.totalorder %s25, %s26
      %p40 = scmp.eq.s32.totalorder %s18, 1
      %p41 = por %p39, %p40
      %p43 = scmp.ne.s32.totalorder %s26, %s42
      %p44 = scmp.eq.s32.totalorder %s18, 0
      %p45 = por %p43, %p44
      %s47 = sadd.s32 %s46, 1
      %p50 = scmp.eq.s32.totalorder %s12, 1
      %p51 = scmp.ne.s32.totalorder %s46, %s48
      %p52 = scmp.eq.s32.totalorder %s12, 0
      %p53 = por %p51, %p52
      %p54 = scmp.ne.s32.totalorder %s46, %s48
      %p55 = scmp.eq.s32.totalorder %s17, 1
      %p56 = por %p54, %p55
      %p57 = scmp.ne.s32.totalorder %s48, %s49
      %p58 = scmp.eq.s32.totalorder %s17, 0
      %p59 = por %p57, %p58
      %p60 = scmp.ne.s32.totalorder %s48, %s49
      %p61 = scmp.eq.s32.totalorder %s18, 1
      %p62 = por %p60, %p61
      %p64 = scmp.ne.s32.totalorder %s49, %s63
      %p65 = scmp.eq.s32.totalorder %s18, 0
      %p66 = por %p64, %p65
      %s67 = ssub.s32 %s12, %s19
      %p68 = scmp.eq.s32.totalorder %s67, 0
      %s70 = sadd.s32 %s69, 1
      %s71 = scalar_select %p68, %s69, %s70
      %p74 = pneg %p68
      %p75 = scmp.eq.s32.totalorder %s12, 1
      %p76 = por %p74, %p75
      %p77 = scmp.ne.s32.totalorder %s69, %s72
      %p78 = scmp.eq.s32.totalorder %s12, 0
      %p79 = por %p77, %p78
      %p80 = scmp.ne.s32.totalorder %s69, %s72
      %p81 = scmp.eq.s32.totalorder %s17, 1
      %p82 = por %p80, %p81
      %p83 = scmp.ne.s32.totalorder %s72, %s73
      %p84 = scmp.eq.s32.totalorder %s17, 0
      %p85 = por %p83, %p84
      %p86 = scmp.ne.s32.totalorder %s72, %s73
      %p87 = scmp.eq.s32.totalorder %s18, 1
      %p88 = por %p86, %p87
      %p90 = scmp.ne.s32.totalorder %s73, %s89
      %p91 = scmp.eq.s32.totalorder %s18, 0
      %p92 = por %p90, %p91
      %p93 = scmp.le.s32.totalorder 1, %s12
      %p94 = scmp.lt.s32.totalorder %s12, 3
      %p95 = pnand %p93, %p94
      %p96 = pneg %p95
      // Predicated region
      $region9: #{tpu_custom_call.1} parent=5 // pred_check
        _
      $region10: #{tpu_custom_call.1} parent=5 // pred_check_branch
        %98 = sbr.rel (%p95) target = $region12
      $region11: #{tpu_custom_call.1} parent=5 // pred_region
        %s99 = ssub.s32 %s12, 1
        // Predicated region
        $region13: #{tpu_custom_call.1} parent=11 // pred_check
          %p100 = pneg %p59
        $region14: #{tpu_custom_call.1} parent=11 // pred_check_branch
          %102 = sbr.rel (%p100) target = $region16
        $region15: #{tpu_custom_call.1} parent=11 // pred_region
          %s104 = ssub.s32 12288, 12288
          %105 = vsyncadd [#allocation3], %s104
          %s106 = sshll.u32 [#allocation2], 4
          %s107 = int_to_ptr.vmem [resolvable:$true] %s106
          %112 = dma.hbm_to_vmem [thread:$0]  %s1, 12288, %s107, [#allocation3], 128, 128, 8
        $region16: #{tpu_custom_call.1} parent=11 // pred_fallthru
          _
      $region12: #{tpu_custom_call.1} parent=5 // pred_fallthru
        _
      %p113 = scmp.lt.s32.totalorder %s12, 2
      // Predicated region
      $region17: #{tpu_custom_call.1} parent=5 // pred_check
        %p114 = pneg %p113
      $region18: #{tpu_custom_call.1} parent=5 // pred_check_branch
        %116 = sbr.rel (%p114) target = $region20
      $region19: #{tpu_custom_call.1} parent=5 // pred_region
        // Predicated region
        $region21: #{tpu_custom_call.1} parent=19 // pred_check
          %p117 = pneg %p32
        $region22: #{tpu_custom_call.1} parent=19 // pred_check_branch
          %119 = sbr.rel (%p117) target = $region24
        $region23: #{tpu_custom_call.1} parent=19 // pred_region
          %s120 = smul.u32 8, %s12
          %p121 = scmp.lt.s32.totalorder %s120, 15
          %s122 = scalar_select %p121, %s120, 15
          %s123 = smul.addr %s122, 8
          %s124 = scalar_lea.vmem %s0, %s123
          %s125 = smul.u32 8, %s12
        $region24: #{tpu_custom_call.1} parent=19 // pred_fallthru
          _
      $region20: #{tpu_custom_call.1} parent=5 // pred_fallthru
        _
      %p126 = scmp.le.s32.totalorder 1, %s12
      %p127 = scmp.lt.s32.totalorder %s12, 3
      %p128 = pnand %p126, %p127
      %p129 = pneg %p128
      // Predicated region
      $region25: #{tpu_custom_call.1} parent=5 // pred_check
        _
      $region26: #{tpu_custom_call.1} parent=5 // pred_check_branch
        %131 = sbr.rel (%p128) target = $region28
      $region27: #{tpu_custom_call.1} parent=5 // pred_region
        %s132 = ssub.s32 %s12, 1
        // Predicated region
        $region29: #{tpu_custom_call.1} parent=27 // pred_check
          %p133 = pneg %p59
        $region30: #{tpu_custom_call.1} parent=27 // pred_check_branch
          %135 = sbr.rel (%p133) target = $region32
        $region31: #{tpu_custom_call.1} parent=27 // pred_region
          %136 = dma.done [#allocation3], 12288
        $region32: #{tpu_custom_call.1} parent=27 // pred_fallthru
          _
        %s137 = smul.u32 8, %s17
        %p138 = scmp.lt.s32.totalorder %s137, 15
        %s139 = scalar_select %p138, %s137, 15
        %s140 = smul.addr %s139, 8
        %s141 = scalar_lea.vmem %s0, %s140
        %p142 = pneg %p38
        %p143 = pneg %p35
        %p144 = pneg %p59
        %p145 = pneg %p56
        %p146 = pneg %p85
        %p147 = pneg %p82
        %s148 = sand.u32 %s72, 1
        %s149 = scalar_lea.sflag [#allocation4], %s148
        %s150 = sand.u32 %s72, 1
        %s151 = smul.addr %s150, 64
        %s152 = scalar_lea.vmem [#allocation5], %s151
        %s153 = smul.u32 8, %s17
        %p154 = scmp.lt.s32.totalorder %s153, 15
        %s155 = scalar_select %p154, %s153, 15
        %s156 = smul.addr %s155, 8
        %s157 = scalar_lea.vmem %s0, %s156
        %s158 = smul.u32 8, %s17
        %s159 = smul.u32 8, %s17
        %v160 = vld [vmem:[%s157] sm:$0xff]
        %v161 = vld [vmem:[%s157 + $0x8] sm:$0xff]
        %v162 = vld [vmem:[%s157 + $0x10] sm:$0xff]
        %v163 = vld [vmem:[%s157 + $0x18] sm:$0xff]
        %v164 = vld [vmem:[%s157 + $0x20] sm:$0xff]
        %v165 = vld [vmem:[%s157 + $0x28] sm:$0xff]
        %v166 = vld [vmem:[%s157 + $0x30] sm:$0xff]
        %v167 = vld [vmem:[%s157 + $0x38] sm:$0xff]
        %v168 = vlaneseq
        %v169 = vand.u32 %v168, 127
        %v170 = vadd.s32 %v169, 128
        %v171 = vadd.s32 %v169, 256
        %v172 = vadd.s32 %v169, 384
        %v173 = vadd.s32 %v169, 512
        %v174 = vadd.s32 %v169, 640
        %175 = vset.pattern.permute.xlu0 0
        %176 = vperm.xlu0 %175, %v160
        %v177 = vpop.permute.xlu0 %176
        %178 = vset.pattern.permute.xlu0 0
        %179 = vperm.xlu0 %178, %v161
        %v180 = vpop.permute.xlu0 %179
        %181 = vset.pattern.permute.xlu0 0
        %182 = vperm.xlu0 %181, %v162
        %v183 = vpop.permute.xlu0 %182
        %184 = vset.pattern.permute.xlu0 0
        %185 = vperm.xlu0 %184, %v163
        %v186 = vpop.permute.xlu0 %185
        %187 = vset.pattern.permute.xlu0 0
        %188 = vperm.xlu0 %187, %v164
        %v189 = vpop.permute.xlu0 %188
        %190 = vset.pattern.permute.xlu0 0
        %191 = vperm.xlu0 %190, %v165
        %v192 = vpop.permute.xlu0 %191
        %193 = vset.pattern.permute.xlu0 0
        %194 = vperm.xlu0 %193, %v166
        %v195 = vpop.permute.xlu0 %194
        %196 = vset.pattern.permute.xlu0 0
        %197 = vperm.xlu0 %196, %v167
        %v198 = vpop.permute.xlu0 %197
        %vm199 = vcmp.eq.s32.totalorder %v169, %v177
        %vm200 = vcmp.eq.s32.totalorder %v170, %v177
        %vm201 = vcmp.eq.s32.totalorder %v171, %v177
        %vm202 = vcmp.eq.s32.totalorder %v172, %v177
        %vm203 = vcmp.eq.s32.totalorder %v173, %v177
        %vm204 = vcmp.eq.s32.totalorder %v174, %v177
        %vm205 = vcmp.eq.s32.totalorder %v169, %v180
        %vm206 = vcmp.eq.s32.totalorder %v170, %v180
        %vm207 = vcmp.eq.s32.totalorder %v171, %v180
        %vm208 = vcmp.eq.s32.totalorder %v172, %v180
        %vm209 = vcmp.eq.s32.totalorder %v173, %v180
        %vm210 = vcmp.eq.s32.totalorder %v174, %v180
        %vm211 = vcmp.eq.s32.totalorder %v169, %v183
        %vm212 = vcmp.eq.s32.totalorder %v170, %v183
        %vm213 = vcmp.eq.s32.totalorder %v171, %v183
        %vm214 = vcmp.eq.s32.totalorder %v172, %v183
        %vm215 = vcmp.eq.s32.totalorder %v173, %v183
        %vm216 = vcmp.eq.s32.totalorder %v174, %v183
        %vm217 = vcmp.eq.s32.totalorder %v169, %v186
        %vm218 = vcmp.eq.s32.totalorder %v170, %v186
        %vm219 = vcmp.eq.s32.totalorder %v171, %v186
        %vm220 = vcmp.eq.s32.totalorder %v172, %v186
        %vm221 = vcmp.eq.s32.totalorder %v173, %v186
        %vm222 = vcmp.eq.s32.totalorder %v174, %v186
        %vm223 = vcmp.eq.s32.totalorder %v169, %v189
        %vm224 = vcmp.eq.s32.totalorder %v170, %v189
        %vm225 = vcmp.eq.s32.totalorder %v171, %v189
        %vm226 = vcmp.eq.s32.totalorder %v172, %v189
        %vm227 = vcmp.eq.s32.totalorder %v173, %v189
        %vm228 = vcmp.eq.s32.totalorder %v174, %v189
        %vm229 = vcmp.eq.s32.totalorder %v169, %v192
        %vm230 = vcmp.eq.s32.totalorder %v170, %v192
        %vm231 = vcmp.eq.s32.totalorder %v171, %v192
        %vm232 = vcmp.eq.s32.totalorder %v172, %v192
        %vm233 = vcmp.eq.s32.totalorder %v173, %v192
        %vm234 = vcmp.eq.s32.totalorder %v174, %v192
        %vm235 = vcmp.eq.s32.totalorder %v169, %v195
        %vm236 = vcmp.eq.s32.totalorder %v170, %v195
        %vm237 = vcmp.eq.s32.totalorder %v171, %v195
        %vm238 = vcmp.eq.s32.totalorder %v172, %v195
        %vm239 = vcmp.eq.s32.totalorder %v173, %v195
        %vm240 = vcmp.eq.s32.totalorder %v174, %v195
        %vm241 = vcmp.eq.s32.totalorder %v169, %v198
        %vm242 = vcmp.eq.s32.totalorder %v170, %v198
        %vm243 = vcmp.eq.s32.totalorder %v171, %v198
        %vm244 = vcmp.eq.s32.totalorder %v172, %v198
        %vm245 = vcmp.eq.s32.totalorder %v173, %v198
        %vm246 = vcmp.eq.s32.totalorder %v174, %v198
        %247 = vset.pattern.permute.xlu0 1
        %248 = vperm.xlu0 %247, %v160
        %v249 = vpop.permute.xlu0 %248
        %250 = vset.pattern.permute.xlu0 1
        %251 = vperm.xlu0 %250, %v161
        %v252 = vpop.permute.xlu0 %251
        %253 = vset.pattern.permute.xlu0 1
        %254 = vperm.xlu0 %253, %v162
        %v255 = vpop.permute.xlu0 %254
        %256 = vset.pattern.permute.xlu0 1
        %257 = vperm.xlu0 %256, %v163
        %v258 = vpop.permute.xlu0 %257
        %259 = vset.pattern.permute.xlu0 1
        %260 = vperm.xlu0 %259, %v164
        %v261 = vpop.permute.xlu0 %260
        %262 = vset.pattern.permute.xlu0 1
        %263 = vperm.xlu0 %262, %v165
        %v264 = vpop.permute.xlu0 %263
        %265 = vset.pattern.permute.xlu0 1
        %266 = vperm.xlu0 %265, %v166
        %v267 = vpop.permute.xlu0 %266
        %268 = vset.pattern.permute.xlu0 1
        %269 = vperm.xlu0 %268, %v167
        %v270 = vpop.permute.xlu0 %269
        %vm271 = vcmp.eq.s32.totalorder %v169, %v249
        %vm272 = vcmp.eq.s32.totalorder %v170, %v249
        %vm273 = vcmp.eq.s32.totalorder %v171, %v249
        %vm274 = vcmp.eq.s32.totalorder %v172, %v249
        %vm275 = vcmp.eq.s32.totalorder %v173, %v249
        %vm276 = vcmp.eq.s32.totalorder %v174, %v249
        %vm277 = vcmp.eq.s32.totalorder %v169, %v252
        %vm278 = vcmp.eq.s32.totalorder %v170, %v252
        %vm279 = vcmp.eq.s32.totalorder %v171, %v252
        %vm280 = vcmp.eq.s32.totalorder %v172, %v252
        %vm281 = vcmp.eq.s32.totalorder %v173, %v252
        %vm282 = vcmp.eq.s32.totalorder %v174, %v252
        %vm283 = vcmp.eq.s32.totalorder %v169, %v255
        %vm284 = vcmp.eq.s32.totalorder %v170, %v255
        %vm285 = vcmp.eq.s32.totalorder %v171, %v255
        %vm286 = vcmp.eq.s32.totalorder %v172, %v255
        %vm287 = vcmp.eq.s32.totalorder %v173, %v255
        %vm288 = vcmp.eq.s32.totalorder %v174, %v255
        %vm289 = vcmp.eq.s32.totalorder %v169, %v258
        %vm290 = vcmp.eq.s32.totalorder %v170, %v258
        %vm291 = vcmp.eq.s32.totalorder %v171, %v258
        %vm292 = vcmp.eq.s32.totalorder %v172, %v258
        %vm293 = vcmp.eq.s32.totalorder %v173, %v258
        %vm294 = vcmp.eq.s32.totalorder %v174, %v258
        %vm295 = vcmp.eq.s32.totalorder %v169, %v261
        %vm296 = vcmp.eq.s32.totalorder %v170, %v261
        %vm297 = vcmp.eq.s32.totalorder %v171, %v261
        %vm298 = vcmp.eq.s32.totalorder %v172, %v261
        %vm299 = vcmp.eq.s32.totalorder %v173, %v261
        %vm300 = vcmp.eq.s32.totalorder %v174, %v261
        %vm301 = vcmp.eq.s32.totalorder %v169, %v264
        %vm302 = vcmp.eq.s32.totalorder %v170, %v264
        %vm303 = vcmp.eq.s32.totalorder %v171, %v264
        %vm304 = vcmp.eq.s32.totalorder %v172, %v264
        %vm305 = vcmp.eq.s32.totalorder %v173, %v264
        %vm306 = vcmp.eq.s32.totalorder %v174, %v264
        %vm307 = vcmp.eq.s32.totalorder %v169, %v267
        %vm308 = vcmp.eq.s32.totalorder %v170, %v267
        %vm309 = vcmp.eq.s32.totalorder %v171, %v267
        %vm310 = vcmp.eq.s32.totalorder %v172, %v267
        %vm311 = vcmp.eq.s32.totalorder %v173, %v267
        %vm312 = vcmp.eq.s32.totalorder %v174, %v267
        %vm313 = vcmp.eq.s32.totalorder %v169, %v270
        %vm314 = vcmp.eq.s32.totalorder %v170, %v270
        %vm315 = vcmp.eq.s32.totalorder %v171, %v270
        %vm316 = vcmp.eq.s32.totalorder %v172, %v270
        %vm317 = vcmp.eq.s32.totalorder %v173, %v270
        %vm318 = vcmp.eq.s32.totalorder %v174, %v270
        %vm319 = vmor %vm199, %vm271
        %vm320 = vmor %vm200, %vm272
        %vm321 = vmor %vm201, %vm273
        %vm322 = vmor %vm202, %vm274
        %vm323 = vmor %vm203, %vm275
        %vm324 = vmor %vm204, %vm276
        %vm325 = vmor %vm205, %vm277
        %vm326 = vmor %vm206, %vm278
        %vm327 = vmor %vm207, %vm279
        %vm328 = vmor %vm208, %vm280
        %vm329 = vmor %vm209, %vm281
        %vm330 = vmor %vm210, %vm282
        %vm331 = vmor %vm211, %vm283
        %vm332 = vmor %vm212, %vm284
        %vm333 = vmor %vm213, %vm285
        %vm334 = vmor %vm214, %vm286
        %vm335 = vmor %vm215, %vm287
        %vm336 = vmor %vm216, %vm288
        %vm337 = vmor %vm217, %vm289
        %vm338 = vmor %vm218, %vm290
        %vm339 = vmor %vm219, %vm291
        %vm340 = vmor %vm220, %vm292
        %vm341 = vmor %vm221, %vm293
        %vm342 = vmor %vm222, %vm294
        %vm343 = vmor %vm223, %vm295
        %vm344 = vmor %vm224, %vm296
        %vm345 = vmor %vm225, %vm297
        %vm346 = vmor %vm226, %vm298
        %vm347 = vmor %vm227, %vm299
        %vm348 = vmor %vm228, %vm300
        %vm349 = vmor %vm229, %vm301
        %vm350 = vmor %vm230, %vm302
        %vm351 = vmor %vm231, %vm303
        %vm352 = vmor %vm232, %vm304
        %vm353 = vmor %vm233, %vm305
        %vm354 = vmor %vm234, %vm306
        %vm355 = vmor %vm235, %vm307
        %vm356 = vmor %vm236, %vm308
        %vm357 = vmor %vm237, %vm309
        %vm358 = vmor %vm238, %vm310
        %vm359 = vmor %vm239, %vm311
        %vm360 = vmor %vm240, %vm312
        %vm361 = vmor %vm241, %vm313
        %vm362 = vmor %vm242, %vm314
        %vm363 = vmor %vm243, %vm315
        %vm364 = vmor %vm244, %vm316
        %vm365 = vmor %vm245, %vm317
        %vm366 = vmor %vm246, %vm318
        %367 = vset.pattern.permute.xlu0 2
        %368 = vperm.xlu0 %367, %v160
        %v369 = vpop.permute.xlu0 %368
        %370 = vset.pattern.permute.xlu0 2
        %371 = vperm.xlu0 %370, %v161
        %v372 = vpop.permute.xlu0 %371
        %373 = vset.pattern.permute.xlu0 2
        %374 = vperm.xlu0 %373, %v162
        %v375 = vpop.permute.xlu0 %374
        %376 = vset.pattern.permute.xlu0 2
        %377 = vperm.xlu0 %376, %v163
        %v378 = vpop.permute.xlu0 %377
        %379 = vset.pattern.permute.xlu0 2
        %380 = vperm.xlu0 %379, %v164
        %v381 = vpop.permute.xlu0 %380
        %382 = vset.pattern.permute.xlu0 2
        %383 = vperm.xlu0 %382, %v165
        %v384 = vpop.permute.xlu0 %383
        %385 = vset.pattern.permute.xlu0 2
        %386 = vperm.xlu0 %385, %v166
        %v387 = vpop.permute.xlu0 %386
        %388 = vset.pattern.permute.xlu0 2
        %389 = vperm.xlu0 %388, %v167
        %v390 = vpop.permute.xlu0 %389
        %vm391 = vcmp.eq.s32.totalorder %v169, %v369
        %vm392 = vcmp.eq.s32.totalorder %v170, %v369
        %vm393 = vcmp.eq.s32.totalorder %v171, %v369
        %vm394 = vcmp.eq.s32.totalorder %v172, %v369
        %vm395 = vcmp.eq.s32.totalorder %v173, %v369
        %vm396 = vcmp.eq.s32.totalorder %v174, %v369
        %vm397 = vcmp.eq.s32.totalorder %v169, %v372
        %vm398 = vcmp.eq.s32.totalorder %v170, %v372
        %vm399 = vcmp.eq.s32.totalorder %v171, %v372
        %vm400 = vcmp.eq.s32.totalorder %v172, %v372
        %vm401 = vcmp.eq.s32.totalorder %v173, %v372
        %vm402 = vcmp.eq.s32.totalorder %v174, %v372
        %vm403 = vcmp.eq.s32.totalorder %v169, %v375
        %vm404 = vcmp.eq.s32.totalorder %v170, %v375
        %vm405 = vcmp.eq.s32.totalorder %v171, %v375
        %vm406 = vcmp.eq.s32.totalorder %v172, %v375
        %vm407 = vcmp.eq.s32.totalorder %v173, %v375
        %vm408 = vcmp.eq.s32.totalorder %v174, %v375
        %vm409 = vcmp.eq.s32.totalorder %v169, %v378
        %vm410 = vcmp.eq.s32.totalorder %v170, %v378
        %vm411 = vcmp.eq.s32.totalorder %v171, %v378
        %vm412 = vcmp.eq.s32.totalorder %v172, %v378
        %vm413 = vcmp.eq.s32.totalorder %v173, %v378
        %vm414 = vcmp.eq.s32.totalorder %v174, %v378
        %vm415 = vcmp.eq.s32.totalorder %v169, %v381
        %vm416 = vcmp.eq.s32.totalorder %v170, %v381
        %vm417 = vcmp.eq.s32.totalorder %v171, %v381
        %vm418 = vcmp.eq.s32.totalorder %v172, %v381
        %vm419 = vcmp.eq.s32.totalorder %v173, %v381
        %vm420 = vcmp.eq.s32.totalorder %v174, %v381
        %vm421 = vcmp.eq.s32.totalorder %v169, %v384
        %vm422 = vcmp.eq.s32.totalorder %v170, %v384
        %vm423 = vcmp.eq.s32.totalorder %v171, %v384
        %vm424 = vcmp.eq.s32.totalorder %v172, %v384
        %vm425 = vcmp.eq.s32.totalorder %v173, %v384
        %vm426 = vcmp.eq.s32.totalorder %v174, %v384
        %vm427 = vcmp.eq.s32.totalorder %v169, %v387
        %vm428 = vcmp.eq.s32.totalorder %v170, %v387
        %vm429 = vcmp.eq.s32.totalorder %v171, %v387
        %vm430 = vcmp.eq.s32.totalorder %v172, %v387
        %vm431 = vcmp.eq.s32.totalorder %v173, %v387
        %vm432 = vcmp.eq.s32.totalorder %v174, %v387
        %vm433 = vcmp.eq.s32.totalorder %v169, %v390
        %vm434 = vcmp.eq.s32.totalorder %v170, %v390
        %vm435 = vcmp.eq.s32.totalorder %v171, %v390
        %vm436 = vcmp.eq.s32.totalorder %v172, %v390
        %vm437 = vcmp.eq.s32.totalorder %v173, %v390
        %vm438 = vcmp.eq.s32.totalorder %v174, %v390
        %vm439 = vmor %vm319, %vm391
        %vm440 = vmor %vm320, %vm392
        %vm441 = vmor %vm321, %vm393
        %vm442 = vmor %vm322, %vm394
        %vm443 = vmor %vm323, %vm395
        %vm444 = vmor %vm324, %vm396
        %vm445 = vmor %vm325, %vm397
        %vm446 = vmor %vm326, %vm398
        %vm447 = vmor %vm327, %vm399
        %vm448 = vmor %vm328, %vm400
        %vm449 = vmor %vm329, %vm401
        %vm450 = vmor %vm330, %vm402
        %vm451 = vmor %vm331, %vm403
        %vm452 = vmor %vm332, %vm404
        %vm453 = vmor %vm333, %vm405
        %vm454 = vmor %vm334, %vm406
        %vm455 = vmor %vm335, %vm407
        %vm456 = vmor %vm336, %vm408
        %vm457 = vmor %vm337, %vm409
        %vm458 = vmor %vm338, %vm410
        %vm459 = vmor %vm339, %vm411
        %vm460 = vmor %vm340, %vm412
        %vm461 = vmor %vm341, %vm413
        %vm462 = vmor %vm342, %vm414
        %vm463 = vmor %vm343, %vm415
        %vm464 = vmor %vm344, %vm416
        %vm465 = vmor %vm345, %vm417
        %vm466 = vmor %vm346, %vm418
        %vm467 = vmor %vm347, %vm419
        %vm468 = vmor %vm348, %vm420
        %vm469 = vmor %vm349, %vm421
        %vm470 = vmor %vm350, %vm422
        %vm471 = vmor %vm351, %vm423
        %vm472 = vmor %vm352, %vm424
        %vm473 = vmor %vm353, %vm425
        %vm474 = vmor %vm354, %vm426
        %vm475 = vmor %vm355, %vm427
        %vm476 = vmor %vm356, %vm428
        %vm477 = vmor %vm357, %vm429
        %vm478 = vmor %vm358, %vm430
        %vm479 = vmor %vm359, %vm431
        %vm480 = vmor %vm360, %vm432
        %vm481 = vmor %vm361, %vm433
        %vm482 = vmor %vm362, %vm434
        %vm483 = vmor %vm363, %vm435
        %vm484 = vmor %vm364, %vm436
        %vm485 = vmor %vm365, %vm437
        %vm486 = vmor %vm366, %vm438
        %487 = vset.pattern.permute.xlu0 3
        %488 = vperm.xlu0 %487, %v160
        %v489 = vpop.permute.xlu0 %488
        %490 = vset.pattern.permute.xlu0 3
        %491 = vperm.xlu0 %490, %v161
        %v492 = vpop.permute.xlu0 %491
        %493 = vset.pattern.permute.xlu0 3
        %494 = vperm.xlu0 %493, %v162
        %v495 = vpop.permute.xlu0 %494
        %496 = vset.pattern.permute.xlu0 3
        %497 = vperm.xlu0 %496, %v163
        %v498 = vpop.permute.xlu0 %497
        %499 = vset.pattern.permute.xlu0 3
        %500 = vperm.xlu0 %499, %v164
        %v501 = vpop.permute.xlu0 %500
        %502 = vset.pattern.permute.xlu0 3
        %503 = vperm.xlu0 %502, %v165
        %v504 = vpop.permute.xlu0 %503
        %505 = vset.pattern.permute.xlu0 3
        %506 = vperm.xlu0 %505, %v166
        %v507 = vpop.permute.xlu0 %506
        %508 = vset.pattern.permute.xlu0 3
        %509 = vperm.xlu0 %508, %v167
        %v510 = vpop.permute.xlu0 %509
        %vm511 = vcmp.eq.s32.totalorder %v169, %v489
        %vm512 = vcmp.eq.s32.totalorder %v170, %v489
        %vm513 = vcmp.eq.s32.totalorder %v171, %v489
        %vm514 = vcmp.eq.s32.totalorder %v172, %v489
        %vm515 = vcmp.eq.s32.totalorder %v173, %v489
        %vm516 = vcmp.eq.s32.totalorder %v174, %v489
        %vm517 = vcmp.eq.s32.totalorder %v169, %v492
        %vm518 = vcmp.eq.s32.totalorder %v170, %v492
        %vm519 = vcmp.eq.s32.totalorder %v171, %v492
        %vm520 = vcmp.eq.s32.totalorder %v172, %v492
        %vm521 = vcmp.eq.s32.totalorder %v173, %v492
        %vm522 = vcmp.eq.s32.totalorder %v174, %v492
        %vm523 = vcmp.eq.s32.totalorder %v169, %v495
        %vm524 = vcmp.eq.s32.totalorder %v170, %v495
        %vm525 = vcmp.eq.s32.totalorder %v171, %v495
        %vm526 = vcmp.eq.s32.totalorder %v172, %v495
        %vm527 = vcmp.eq.s32.totalorder %v173, %v495
        %vm528 = vcmp.eq.s32.totalorder %v174, %v495
        %vm529 = vcmp.eq.s32.totalorder %v169, %v498
        %vm530 = vcmp.eq.s32.totalorder %v170, %v498
        %vm531 = vcmp.eq.s32.totalorder %v171, %v498
        %vm532 = vcmp.eq.s32.totalorder %v172, %v498
        %vm533 = vcmp.eq.s32.totalorder %v173, %v498
        %vm534 = vcmp.eq.s32.totalorder %v174, %v498
        %vm535 = vcmp.eq.s32.totalorder %v169, %v501
        %vm536 = vcmp.eq.s32.totalorder %v170, %v501
        %vm537 = vcmp.eq.s32.totalorder %v171, %v501
        %vm538 = vcmp.eq.s32.totalorder %v172, %v501
        %vm539 = vcmp.eq.s32.totalorder %v173, %v501
        %vm540 = vcmp.eq.s32.totalorder %v174, %v501
        %vm541 = vcmp.eq.s32.totalorder %v169, %v504
        %vm542 = vcmp.eq.s32.totalorder %v170, %v504
        %vm543 = vcmp.eq.s32.totalorder %v171, %v504
        %vm544 = vcmp.eq.s32.totalorder %v172, %v504
        %vm545 = vcmp.eq.s32.totalorder %v173, %v504
        %vm546 = vcmp.eq.s32.totalorder %v174, %v504
        %vm547 = vcmp.eq.s32.totalorder %v169, %v507
        %vm548 = vcmp.eq.s32.totalorder %v170, %v507
        %vm549 = vcmp.eq.s32.totalorder %v171, %v507
        %vm550 = vcmp.eq.s32.totalorder %v172, %v507
        %vm551 = vcmp.eq.s32.totalorder %v173, %v507
        %vm552 = vcmp.eq.s32.totalorder %v174, %v507
        %vm553 = vcmp.eq.s32.totalorder %v169, %v510
        %vm554 = vcmp.eq.s32.totalorder %v170, %v510
        %vm555 = vcmp.eq.s32.totalorder %v171, %v510
        %vm556 = vcmp.eq.s32.totalorder %v172, %v510
        %vm557 = vcmp.eq.s32.totalorder %v173, %v510
        %vm558 = vcmp.eq.s32.totalorder %v174, %v510
        %vm559 = vmor %vm439, %vm511
        %vm560 = vmor %vm440, %vm512
        %vm561 = vmor %vm441, %vm513
        %vm562 = vmor %vm442, %vm514
        %vm563 = vmor %vm443, %vm515
        %vm564 = vmor %vm444, %vm516
        %vm565 = vmor %vm445, %vm517
        %vm566 = vmor %vm446, %vm518
        %vm567 = vmor %vm447, %vm519
        %vm568 = vmor %vm448, %vm520
        %vm569 = vmor %vm449, %vm521
        %vm570 = vmor %vm450, %vm522
        %vm571 = vmor %vm451, %vm523
        %vm572 = vmor %vm452, %vm524
        %vm573 = vmor %vm453, %vm525
        %vm574 = vmor %vm454, %vm526
        %vm575 = vmor %vm455, %vm527
        %vm576 = vmor %vm456, %vm528
        %vm577 = vmor %vm457, %vm529
        %vm578 = vmor %vm458, %vm530
        %vm579 = vmor %vm459, %vm531
        %vm580 = vmor %vm460, %vm532
        %vm581 = vmor %vm461, %vm533
        %vm582 = vmor %vm462, %vm534
        %vm583 = vmor %vm463, %vm535
        %vm584 = vmor %vm464, %vm536
        %vm585 = vmor %vm465, %vm537
        %vm586 = vmor %vm466, %vm538
        %vm587 = vmor %vm467, %vm539
        %vm588 = vmor %vm468, %vm540
        %vm589 = vmor %vm469, %vm541
        %vm590 = vmor %vm470, %vm542
        %vm591 = vmor %vm471, %vm543
        %vm592 = vmor %vm472, %vm544
        %vm593 = vmor %vm473, %vm545
        %vm594 = vmor %vm474, %vm546
        %vm595 = vmor %vm475, %vm547
        %vm596 = vmor %vm476, %vm548
        %vm597 = vmor %vm477, %vm549
        %vm598 = vmor %vm478, %vm550
        %vm599 = vmor %vm479, %vm551
        %vm600 = vmor %vm480, %vm552
        %vm601 = vmor %vm481, %vm553
        %vm602 = vmor %vm482, %vm554
        %vm603 = vmor %vm483, %vm555
        %vm604 = vmor %vm484, %vm556
        %vm605 = vmor %vm485, %vm557
        %vm606 = vmor %vm486, %vm558
        %v607 = vsel %vm559, 1, 0
        %v608 = vsel %vm560, 1, 0
        %v609 = vsel %vm561, 1, 0
        %v610 = vsel %vm562, 1, 0
        %v611 = vsel %vm563, 1, 0
        %v612 = vsel %vm564, 1, 0
        %v613 = vsel %vm565, 1, 0
        %v614 = vsel %vm566, 1, 0
        %v615 = vsel %vm567, 1, 0
        %v616 = vsel %vm568, 1, 0
        %v617 = vsel %vm569, 1, 0
        %v618 = vsel %vm570, 1, 0
        %v619 = vsel %vm571, 1, 0
        %v620 = vsel %vm572, 1, 0
        %v621 = vsel %vm573, 1, 0
        %v622 = vsel %vm574, 1, 0
        %v623 = vsel %vm575, 1, 0
        %v624 = vsel %vm576, 1, 0
        %v625 = vsel %vm577, 1, 0
        %v626 = vsel %vm578, 1, 0
        %v627 = vsel %vm579, 1, 0
        %v628 = vsel %vm580, 1, 0
        %v629 = vsel %vm581, 1, 0
        %v630 = vsel %vm582, 1, 0
        %v631 = vsel %vm583, 1, 0
        %v632 = vsel %vm584, 1, 0
        %v633 = vsel %vm585, 1, 0
        %v634 = vsel %vm586, 1, 0
        %v635 = vsel %vm587, 1, 0
        %v636 = vsel %vm588, 1, 0
        %v637 = vsel %vm589, 1, 0
        %v638 = vsel %vm590, 1, 0
        %v639 = vsel %vm591, 1, 0
        %v640 = vsel %vm592, 1, 0
        %v641 = vsel %vm593, 1, 0
        %v642 = vsel %vm594, 1, 0
        %v643 = vsel %vm595, 1, 0
        %v644 = vsel %vm596, 1, 0
        %v645 = vsel %vm597, 1, 0
        %v646 = vsel %vm598, 1, 0
        %v647 = vsel %vm599, 1, 0
        %v648 = vsel %vm600, 1, 0
        %v649 = vsel %vm601, 1, 0
        %v650 = vsel %vm602, 1, 0
        %v651 = vsel %vm603, 1, 0
        %v652 = vsel %vm604, 1, 0
        %v653 = vsel %vm605, 1, 0
        %v654 = vsel %vm606, 1, 0
        %v655 = vcvt.s32.f32 %v607
        %v656 = vcvt.s32.f32 %v608
        %v657 = vcvt.s32.f32 %v609
        %v658 = vcvt.s32.f32 %v610
        %v659 = vcvt.s32.f32 %v611
        %v660 = vcvt.s32.f32 %v612
        %v661 = vcvt.s32.f32 %v613
        %v662 = vcvt.s32.f32 %v614
        %v663 = vcvt.s32.f32 %v615
        %v664 = vcvt.s32.f32 %v616
        %v665 = vcvt.s32.f32 %v617
        %v666 = vcvt.s32.f32 %v618
        %v667 = vcvt.s32.f32 %v619
        %v668 = vcvt.s32.f32 %v620
        %v669 = vcvt.s32.f32 %v621
        %v670 = vcvt.s32.f32 %v622
        %v671 = vcvt.s32.f32 %v623
        %v672 = vcvt.s32.f32 %v624
        %v673 = vcvt.s32.f32 %v625
        %v674 = vcvt.s32.f32 %v626
        %v675 = vcvt.s32.f32 %v627
        %v676 = vcvt.s32.f32 %v628
        %v677 = vcvt.s32.f32 %v629
        %v678 = vcvt.s32.f32 %v630
        %v679 = vcvt.s32.f32 %v631
        %v680 = vcvt.s32.f32 %v632
        %v681 = vcvt.s32.f32 %v633
        %v682 = vcvt.s32.f32 %v634
        %v683 = vcvt.s32.f32 %v635
        %v684 = vcvt.s32.f32 %v636
        %v685 = vcvt.s32.f32 %v637
        %v686 = vcvt.s32.f32 %v638
        %v687 = vcvt.s32.f32 %v639
        %v688 = vcvt.s32.f32 %v640
        %v689 = vcvt.s32.f32 %v641
        %v690 = vcvt.s32.f32 %v642
        %v691 = vcvt.s32.f32 %v643
        %v692 = vcvt.s32.f32 %v644
        %v693 = vcvt.s32.f32 %v645
        %v694 = vcvt.s32.f32 %v646
        %v695 = vcvt.s32.f32 %v647
        %v696 = vcvt.s32.f32 %v648
        %v697 = vcvt.s32.f32 %v649
        %v698 = vcvt.s32.f32 %v650
        %v699 = vcvt.s32.f32 %v651
        %v700 = vcvt.s32.f32 %v652
        %v701 = vcvt.s32.f32 %v653
        %v702 = vcvt.s32.f32 %v654
        %v703 = vld [vmem:[#allocation2] sm:$0xff]
        %v704 = vld [vmem:[#allocation2 + $0x8] sm:$0xff]
        %v705 = vld [vmem:[#allocation2 + $0x10] sm:$0xff]
        %v706 = vld [vmem:[#allocation2 + $0x18] sm:$0xff]
        %v707 = vld [vmem:[#allocation2 + $0x20] sm:$0xff]
        %v708 = vld [vmem:[#allocation2 + $0x28] sm:$0xff]
        %v709 = vld [vmem:[#allocation2 + $0x30] sm:$0xff]
        %v710 = vld [vmem:[#allocation2 + $0x38] sm:$0xff]
        %v711 = vld [vmem:[#allocation2 + $0x40] sm:$0xff]
        %v712 = vld [vmem:[#allocation2 + $0x48] sm:$0xff]
        %v713 = vld [vmem:[#allocation2 + $0x50] sm:$0xff]
        %v714 = vld [vmem:[#allocation2 + $0x58] sm:$0xff]
        %v715 = vld [vmem:[#allocation2 + $0x60] sm:$0xff]
        %v716 = vld [vmem:[#allocation2 + $0x68] sm:$0xff]
        %v717 = vld [vmem:[#allocation2 + $0x70] sm:$0xff]
        %v718 = vld [vmem:[#allocation2 + $0x78] sm:$0xff]
        %v719 = vld [vmem:[#allocation2 + $0x80] sm:$0xff]
        %v720 = vld [vmem:[#allocation2 + $0x88] sm:$0xff]
        %v721 = vld [vmem:[#allocation2 + $0x90] sm:$0xff]
        %v722 = vld [vmem:[#allocation2 + $0x98] sm:$0xff]
        %v723 = vld [vmem:[#allocation2 + $0xa0] sm:$0xff]
        %v724 = vld [vmem:[#allocation2 + $0xa8] sm:$0xff]
        %v725 = vld [vmem:[#allocation2 + $0xb0] sm:$0xff]
        %v726 = vld [vmem:[#allocation2 + $0xb8] sm:$0xff]
        %v727 = vld [vmem:[#allocation2 + $0xc0] sm:$0xff]
        %v728 = vld [vmem:[#allocation2 + $0xc8] sm:$0xff]
        %v729 = vld [vmem:[#allocation2 + $0xd0] sm:$0xff]
        %v730 = vld [vmem:[#allocation2 + $0xd8] sm:$0xff]
        %v731 = vld [vmem:[#allocation2 + $0xe0] sm:$0xff]
        %v732 = vld [vmem:[#allocation2 + $0xe8] sm:$0xff]
        %v733 = vld [vmem:[#allocation2 + $0xf0] sm:$0xff]
        %v734 = vld [vmem:[#allocation2 + $0xf8] sm:$0xff]
        %v735 = vld [vmem:[#allocation2 + $0x100] sm:$0xff]
        %v736 = vld [vmem:[#allocation2 + $0x108] sm:$0xff]
        %v737 = vld [vmem:[#allocation2 + $0x110] sm:$0xff]
        %v738 = vld [vmem:[#allocation2 + $0x118] sm:$0xff]
        %v739 = vld [vmem:[#allocation2 + $0x120] sm:$0xff]
        %v740 = vld [vmem:[#allocation2 + $0x128] sm:$0xff]
        %v741 = vld [vmem:[#allocation2 + $0x130] sm:$0xff]
        %v742 = vld [vmem:[#allocation2 + $0x138] sm:$0xff]
        %v743 = vld [vmem:[#allocation2 + $0x140] sm:$0xff]
        %v744 = vld [vmem:[#allocation2 + $0x148] sm:$0xff]
        %v745 = vld [vmem:[#allocation2 + $0x150] sm:$0xff]
        %v746 = vld [vmem:[#allocation2 + $0x158] sm:$0xff]
        %v747 = vld [vmem:[#allocation2 + $0x160] sm:$0xff]
        %v748 = vld [vmem:[#allocation2 + $0x168] sm:$0xff]
        %v749 = vld [vmem:[#allocation2 + $0x170] sm:$0xff]
        %v750 = vld [vmem:[#allocation2 + $0x178] sm:$0xff]
        %v751 = vld [vmem:[#allocation2 + $0x180] sm:$0xff]
        %v752 = vld [vmem:[#allocation2 + $0x188] sm:$0xff]
        %v753 = vld [vmem:[#allocation2 + $0x190] sm:$0xff]
        %v754 = vld [vmem:[#allocation2 + $0x198] sm:$0xff]
        %v755 = vld [vmem:[#allocation2 + $0x1a0] sm:$0xff]
        %v756 = vld [vmem:[#allocation2 + $0x1a8] sm:$0xff]
        %v757 = vld [vmem:[#allocation2 + $0x1b0] sm:$0xff]
        %v758 = vld [vmem:[#allocation2 + $0x1b8] sm:$0xff]
        %v759 = vld [vmem:[#allocation2 + $0x1c0] sm:$0xff]
        %v760 = vld [vmem:[#allocation2 + $0x1c8] sm:$0xff]
        %v761 = vld [vmem:[#allocation2 + $0x1d0] sm:$0xff]
        %v762 = vld [vmem:[#allocation2 + $0x1d8] sm:$0xff]
        %v763 = vld [vmem:[#allocation2 + $0x1e0] sm:$0xff]
        %v764 = vld [vmem:[#allocation2 + $0x1e8] sm:$0xff]
        %v765 = vld [vmem:[#allocation2 + $0x1f0] sm:$0xff]
        %v766 = vld [vmem:[#allocation2 + $0x1f8] sm:$0xff]
        %v767 = vld [vmem:[#allocation2 + $0x200] sm:$0xff]
        %v768 = vld [vmem:[#allocation2 + $0x208] sm:$0xff]
        %v769 = vld [vmem:[#allocation2 + $0x210] sm:$0xff]
        %v770 = vld [vmem:[#allocation2 + $0x218] sm:$0xff]
        %v771 = vld [vmem:[#allocation2 + $0x220] sm:$0xff]
        %v772 = vld [vmem:[#allocation2 + $0x228] sm:$0xff]
        %v773 = vld [vmem:[#allocation2 + $0x230] sm:$0xff]
        %v774 = vld [vmem:[#allocation2 + $0x238] sm:$0xff]
        %v775 = vld [vmem:[#allocation2 + $0x240] sm:$0xff]
        %v776 = vld [vmem:[#allocation2 + $0x248] sm:$0xff]
        %v777 = vld [vmem:[#allocation2 + $0x250] sm:$0xff]
        %v778 = vld [vmem:[#allocation2 + $0x258] sm:$0xff]
        %v779 = vld [vmem:[#allocation2 + $0x260] sm:$0xff]
        %v780 = vld [vmem:[#allocation2 + $0x268] sm:$0xff]
        %v781 = vld [vmem:[#allocation2 + $0x270] sm:$0xff]
        %v782 = vld [vmem:[#allocation2 + $0x278] sm:$0xff]
        %v783 = vld [vmem:[#allocation2 + $0x280] sm:$0xff]
        %v784 = vld [vmem:[#allocation2 + $0x288] sm:$0xff]
        %v785 = vld [vmem:[#allocation2 + $0x290] sm:$0xff]
        %v786 = vld [vmem:[#allocation2 + $0x298] sm:$0xff]
        %v787 = vld [vmem:[#allocation2 + $0x2a0] sm:$0xff]
        %v788 = vld [vmem:[#allocation2 + $0x2a8] sm:$0xff]
        %v789 = vld [vmem:[#allocation2 + $0x2b0] sm:$0xff]
        %v790 = vld [vmem:[#allocation2 + $0x2b8] sm:$0xff]
        %v791 = vld [vmem:[#allocation2 + $0x2c0] sm:$0xff]
        %v792 = vld [vmem:[#allocation2 + $0x2c8] sm:$0xff]
        %v793 = vld [vmem:[#allocation2 + $0x2d0] sm:$0xff]
        %v794 = vld [vmem:[#allocation2 + $0x2d8] sm:$0xff]
        %v795 = vld [vmem:[#allocation2 + $0x2e0] sm:$0xff]
        %v796 = vld [vmem:[#allocation2 + $0x2e8] sm:$0xff]
        %v797 = vld [vmem:[#allocation2 + $0x2f0] sm:$0xff]
        %v798 = vld [vmem:[#allocation2 + $0x2f8] sm:$0xff]
        %799 = vmatprep.subr.mxu0 0.0
        %v800 = vand.u32 %v703, 4294901760
        %801 = vmatpush1.msra.mxu0 %v800
        %802 = vmatprep.subr.mxu0 0.0
        %v803 = vand.u32 %v704, 4294901760
        %804 = vmatpush1.msra.mxu0 %v803
        %805 = vmatprep.subr.mxu0 0.0
        %v806 = vand.u32 %v705, 4294901760
        %807 = vmatpush1.msra.mxu0 %v806
        %808 = vmatprep.subr.mxu0 0.0
        %v809 = vand.u32 %v706, 4294901760
        %810 = vmatpush1.msra.mxu0 %v809
        %811 = vmatprep.subr.mxu0 0.0
        %v812 = vand.u32 %v707, 4294901760
        %813 = vmatpush1.msra.mxu0 %v812
        %814 = vmatprep.subr.mxu0 0.0
        %v815 = vand.u32 %v708, 4294901760
        %816 = vmatpush1.msra.mxu0 %v815
        %817 = vmatprep.subr.mxu0 0.0
        %v818 = vand.u32 %v709, 4294901760
        %819 = vmatpush1.msra.mxu0 %v818
        %820 = vmatprep.subr.mxu0 0.0
        %v821 = vand.u32 %v710, 4294901760
        %822 = vmatpush1.msra.mxu0 %v821
        %823 = vmatprep.subr.mxu0 0.0
        %v824 = vand.u32 %v711, 4294901760
        %825 = vmatpush1.msra.mxu0 %v824
        %826 = vmatprep.subr.mxu0 0.0
        %v827 = vand.u32 %v712, 4294901760
        %828 = vmatpush1.msra.mxu0 %v827
        %829 = vmatprep.subr.mxu0 0.0
        %v830 = vand.u32 %v713, 4294901760
        %831 = vmatpush1.msra.mxu0 %v830
        %832 = vmatprep.subr.mxu0 0.0
        %v833 = vand.u32 %v714, 4294901760
        %834 = vmatpush1.msra.mxu0 %v833
        %835 = vmatprep.subr.mxu0 0.0
        %v836 = vand.u32 %v715, 4294901760
        %837 = vmatpush1.msra.mxu0 %v836
        %838 = vmatprep.subr.mxu0 0.0
        %v839 = vand.u32 %v716, 4294901760
        %840 = vmatpush1.msra.mxu0 %v839
        %841 = vmatprep.subr.mxu0 0.0
        %v842 = vand.u32 %v717, 4294901760
        %843 = vmatpush1.msra.mxu0 %v842
        %844 = vmatprep.subr.mxu0 0.0
        %v845 = vand.u32 %v718, 4294901760
        %846 = vmatpush1.msra.mxu0 %v845
        %847 = vmatprep.subr.mxu0 0.0
        %v848 = vand.u32 %v719, 4294901760
        %849 = vmatpush1.msra.mxu0 %v848
        %850 = vmatprep.subr.mxu0 0.0
        %v851 = vand.u32 %v720, 4294901760
        %852 = vmatpush1.msra.mxu0 %v851
        %853 = vmatprep.subr.mxu0 0.0
        %v854 = vand.u32 %v721, 4294901760
        %855 = vmatpush1.msra.mxu0 %v854
        %856 = vmatprep.subr.mxu0 0.0
        %v857 = vand.u32 %v722, 4294901760
        %858 = vmatpush1.msra.mxu0 %v857
        %859 = vmatprep.subr.mxu0 0.0
        %v860 = vand.u32 %v723, 4294901760
        %861 = vmatpush1.msra.mxu0 %v860
        %862 = vmatprep.subr.mxu0 0.0
        %v863 = vand.u32 %v724, 4294901760
        %864 = vmatpush1.msra.mxu0 %v863
        %865 = vmatprep.subr.mxu0 0.0
        %v866 = vand.u32 %v725, 4294901760
        %867 = vmatpush1.msra.mxu0 %v866
        %868 = vmatprep.subr.mxu0 0.0
        %v869 = vand.u32 %v726, 4294901760
        %870 = vmatpush1.msra.mxu0 %v869
        %871 = vmatprep.subr.mxu0 0.0
        %v872 = vand.u32 %v727, 4294901760
        %873 = vmatpush1.msra.mxu0 %v872
        %874 = vmatprep.subr.mxu0 0.0
        %v875 = vand.u32 %v728, 4294901760
        %876 = vmatpush1.msra.mxu0 %v875
        %877 = vmatprep.subr.mxu0 0.0
        %v878 = vand.u32 %v729, 4294901760
        %879 = vmatpush1.msra.mxu0 %v878
        %880 = vmatprep.subr.mxu0 0.0
        %v881 = vand.u32 %v730, 4294901760
        %882 = vmatpush1.msra.mxu0 %v881
        %883 = vmatprep.subr.mxu0 0.0
        %v884 = vand.u32 %v731, 4294901760
        %885 = vmatpush1.msra.mxu0 %v884
        %886 = vmatprep.subr.mxu0 0.0
        %v887 = vand.u32 %v732, 4294901760
        %888 = vmatpush1.msra.mxu0 %v887
        %889 = vmatprep.subr.mxu0 0.0
        %v890 = vand.u32 %v733, 4294901760
        %891 = vmatpush1.msra.mxu0 %v890
        %892 = vmatprep.subr.mxu0 0.0
        %v893 = vand.u32 %v734, 4294901760
        %894 = vmatpush1.msra.mxu0 %v893
        %v895 = vand.u32 %v656, 4294901760
        %v896 = vsub.f32 %v656, %v895
        %v897 = vand.u32 %v896, 4294901760
        %v898 = vsub.f32 %v896, %v897
        %v899 = vand.u32 %v898, 4294901760
        %900 = vmatprep.mubr.f32.mxu0 %v899
        %v901 = vand.u32 %v655, 4294901760
        %v902 = vsub.f32 %v655, %v901
        %v903 = vand.u32 %v902, 4294901760
        %v904 = vsub.f32 %v902, %v903
        %v905 = vand.u32 %v904, 4294901760
        %906 = vmatmul.mubr.f32.gmra.mrb[0].mxu0 %v905
        %v907 = vpop.f32.mrb[0].mxu0
        %v908 = vadd.f32 0.0, %v907
        %v909 = vpop.f32.mrb[0].mxu0
        %v910 = vand.u32 %v662, 4294901760
        %v911 = vsub.f32 %v662, %v910
        %v912 = vand.u32 %v911, 4294901760
        %v913 = vsub.f32 %v911, %v912
        %v914 = vand.u32 %v913, 4294901760
        %915 = vmatprep.mubr.f32.mxu0 %v914
        %v916 = vand.u32 %v661, 4294901760
        %v917 = vsub.f32 %v661, %v916
        %v918 = vand.u32 %v917, 4294901760
        %v919 = vsub.f32 %v917, %v918
        %v920 = vand.u32 %v919, 4294901760
        %921 = vmatmul.mubr.f32.gmra.mrb[0].mxu0 %v920
        %v922 = vpop.f32.mrb[0].mxu0
        %v923 = vadd.f32 0.0, %v922
        %v924 = vpop.f32.mrb[0].mxu0
        %v925 = vand.u32 %v668, 4294901760
        %v926 = vsub.f32 %v668, %v925
        %v927 = vand.u32 %v926, 4294901760
        %v928 = vsub.f32 %v926, %v927
        %v929 = vand.u32 %v928, 4294901760
        %930 = vmatprep.mubr.f32.mxu0 %v929
        %v931 = vand.u32 %v667, 4294901760
        %v932 = vsub.f32 %v667, %v931
        %v933 = vand.u32 %v932, 4294901760
        %v934 = vsub.f32 %v932, %v933
        %v935 = vand.u32 %v934, 4294901760
        %936 = vmatmul.mubr.f32.gmra.mrb[0].mxu0 %v935
        %v937 = vpop.f32.mrb[0].mxu0
        %v938 = vadd.f32 0.0, %v937
        %v939 = vpop.f32.mrb[0].mxu0
        %v940 = vand.u32 %v674, 4294901760
        %v941 = vsub.f32 %v674, %v940
        %v942 = vand.u32 %v941, 4294901760
        %v943 = vsub.f32 %v941, %v942
        %v944 = vand.u32 %v943, 4294901760
        %945 = vmatprep.mubr.f32.mxu0 %v944
        %v946 = vand.u32 %v673, 4294901760
        %v947 = vsub.f32 %v673, %v946
        %v948 = vand.u32 %v947, 4294901760
        %v949 = vsub.f32 %v947, %v948
        %v950 = vand.u32 %v949, 4294901760
        %951 = vmatmul.mubr.f32.gmra.mrb[0].mxu0 %v950
        %v952 = vpop.f32.mrb[0].mxu0
        %v953 = vadd.f32 0.0, %v952
        %v954 = vpop.f32.mrb[0].mxu0
        %v955 = vand.u32 %v680, 4294901760
        %v956 = vsub.f32 %v680, %v955
        %v957 = vand.u32 %v956, 4294901760
        %v958 = vsub.f32 %v956, %v957
        %v959 = vand.u32 %v958, 4294901760
        %960 = vmatprep.mubr.f32.mxu0 %v959
        %v961 = vand.u32 %v679, 4294901760
        %v962 = vsub.f32 %v679, %v961
        %v963 = vand.u32 %v962, 4294901760
        %v964 = vsub.f32 %v962, %v963
        %v965 = vand.u32 %v964, 4294901760
        %966 = vmatmul.mubr.f32.gmra.mrb[0].mxu0 %v965
        %v967 = vpop.f32.mrb[0].mxu0
        %v968 = vadd.f32 0.0, %v967
        %v969 = vpop.f32.mrb[0].mxu0
        %v970 = vand.u32 %v686, 4294901760
        %v971 = vsub.f32 %v686, %v970
        %v972 = vand.u32 %v971, 4294901760
        %v973 = vsub.f32 %v971, %v972
        %v974 = vand.u32 %v973, 4294901760
        %975 = vmatprep.mubr.f32.mxu0 %v974
        %v976 = vand.u32 %v685, 4294901760
        %v977 = vsub.f32 %v685, %v976
        %v978 = vand.u32 %v977, 4294901760
        %v979 = vsub.f32 %v977, %v978
        %v980 = vand.u32 %v979, 4294901760
        %981 = vmatmul.mubr.f32.gmra.mrb[0].mxu0 %v980
        %v982 = vpop.f32.mrb[0].mxu0
        %v983 = vadd.f32 0.0, %v982
        %v984 = vpop.f32.mrb[0].mxu0
        %v985 = vand.u32 %v692, 4294901760
        %v986 = vsub.f32 %v692, %v985
        %v987 = vand.u32 %v986, 4294901760
        %v988 = vsub.f32 %v986, %v987
        %v989 = vand.u32 %v988, 4294901760
        %990 = vmatprep.mubr.f32.mxu0 %v989
        %v991 = vand.u32 %v691, 4294901760
        %v992 = vsub.f32 %v691, %v991
        %v993 = vand.u32 %v992, 4294901760
        %v994 = vsub.f32 %v992, %v993
        %v995 = vand.u32 %v994, 4294901760
        %996 = vmatmul.mubr.f32.gmra.mrb[0].mxu0 %v995
        %v997 = vpop.f32.mrb[0].mxu0
        %v998 = vadd.f32 0.0, %v997
        %v999 = vpop.f32.mrb[0].mxu0
        %v1000 = vand.u32 %v698, 4294901760
        %v1001 = vsub.f32 %v698, %v1000
        %v1002 = vand.u32 %v1001, 4294901760
        %v1003 = vsub.f32 %v1001, %v1002
        %v1004 = vand.u32 %v1003, 4294901760
        %1005 = vmatprep.mubr.f32.mxu0 %v1004
        %v1006 = vand.u32 %v697, 4294901760
        %v1007 = vsub.f32 %v697, %v1006
        %v1008 = vand.u32 %v1007, 4294901760
        %v1009 = vsub.f32 %v1007, %v1008
        %v1010 = vand.u32 %v1009, 4294901760
        %1011 = vmatmul.mubr.f32.gmra.mrb[0].mxu0 %v1010
        %v1012 = vpop.f32.mrb[0].mxu0
        %v1013 = vadd.f32 0.0, %v1012
        %v1014 = vpop.f32.mrb[0].mxu0
        %1015 = vdwg.mxu0
        %1016 = vmatprep.subr.mxu0 0.0
        %v1017 = vand.u32 %v703, 4294901760
        %v1018 = vsub.f32 %v703, %v1017
        %v1019 = vand.u32 %v1018, 4294901760
        %v1020 = vsub.f32 %v1018, %v1019
        %v1021 = vand.u32 %v1020, 4294901760
        %1022 = vmatpush1.msra.mxu0 %v1021
        %1023 = vmatprep.subr.mxu0 0.0
        %v1024 = vand.u32 %v704, 4294901760
        %v1025 = vsub.f32 %v704, %v1024
        %v1026 = vand.u32 %v1025, 4294901760
        %v1027 = vsub.f32 %v1025, %v1026
        %v1028 = vand.u32 %v1027, 4294901760
        %1029 = vmatpush1.msra.mxu0 %v1028
        %1030 = vmatprep.subr.mxu0 0.0
        %v1031 = vand.u32 %v705, 4294901760
        %v1032 = vsub.f32 %v705, %v1031
        %v1033 = vand.u32 %v1032, 4294901760
        %v1034 = vsub.f32 %v1032, %v1033
        %v1035 = vand.u32 %v1034, 4294901760
        %1036 = vmatpush1.msra.mxu0 %v1035
        %1037 = vmatprep.subr.mxu0 0.0
        %v1038 = vand.u32 %v706, 4294901760
        %v1039 = vsub.f32 %v706, %v1038
        %v1040 = vand.u32 %v1039, 4294901760
        %v1041 = vsub.f32 %v1039, %v1040
        %v1042 = vand.u32 %v1041, 4294901760
        %1043 = vmatpush1.msra.mxu0 %v1042
        %1044 = vmatprep.subr.mxu0 0.0
        %v1045 = vand.u32 %v707, 4294901760
        %v1046 = vsub.f32 %v707, %v1045
        %v1047 = vand.u32 %v1046, 4294901760
        %v1048 = vsub.f32 %v1046, %v1047
        %v1049 = vand.u32 %v1048, 4294901760
        %1050 = vmatpush1.msra.mxu0 %v1049
        %1051 = vmatprep.subr.mxu0 0.0
        %v1052 = vand.u32 %v708, 4294901760
        %v1053 = vsub.f32 %v708, %v1052
        %v1054 = vand.u32 %v1053, 4294901760
        %v1055 = vsub.f32 %v1053, %v1054
        %v1056 = vand.u32 %v1055, 4294901760
        %1057 = vmatpush1.msra.mxu0 %v1056
        %1058 = vmatprep.subr.mxu0 0.0
        %v1059 = vand.u32 %v709, 4294901760
        %v1060 = vsub.f32 %v709, %v1059
        %v1061 = vand.u32 %v1060, 4294901760
        %v1062 = vsub.f32 %v1060, %v1061
        %v1063 = vand.u32 %v1062, 4294901760
        %1064 = vmatpush1.msra.mxu0 %v1063
        %1065 = vmatprep.subr.mxu0 0.0
        %v1066 = vand.u32 %v710, 4294901760
        %v1067 = vsub.f32 %v710, %v1066
        %v1068 = vand.u32 %v1067, 4294901760
        %v1069 = vsub.f32 %v1067, %v1068
        %v1070 = vand.u32 %v1069, 4294901760
        %1071 = vmatpush1.msra.mxu0 %v1070
        %1072 = vmatprep.subr.mxu0 0.0
        %v1073 = vand.u32 %v711, 4294901760
        %v1074 = vsub.f32 %v711, %v1073
        %v1075 = vand.u32 %v1074, 4294901760
        %v1076 = vsub.f32 %v1074, %v1075
        %v1077 = vand.u32 %v1076, 4294901760
        %1078 = vmatpush1.msra.mxu0 %v1077
        %1079 = vmatprep.subr.mxu0 0.0
        %v1080 = vand.u32 %v712, 4294901760
        %v1081 = vsub.f32 %v712, %v1080
        %v1082 = vand.u32 %v1081, 4294901760
        %v1083 = vsub.f32 %v1081, %v1082
        %v1084 = vand.u32 %v1083, 4294901760
        %1085 = vmatpush1.msra.mxu0 %v1084
        %1086 = vmatprep.subr.mxu0 0.0
        %v1087 = vand.u32 %v713, 4294901760
        %v1088 = vsub.f32 %v713, %v1087
        %v1089 = vand.u32 %v1088, 4294901760
        %v1090 = vsub.f32 %v1088, %v1089
        %v1091 = vand.u32 %v1090, 4294901760
        %1092 = vmatpush1.msra.mxu0 %v1091
        %1093 = vmatprep.subr.mxu0 0.0
        %v1094 = vand.u32 %v714, 4294901760
        %v1095 = vsub.f32 %v714, %v1094
        %v1096 = vand.u32 %v1095, 4294901760
        %v1097 = vsub.f32 %v1095, %v1096
        %v1098 = vand.u32 %v1097, 4294901760
        %1099 = vmatpush1.msra.mxu0 %v1098
        %1100 = vmatprep.subr.mxu0 0.0
        %v1101 = vand.u32 %v715, 4294901760
        %v1102 = vsub.f32 %v715, %v1101
        %v1103 = vand.u32 %v1102, 4294901760
        %v1104 = vsub.f32 %v1102, %v1103
        %v1105 = vand.u32 %v1104, 4294901760
        %1106 = vmatpush1.msra.mxu0 %v1105
        %1107 = vmatprep.subr.mxu0 0.0
        %v1108 = vand.u32 %v716, 4294901760
        %v1109 = vsub.f32 %v716, %v1108
        %v1110 = vand.u32 %v1109, 4294901760
        %v1111 = vsub.f32 %v1109, %v1110
        %v1112 = vand.u32 %v1111, 4294901760
        %1113 = vmatpush1.msra.mxu0 %v1112
        %1114 = vmatprep.subr.mxu0 0.0
        %v1115 = vand.u32 %v717, 4294901760
        %v1116 = vsub.f32 %v717, %v1115
        %v1117 = vand.u32 %v1116, 4294901760
        %v1118 = vsub.f32 %v1116, %v1117
        %v1119 = vand.u32 %v1118, 4294901760
        %1120 = vmatpush1.msra.mxu0 %v1119
        %1121 = vmatprep.subr.mxu0 0.0
        %v1122 = vand.u32 %v718, 4294901760
        %v1123 = vsub.f32 %v718, %v1122
        %v1124 = vand.u32 %v1123, 4294901760
        %v1125 = vsub.f32 %v1123, %v1124
        %v1126 = vand.u32 %v1125, 4294901760
        %1127 = vmatpush1.msra.mxu0 %v1126
        %1128 = vmatprep.subr.mxu0 0.0
        %v1129 = vand.u32 %v719, 4294901760
        %v1130 = vsub.f32 %v719, %v1129
        %v1131 = vand.u32 %v1130, 4294901760
        %v1132 = vsub.f32 %v1130, %v1131
        %v1133 = vand.u32 %v1132, 4294901760
        %1134 = vmatpush1.msra.mxu0 %v1133
        %1135 = vmatprep.subr.mxu0 0.0
        %v1136 = vand.u32 %v720, 4294901760
        %v1137 = vsub.f32 %v720, %v1136
        %v1138 = vand.u32 %v1137, 4294901760
        %v1139 = vsub.f32 %v1137, %v1138
        %v1140 = vand.u32 %v1139, 4294901760
        %1141 = vmatpush1.msra.mxu0 %v1140
        %1142 = vmatprep.subr.mxu0 0.0
        %v1143 = vand.u32 %v721, 4294901760
        %v1144 = vsub.f32 %v721, %v1143
        %v1145 = vand.u32 %v1144, 4294901760
        %v1146 = vsub.f32 %v1144, %v1145
        %v1147 = vand.u32 %v1146, 4294901760
        %1148 = vmatpush1.msra.mxu0 %v1147
        %1149 = vmatprep.subr.mxu0 0.0
        %v1150 = vand.u32 %v722, 4294901760
        %v1151 = vsub.f32 %v722, %v1150
        %v1152 = vand.u32 %v1151, 4294901760
        %v1153 = vsub.f32 %v1151, %v1152
        %v1154 = vand.u32 %v1153, 4294901760
        %1155 = vmatpush1.msra.mxu0 %v1154
        %1156 = vmatprep.subr.mxu0 0.0
        %v1157 = vand.u32 %v723, 4294901760
        %v1158 = vsub.f32 %v723, %v1157
        %v1159 = vand.u32 %v1158, 4294901760
        %v1160 = vsub.f32 %v1158, %v1159
        %v1161 = vand.u32 %v1160, 4294901760
        %1162 = vmatpush1.msra.mxu0 %v1161
        %1163 = vmatprep.subr.mxu0 0.0
        %v1164 = vand.u32 %v724, 4294901760
        %v1165 = vsub.f32 %v724, %v1164
        %v1166 = vand.u32 %v1165, 4294901760
        %v1167 = vsub.f32 %v1165, %v1166
        %v1168 = vand.u32 %v1167, 4294901760
        %1169 = vmatpush1.msra.mxu0 %v1168
        %1170 = vmatprep.subr.mxu0 0.0
        %v1171 = vand.u32 %v725, 4294901760
        %v1172 = vsub.f32 %v725, %v1171
        %v1173 = vand.u32 %v1172, 4294901760
        %v1174 = vsub.f32 %v1172, %v1173
        %v1175 = vand.u32 %v1174, 4294901760
        %1176 = vmatpush1.msra.mxu0 %v1175
        %1177 = vmatprep.subr.mxu0 0.0
        %v1178 = vand.u32 %v726, 4294901760
        %v1179 = vsub.f32 %v726, %v1178
        %v1180 = vand.u32 %v1179, 4294901760
        %v1181 = vsub.f32 %v1179, %v1180
        %v1182 = vand.u32 %v1181, 4294901760
        %1183 = vmatpush1.msra.mxu0 %v1182
        %1184 = vmatprep.subr.mxu0 0.0
        %v1185 = vand.u32 %v727, 4294901760
        %v1186 = vsub.f32 %v727, %v1185
        %v1187 = vand.u32 %v1186, 4294901760
        %v1188 = vsub.f32 %v1186, %v1187
        %v1189 = vand.u32 %v1188, 4294901760
        %1190 = vmatpush1.msra.mxu0 %v1189
        %1191 = vmatprep.subr.mxu0 0.0
        %v1192 = vand.u32 %v728, 4294901760
        %v1193 = vsub.f32 %v728, %v1192
        %v1194 = vand.u32 %v1193, 4294901760
        %v1195 = vsub.f32 %v1193, %v1194
        %v1196 = vand.u32 %v1195, 4294901760
        %1197 = vmatpush1.msra.mxu0 %v1196
        %1198 = vmatprep.subr.mxu0 0.0
        %v1199 = vand.u32 %v729, 4294901760
        %v1200 = vsub.f32 %v729, %v1199
        %v1201 = vand.u32 %v1200, 4294901760
        %v1202 = vsub.f32 %v1200, %v1201
        %v1203 = vand.u32 %v1202, 4294901760
        %1204 = vmatpush1.msra.mxu0 %v1203
        %1205 = vmatprep.subr.mxu0 0.0
        %v1206 = vand.u32 %v730, 4294901760
        %v1207 = vsub.f32 %v730, %v1206
        %v1208 = vand.u32 %v1207, 4294901760
        %v1209 = vsub.f32 %v1207, %v1208
        %v1210 = vand.u32 %v1209, 4294901760
        %1211 = vmatpush1.msra.mxu0 %v1210
        %1212 = vmatprep.subr.mxu0 0.0
        %v1213 = vand.u32 %v731, 4294901760
        %v1214 = vsub.f32 %v731, %v1213
        %v1215 = vand.u32 %v1214, 4294901760
        %v1216 = vsub.f32 %v1214, %v1215
        %v1217 = vand.u32 %v1216, 4294901760
        %1218 = vmatpush1.msra.mxu0 %v1217
        %1219 = vmatprep.subr.mxu0 0.0
        %v1220 = vand.u32 %v732, 4294901760
        %v1221 = vsub.f32 %v732, %v1220
        %v1222 = vand.u32 %v1221, 4294901760
        %v1223 = vsub.f32 %v1221, %v1222
        %v1224 = vand.u32 %v1223, 4294901760
        %1225 = vmatpush1.msra.mxu0 %v1224
        %1226 = vmatprep.subr.mxu0 0.0
        %v1227 = vand.u32 %v733, 4294901760
        %v1228 = vsub.f32 %v733, %v1227
        %v1229 = vand.u32 %v1228, 4294901760
        %v1230 = vsub.f32 %v1228, %v1229
        %v1231 = vand.u32 %v1230, 4294901760
        %1232 = vmatpush1.msra.mxu0 %v1231
        %1233 = vmatprep.subr.mxu0 0.0
        %v1234 = vand.u32 %v734, 4294901760
        %v1235 = vsub.f32 %v734, %v1234
        %v1236 = vand.u32 %v1235, 4294901760
        %v1237 = vsub.f32 %v1235, %v1236
        %v1238 = vand.u32 %v1237, 4294901760
        %1239 = vmatpush1.msra.mxu0 %v1238
        %v1240 = vand.u32 %v656, 4294901760
        %1241 = vmatprep.mubr.f32.mxu0 %v1240
        %v1242 = vand.u32 %v655, 4294901760
        %1243 = vmatmul.mubr.f32.gmra.mrb[0].mxu0 %v1242
        %v1244 = vpop.f32.mrb[0].mxu0
        %v1245 = vadd.f32 %v908, %v1244
        %v1246 = vpop.f32.mrb[0].mxu0
        %v1247 = vand.u32 %v662, 4294901760
        %1248 = vmatprep.mubr.f32.mxu0 %v1247
        %v1249 = vand.u32 %v661, 4294901760
        %1250 = vmatmul.mubr.f32.gmra.mrb[0].mxu0 %v1249
        %v1251 = vpop.f32.mrb[0].mxu0
        %v1252 = vadd.f32 %v923, %v1251
        %v1253 = vpop.f32.mrb[0].mxu0
        %v1254 = vand.u32 %v668, 4294901760
        %1255 = vmatprep.mubr.f32.mxu0 %v1254
        %v1256 = vand.u32 %v667, 4294901760
        %1257 = vmatmul.mubr.f32.gmra.mrb[0].mxu0 %v1256
        %v1258 = vpop.f32.mrb[0].mxu0
        %v1259 = vadd.f32 %v938, %v1258
        %v1260 = vpop.f32.mrb[0].mxu0
        %v1261 = vand.u32 %v674, 4294901760
        %1262 = vmatprep.mubr.f32.mxu0 %v1261
        %v1263 = vand.u32 %v673, 4294901760
        %1264 = vmatmul.mubr.f32.gmra.mrb[0].mxu0 %v1263
        %v1265 = vpop.f32.mrb[0].mxu0
        %v1266 = vadd.f32 %v953, %v1265
        %v1267 = vpop.f32.mrb[0].mxu0
        %v1268 = vand.u32 %v680, 4294901760
        %1269 = vmatprep.mubr.f32.mxu0 %v1268
        %v1270 = vand.u32 %v679, 4294901760
        %1271 = vmatmul.mubr.f32.gmra.mrb[0].mxu0 %v1270
        %v1272 = vpop.f32.mrb[0].mxu0
        %v1273 = vadd.f32 %v968, %v1272
        %v1274 = vpop.f32.mrb[0].mxu0
        %v1275 = vand.u32 %v686, 4294901760
        %1276 = vmatprep.mubr.f32.mxu0 %v1275
        %v1277 = vand.u32 %v685, 4294901760
        %1278 = vmatmul.mubr.f32.gmra.mrb[0].mxu0 %v1277
        %v1279 = vpop.f32.mrb[0].mxu0
        %v1280 = vadd.f32 %v983, %v1279
        %v1281 = vpop.f32.mrb[0].mxu0
        %v1282 = vand.u32 %v692, 4294901760
        %1283 = vmatprep.mubr.f32.mxu0 %v1282
        %v1284 = vand.u32 %v691, 4294901760
        %1285 = vmatmul.mubr.f32.gmra.mrb[0].mxu0 %v1284
        %v1286 = vpop.f32.mrb[0].mxu0
        %v1287 = vadd.f32 %v998, %v1286
        %v1288 = vpop.f32.mrb[0].mxu0
        %v1289 = vand.u32 %v698, 4294901760
        %1290 = vmatprep.mubr.f32.mxu0 %v1289
        %v1291 = vand.u32 %v697, 4294901760
        %1292 = vmatmul.mubr.f32.gmra.mrb[0].mxu0 %v1291
        %v1293 = vpop.f32.mrb[0].mxu0
        %v1294 = vadd.f32 %v1013, %v1293
        %v1295 = vpop.f32.mrb[0].mxu0
        %1296 = vdwg.mxu0
        %1297 = vmatprep.subr.mxu0 0.0
        %v1298 = vand.u32 %v703, 4294901760
        %v1299 = vsub.f32 %v703, %v1298
        %1300 = vmatpush1.msra.mxu0 %v1299
        %1301 = vmatprep.subr.mxu0 0.0
        %v1302 = vand.u32 %v704, 4294901760
        %v1303 = vsub.f32 %v704, %v1302
        %1304 = vmatpush1.msra.mxu0 %v1303
        %1305 = vmatprep.subr.mxu0 0.0
        %v1306 = vand.u32 %v705, 4294901760
        %v1307 = vsub.f32 %v705, %v1306
        %1308 = vmatpush1.msra.mxu0 %v1307
        %1309 = vmatprep.subr.mxu0 0.0
        %v1310 = vand.u32 %v706, 4294901760
        %v1311 = vsub.f32 %v706, %v1310
        %1312 = vmatpush1.msra.mxu0 %v1311
        %1313 = vmatprep.subr.mxu0 0.0
        %v1314 = vand.u32 %v707, 4294901760
        %v1315 = vsub.f32 %v707, %v1314
        %1316 = vmatpush1.msra.mxu0 %v1315
        %1317 = vmatprep.subr.mxu0 0.0
        %v1318 = vand.u32 %v708, 4294901760
        %v1319 = vsub.f32 %v708, %v1318
        %1320 = vmatpush1.msra.mxu0 %v1319
        %1321 = vmatprep.subr.mxu0 0.0
        %v1322 = vand.u32 %v709, 4294901760
        %v1323 = vsub.f32 %v709, %v1322
        %1324 = vmatpush1.msra.mxu0 %v1323
        %1325 = vmatprep.subr.mxu0 0.0
        %v1326 = vand.u32 %v710, 4294901760
        %v1327 = vsub.f32 %v710, %v1326
        %1328 = vmatpush1.msra.mxu0 %v1327
        %1329 = vmatprep.subr.mxu0 0.0
        %v1330 = vand.u32 %v711, 4294901760
        %v1331 = vsub.f32 %v711, %v1330
        %1332 = vmatpush1.msra.mxu0 %v1331
        %1333 = vmatprep.subr.mxu0 0.0
        %v1334 = vand.u32 %v712, 4294901760
        %v1335 = vsub.f32 %v712, %v1334
        %1336 = vmatpush1.msra.mxu0 %v1335
        %1337 = vmatprep.subr.mxu0 0.0
        %v1338 = vand.u32 %v713, 4294901760
        %v1339 = vsub.f32 %v713, %v1338
        %1340 = vmatpush1.msra.mxu0 %v1339
        %1341 = vmatprep.subr.mxu0 0.0
        %v1342 = vand.u32 %v714, 4294901760
        %v1343 = vsub.f32 %v714, %v1342
        %1344 = vmatpush1.msra.mxu0 %v1343
        %1345 = vmatprep.subr.mxu0 0.0
        %v1346 = vand.u32 %v715, 4294901760
        %v1347 = vsub.f32 %v715, %v1346
        %1348 = vmatpush1.msra.mxu0 %v1347
        %1349 = vmatprep.subr.mxu0 0.0
        %v1350 = vand.u32 %v716, 4294901760
        %v1351 = vsub.f32 %v716, %v1350
        %1352 = vmatpush1.msra.mxu0 %v1351
        %1353 = vmatprep.subr.mxu0 0.0
        %v1354 = vand.u32 %v717, 4294901760
        %v1355 = vsub.f32 %v717, %v1354
        %1356 = vmatpush1.msra.mxu0 %v1355
        %1357 = vmatprep.subr.mxu0 0.0
        %v1358 = vand.u32 %v718, 4294901760
        %v1359 = vsub.f32 %v718, %v1358
        %1360 = vmatpush1.msra.mxu0 %v1359
        %1361 = vmatprep.subr.mxu0 0.0
        %v1362 = vand.u32 %v719, 4294901760
        %v1363 = vsub.f32 %v719, %v1362
        %1364 = vmatpush1.msra.mxu0 %v1363
        %1365 = vmatprep.subr.mxu0 0.0
        %v1366 = vand.u32 %v720, 4294901760
        %v1367 = vsub.f32 %v720, %v1366
        %1368 = vmatpush1.msra.mxu0 %v1367
        %1369 = vmatprep.subr.mxu0 0.0
        %v1370 = vand.u32 %v721, 4294901760
        %v1371 = vsub.f32 %v721, %v1370
        %1372 = vmatpush1.msra.mxu0 %v1371
        %1373 = vmatprep.subr.mxu0 0.0
        %v1374 = vand.u32 %v722, 4294901760
        %v1375 = vsub.f32 %v722, %v1374
        %1376 = vmatpush1.msra.mxu0 %v1375
        %1377 = vmatprep.subr.mxu0 0.0
        %v1378 = vand.u32 %v723, 4294901760
        %v1379 = vsub.f32 %v723, %v1378
        %1380 = vmatpush1.msra.mxu0 %v1379
        %1381 = vmatprep.subr.mxu0 0.0
        %v1382 = vand.u32 %v724, 4294901760
        %v1383 = vsub.f32 %v724, %v1382
        %1384 = vmatpush1.msra.mxu0 %v1383
        %1385 = vmatprep.subr.mxu0 0.0
        %v1386 = vand.u32 %v725, 4294901760
        %v1387 = vsub.f32 %v725, %v1386
        %1388 = vmatpush1.msra.mxu0 %v1387
        %1389 = vmatprep.subr.mxu0 0.0
        %v1390 = vand.u32 %v726, 4294901760
        %v1391 = vsub.f32 %v726, %v1390
        %1392 = vmatpush1.msra.mxu0 %v1391
        %1393 = vmatprep.subr.mxu0 0.0
        %v1394 = vand.u32 %v727, 4294901760
        %v1395 = vsub.f32 %v727, %v1394
        %1396 = vmatpush1.msra.mxu0 %v1395
        %1397 = vmatprep.subr.mxu0 0.0
        %v1398 = vand.u32 %v728, 4294901760
        %v1399 = vsub.f32 %v728, %v1398
        %1400 = vmatpush1.msra.mxu0 %v1399
        %1401 = vmatprep.subr.mxu0 0.0
        %v1402 = vand.u32 %v729, 4294901760
        %v1403 = vsub.f32 %v729, %v1402
        %1404 = vmatpush1.msra.mxu0 %v1403
        %1405 = vmatprep.subr.mxu0 0.0
        %v1406 = vand.u32 %v730, 4294901760
        %v1407 = vsub.f32 %v730, %v1406
        %1408 = vmatpush1.msra.mxu0 %v1407
        %1409 = vmatprep.subr.mxu0 0.0
        %v1410 = vand.u32 %v731, 4294901760
        %v1411 = vsub.f32 %v731, %v1410
        %1412 = vmatpush1.msra.mxu0 %v1411
        %1413 = vmatprep.subr.mxu0 0.0
        %v1414 = vand.u32 %v732, 4294901760
        %v1415 = vsub.f32 %v732, %v1414
        %1416 = vmatpush1.msra.mxu0 %v1415
        %1417 = vmatprep.subr.mxu0 0.0
        %v1418 = vand.u32 %v733, 4294901760
        %v1419 = vsub.f32 %v733, %v1418
        %1420 = vmatpush1.msra.mxu0 %v1419
        %1421 = vmatprep.subr.mxu0 0.0
        %v1422 = vand.u32 %v734, 4294901760
        %v1423 = vsub.f32 %v734, %v1422
        %1424 = vmatpush1.msra.mxu0 %v1423
        %v1425 = vand.u32 %v656, 4294901760
        %v1426 = vsub.f32 %v656, %v1425
        %1427 = vmatprep.mubr.f32.mxu0 %v1426
        %v1428 = vand.u32 %v655, 4294901760
        %v1429 = vsub.f32 %v655, %v1428
        %1430 = vmatmul.mubr.f32.gmra.mrb[0].mxu0 %v1429
        %v1431 = vpop.f32.mrb[0].mxu0
        %v1432 = vadd.f32 %v1245, %v1431
        %v1433 = vpop.f32.mrb[0].mxu0
        %v1434 = vand.u32 %v662, 4294901760
        %v1435 = vsub.f32 %v662, %v1434
        %1436 = vmatprep.mubr.f32.mxu0 %v1435
        %v1437 = vand.u32 %v661, 4294901760
        %v1438 = vsub.f32 %v661, %v1437
        %1439 = vmatmul.mubr.f32.gmra.mrb[0].mxu0 %v1438
        %v1440 = vpop.f32.mrb[0].mxu0
        %v1441 = vadd.f32 %v1252, %v1440
        %v1442 = vpop.f32.mrb[0].mxu0
        %v1443 = vand.u32 %v668, 4294901760
        %v1444 = vsub.f32 %v668, %v1443
        %1445 = vmatprep.mubr.f32.mxu0 %v1444
        %v1446 = vand.u32 %v667, 4294901760
        %v1447 = vsub.f32 %v667, %v1446
        %1448 = vmatmul.mubr.f32.gmra.mrb[0].mxu0 %v1447
        %v1449 = vpop.f32.mrb[0].mxu0
        %v1450 = vadd.f32 %v1259, %v1449
        %v1451 = vpop.f32.mrb[0].mxu0
        %v1452 = vand.u32 %v674, 4294901760
        %v1453 = vsub.f32 %v674, %v1452
        %1454 = vmatprep.mubr.f32.mxu0 %v1453
        %v1455 = vand.u32 %v673, 4294901760
        %v1456 = vsub.f32 %v673, %v1455
        %1457 = vmatmul.mubr.f32.gmra.mrb[0].mxu0 %v1456
        %v1458 = vpop.f32.mrb[0].mxu0
        %v1459 = vadd.f32 %v1266, %v1458
        %v1460 = vpop.f32.mrb[0].mxu0
        %v1461 = vand.u32 %v680, 4294901760
        %v1462 = vsub.f32 %v680, %v1461
        %1463 = vmatprep.mubr.f32.mxu0 %v1462
        %v1464 = vand.u32 %v679, 4294901760
        %v1465 = vsub.f32 %v679, %v1464
        %1466 = vmatmul.mubr.f32.gmra.mrb[0].mxu0 %v1465
        %v1467 = vpop.f32.mrb[0].mxu0
        %v1468 = vadd.f32 %v1273, %v1467
        %v1469 = vpop.f32.mrb[0].mxu0
        %v1470 = vand.u32 %v686, 4294901760
        %v1471 = vsub.f32 %v686, %v1470
        %1472 = vmatprep.mubr.f32.mxu0 %v1471
        %v1473 = vand.u32 %v685, 4294901760
        %v1474 = vsub.f32 %v685, %v1473
        %1475 = vmatmul.mubr.f32.gmra.mrb[0].mxu0 %v1474
        %v1476 = vpop.f32.mrb[0].mxu0
        %v1477 = vadd.f32 %v1280, %v1476
        %v1478 = vpop.f32.mrb[0].mxu0
        %v1479 = vand.u32 %v692, 4294901760
        %v1480 = vsub.f32 %v692, %v1479
        %1481 = vmatprep.mubr.f32.mxu0 %v1480
        %v1482 = vand.u32 %v691, 4294901760
        %v1483 = vsub.f32 %v691, %v1482
        %1484 = vmatmul.mubr.f32.gmra.mrb[0].mxu0 %v1483
        %v1485 = vpop.f32.mrb[0].mxu0
        %v1486 = vadd.f32 %v1287, %v1485
        %v1487 = vpop.f32.mrb[0].mxu0
        %v1488 = vand.u32 %v698, 4294901760
        %v1489 = vsub.f32 %v698, %v1488
        %1490 = vmatprep.mubr.f32.mxu0 %v1489
        %v1491 = vand.u32 %v697, 4294901760
        %v1492 = vsub.f32 %v697, %v1491
        %1493 = vmatmul.mubr.f32.gmra.mrb[0].mxu0 %v1492
        %v1494 = vpop.f32.mrb[0].mxu0
        %v1495 = vadd.f32 %v1294, %v1494
        %v1496 = vpop.f32.mrb[0].mxu0
        %1497 = vdwg.mxu0
        %1498 = vmatprep.subr.mxu0 0.0
        %v1499 = vand.u32 %v703, 4294901760
        %1500 = vmatpush1.msra.mxu0 %v1499
        %1501 = vmatprep.subr.mxu0 0.0
        %v1502 = vand.u32 %v704, 4294901760
        %1503 = vmatpush1.msra.mxu0 %v1502
        %1504 = vmatprep.subr.mxu0 0.0
        %v1505 = vand.u32 %v705, 4294901760
        %1506 = vmatpush1.msra.mxu0 %v1505
        %1507 = vmatprep.subr.mxu0 0.0
        %v1508 = vand.u32 %v706, 4294901760
        %1509 = vmatpush1.msra.mxu0 %v1508
        %1510 = vmatprep.subr.mxu0 0.0
        %v1511 = vand.u32 %v707, 4294901760
        %1512 = vmatpush1.msra.mxu0 %v1511
        %1513 = vmatprep.subr.mxu0 0.0
        %v1514 = vand.u32 %v708, 4294901760
        %1515 = vmatpush1.msra.mxu0 %v1514
        %1516 = vmatprep.subr.mxu0 0.0
        %v1517 = vand.u32 %v709, 4294901760
        %1518 = vmatpush1.msra.mxu0 %v1517
        %1519 = vmatprep.subr.mxu0 0.0
        %v1520 = vand.u32 %v710, 4294901760
        %1521 = vmatpush1.msra.mxu0 %v1520
        %1522 = vmatprep.subr.mxu0 0.0
        %v1523 = vand.u32 %v711, 4294901760
        %1524 = vmatpush1.msra.mxu0 %v1523
        %1525 = vmatprep.subr.mxu0 0.0
        %v1526 = vand.u32 %v712, 4294901760
        %1527 = vmatpush1.msra.mxu0 %v1526
        %1528 = vmatprep.subr.mxu0 0.0
        %v1529 = vand.u32 %v713, 4294901760
        %1530 = vmatpush1.msra.mxu0 %v1529
        %1531 = vmatprep.subr.mxu0 0.0
        %v1532 = vand.u32 %v714, 4294901760
        %1533 = vmatpush1.msra.mxu0 %v1532
        %1534 = vmatprep.subr.mxu0 0.0
        %v1535 = vand.u32 %v715, 4294901760
        %1536 = vmatpush1.msra.mxu0 %v1535
        %1537 = vmatprep.subr.mxu0 0.0
        %v1538 = vand.u32 %v716, 4294901760
        %1539 = vmatpush1.msra.mxu0 %v1538
        %1540 = vmatprep.subr.mxu0 0.0
        %v1541 = vand.u32 %v717, 4294901760
        %1542 = vmatpush1.msra.mxu0 %v1541
        %1543 = vmatprep.subr.mxu0 0.0
        %v1544 = vand.u32 %v718, 4294901760
        %1545 = vmatpush1.msra.mxu0 %v1544
        %1546 = vmatprep.subr.mxu0 0.0
        %v1547 = vand.u32 %v719, 4294901760
        %1548 = vmatpush1.msra.mxu0 %v1547
        %1549 = vmatprep.subr.mxu0 0.0
        %v1550 = vand.u32 %v720, 4294901760
        %1551 = vmatpush1.msra.mxu0 %v1550
        %1552 = vmatprep.subr.mxu0 0.0
        %v1553 = vand.u32 %v721, 4294901760
        %1554 = vmatpush1.msra.mxu0 %v1553
        %1555 = vmatprep.subr.mxu0 0.0
        %v1556 = vand.u32 %v722, 4294901760
        %1557 = vmatpush1.msra.mxu0 %v1556
        %1558 = vmatprep.subr.mxu0 0.0
        %v1559 = vand.u32 %v723, 4294901760
        %1560 = vmatpush1.msra.mxu0 %v1559
        %1561 = vmatprep.subr.mxu0 0.0
        %v1562 = vand.u32 %v724, 4294901760
        %1563 = vmatpush1.msra.mxu0 %v1562
        %1564 = vmatprep.subr.mxu0 0.0
        %v1565 = vand.u32 %v725, 4294901760
        %1566 = vmatpush1.msra.mxu0 %v1565
        %1567 = vmatprep.subr.mxu0 0.0
        %v1568 = vand.u32 %v726, 4294901760
        %1569 = vmatpush1.msra.mxu0 %v1568
        %1570 = vmatprep.subr.mxu0 0.0
        %v1571 = vand.u32 %v727, 4294901760
        %1572 = vmatpush1.msra.mxu0 %v1571
        %1573 = vmatprep.subr.mxu0 0.0
        %v1574 = vand.u32 %v728, 4294901760
        %1575 = vmatpush1.msra.mxu0 %v1574
        %1576 = vmatprep.subr.mxu0 0.0
        %v1577 = vand.u32 %v729, 4294901760
        %1578 = vmatpush1.msra.mxu0 %v1577
        %1579 = vmatprep.subr.mxu0 0.0
        %v1580 = vand.u32 %v730, 4294901760
        %1581 = vmatpush1.msra.mxu0 %v1580
        %1582 = vmatprep.subr.mxu0 0.0
        %v1583 = vand.u32 %v731, 4294901760
        %1584 = vmatpush1.msra.mxu0 %v1583
        %1585 = vmatprep.subr.mxu0 0.0
        %v1586 = vand.u32 %v732, 4294901760
        %1587 = vmatpush1.msra.mxu0 %v1586
        %1588 = vmatprep.subr.mxu0 0.0
        %v1589 = vand.u32 %v733, 4294901760
        %1590 = vmatpush1.msra.mxu0 %v1589
        %1591 = vmatprep.subr.mxu0 0.0
        %v1592 = vand.u32 %v734, 4294901760
        %1593 = vmatpush1.msra.mxu0 %v1592
        %v1594 = vand.u32 %v656, 4294901760
        %v1595 = vsub.f32 %v656, %v1594
        %v1596 = vand.u32 %v1595, 4294901760
        %1597 = vmatprep.mubr.f32.mxu0 %v1596
        %v1598 = vand.u32 %v655, 4294901760
        %v1599 = vsub.f32 %v655, %v1598
        %v1600 = vand.u32 %v1599, 4294901760
        %1601 = vmatmul.mubr.f32.gmra.mrb[0].mxu0 %v1600
        %v1602 = vpop.f32.mrb[0].mxu0
        %v1603 = vadd.f32 %v1432, %v1602
        %v1604 = vpop.f32.mrb[0].mxu0
        %v1605 = vand.u32 %v662, 4294901760
        %v1606 = vsub.f32 %v662, %v1605
        %v1607 = vand.u32 %v1606, 4294901760
        %1608 = vmatprep.mubr.f32.mxu0 %v1607
        %v1609 = vand.u32 %v661, 4294901760
        %v1610 = vsub.f32 %v661, %v1609
        %v1611 = vand.u32 %v1610, 4294901760
        %1612 = vmatmul.mubr.f32.gmra.mrb[0].mxu0 %v1611
        %v1613 = vpop.f32.mrb[0].mxu0
        %v1614 = vadd.f32 %v1441, %v1613
        %v1615 = vpop.f32.mrb[0].mxu0
        %v1616 = vand.u32 %v668, 4294901760
        %v1617 = vsub.f32 %v668, %v1616
        %v1618 = vand.u32 %v1617, 4294901760
        %1619 = vmatprep.mubr.f32.mxu0 %v1618
        %v1620 = vand.u32 %v667, 4294901760
        %v1621 = vsub.f32 %v667, %v1620
        %v1622 = vand.u32 %v1621, 4294901760
        %1623 = vmatmul.mubr.f32.gmra.mrb[0].mxu0 %v1622
        %v1624 = vpop.f32.mrb[0].mxu0
        %v1625 = vadd.f32 %v1450, %v1624
        %v1626 = vpop.f32.mrb[0].mxu0
        %v1627 = vand.u32 %v674, 4294901760
        %v1628 = vsub.f32 %v674, %v1627
        %v1629 = vand.u32 %v1628, 4294901760
        %1630 = vmatprep.mubr.f32.mxu0 %v1629
        %v1631 = vand.u32 %v673, 4294901760
        %v1632 = vsub.f32 %v673, %v1631
        %v1633 = vand.u32 %v1632, 4294901760
        %1634 = vmatmul.mubr.f32.gmra.mrb[0].mxu0 %v1633
        %v1635 = vpop.f32.mrb[0].mxu0
        %v1636 = vadd.f32 %v1459, %v1635
        %v1637 = vpop.f32.mrb[0].mxu0
        %v1638 = vand.u32 %v680, 4294901760
        %v1639 = vsub.f32 %v680, %v1638
        %v1640 = vand.u32 %v1639, 4294901760
        %1641 = vmatprep.mubr.f32.mxu0 %v1640
        %v1642 = vand.u32 %v679, 4294901760
        %v1643 = vsub.f32 %v679, %v1642
        %v1644 = vand.u32 %v1643, 4294901760
        %1645 = vmatmul.mubr.f32.gmra.mrb[0].mxu0 %v1644
        %v1646 = vpop.f32.mrb[0].mxu0
        %v1647 = vadd.f32 %v1468, %v1646
        %v1648 = vpop.f32.mrb[0].mxu0
        %v1649 = vand.u32 %v686, 4294901760
        %v1650 = vsub.f32 %v686, %v1649
        %v1651 = vand.u32 %v1650, 4294901760
        %1652 = vmatprep.mubr.f32.mxu0 %v1651
        %v1653 = vand.u32 %v685, 4294901760
        %v1654 = vsub.f32 %v685, %v1653
        %v1655 = vand.u32 %v1654, 4294901760
        %1656 = vmatmul.mubr.f32.gmra.mrb[0].mxu0 %v1655
        %v1657 = vpop.f32.mrb[0].mxu0
        %v1658 = vadd.f32 %v1477, %v1657
        %v1659 = vpop.f32.mrb[0].mxu0
        %v1660 = vand.u32 %v692, 4294901760
        %v1661 = vsub.f32 %v692, %v1660
        %v1662 = vand.u32 %v1661, 4294901760
        %1663 = vmatprep.mubr.f32.mxu0 %v1662
        %v1664 = vand.u32 %v691, 4294901760
        %v1665 = vsub.f32 %v691, %v1664
        %v1666 = vand.u32 %v1665, 4294901760
        %1667 = vmatmul.mubr.f32.gmra.mrb[0].mxu0 %v1666
        %v1668 = vpop.f32.mrb[0].mxu0
        %v1669 = vadd.f32 %v1486, %v1668
        %v1670 = vpop.f32.mrb[0].mxu0
        %v1671 = vand.u32 %v698, 4294901760
        %v1672 = vsub.f32 %v698, %v1671
        %v1673 = vand.u32 %v1672, 4294901760
        %1674 = vmatprep.mubr.f32.mxu0 %v1673
        %v1675 = vand.u32 %v697, 4294901760
        %v1676 = vsub.f32 %v697, %v1675
        %v1677 = vand.u32 %v1676, 4294901760
        %1678 = vmatmul.mubr.f32.gmra.mrb[0].mxu0 %v1677
        %v1679 = vpop.f32.mrb[0].mxu0
        %v1680 = vadd.f32 %v1495, %v1679
        %v1681 = vpop.f32.mrb[0].mxu0
        %1682 = vdwg.mxu0
        %1683 = vmatprep.subr.mxu0 0.0
        %v1684 = vand.u32 %v703, 4294901760
        %v1685 = vsub.f32 %v703, %v1684
        %v1686 = vand.u32 %v1685, 4294901760
        %1687 = vmatpush1.msra.mxu0 %v1686
        %1688 = vmatprep.subr.mxu0 0.0
        %v1689 = vand.u32 %v704, 4294901760
        %v1690 = vsub.f32 %v704, %v1689
        %v1691 = vand.u32 %v1690, 4294901760
        %1692 = vmatpush1.msra.mxu0 %v1691
        %1693 = vmatprep.subr.mxu0 0.0
        %v1694 = vand.u32 %v705, 4294901760
        %v1695 = vsub.f32 %v705, %v1694
        %v1696 = vand.u32 %v1695, 4294901760
        %1697 = vmatpush1.msra.mxu0 %v1696
        %1698 = vmatprep.subr.mxu0 0.0
        %v1699 = vand.u32 %v706, 4294901760
        %v1700 = vsub.f32 %v706, %v1699
        %v1701 = vand.u32 %v1700, 4294901760
        %1702 = vmatpush1.msra.mxu0 %v1701
        %1703 = vmatprep.subr.mxu0 0.0
        %v1704 = vand.u32 %v707, 4294901760
        %v1705 = vsub.f32 %v707, %v1704
        %v1706 = vand.u32 %v1705, 4294901760
        %1707 = vmatpush1.msra.mxu0 %v1706
        %1708 = vmatprep.subr.mxu0 0.0
        %v1709 = vand.u32 %v708, 4294901760
        %v1710 = vsub.f32 %v708, %v1709
        %v1711 = vand.u32 %v1710, 4294901760
        %1712 = vmatpush1.msra.mxu0 %v1711
        %1713 = vmatprep.subr.mxu0 0.0
        %v1714 = vand.u32 %v709, 4294901760
        %v1715 = vsub.f32 %v709, %v1714
        %v1716 = vand.u32 %v1715, 4294901760
        %1717 = vmatpush1.msra.mxu0 %v1716
        %1718 = vmatprep.subr.mxu0 0.0
        %v1719 = vand.u32 %v710, 4294901760
        %v1720 = vsub.f32 %v710, %v1719
        %v1721 = vand.u32 %v1720, 4294901760
        %1722 = vmatpush1.msra.mxu0 %v1721
        %1723 = vmatprep.subr.mxu0 0.0
        %v1724 = vand.u32 %v711, 4294901760
        %v1725 = vsub.f32 %v711, %v1724
        %v1726 = vand.u32 %v1725, 4294901760
        %1727 = vmatpush1.msra.mxu0 %v1726
        %1728 = vmatprep.subr.mxu0 0.0
        %v1729 = vand.u32 %v712, 4294901760
        %v1730 = vsub.f32 %v712, %v1729
        %v1731 = vand.u32 %v1730, 4294901760
        %1732 = vmatpush1.msra.mxu0 %v1731
        %1733 = vmatprep.subr.mxu0 0.0
        %v1734 = vand.u32 %v713, 4294901760
        %v1735 = vsub.f32 %v713, %v1734
        %v1736 = vand.u32 %v1735, 4294901760
        %1737 = vmatpush1.msra.mxu0 %v1736
        %1738 = vmatprep.subr.mxu0 0.0
        %v1739 = vand.u32 %v714, 4294901760
        %v1740 = vsub.f32 %v714, %v1739
        %v1741 = vand.u32 %v1740, 4294901760
        %1742 = vmatpush1.msra.mxu0 %v1741
        %1743 = vmatprep.subr.mxu0 0.0
        %v1744 = vand.u32 %v715, 4294901760
        %v1745 = vsub.f32 %v715, %v1744
        %v1746 = vand.u32 %v1745, 4294901760
        %1747 = vmatpush1.msra.mxu0 %v1746
        %1748 = vmatprep.subr.mxu0 0.0
        %v1749 = vand.u32 %v716, 4294901760
        %v1750 = vsub.f32 %v716, %v1749
        %v1751 = vand.u32 %v1750, 4294901760
        %1752 = vmatpush1.msra.mxu0 %v1751
        %1753 = vmatprep.subr.mxu0 0.0
        %v1754 = vand.u32 %v717, 4294901760
        %v1755 = vsub.f32 %v717, %v1754
        %v1756 = vand.u32 %v1755, 4294901760
        %1757 = vmatpush1.msra.mxu0 %v1756
        %1758 = vmatprep.subr.mxu0 0.0
        %v1759 = vand.u32 %v718, 4294901760
        %v1760 = vsub.f32 %v718, %v1759
        %v1761 = vand.u32 %v1760, 4294901760
        %1762 = vmatpush1.msra.mxu0 %v1761
        %1763 = vmatprep.subr.mxu0 0.0
        %v1764 = vand.u32 %v719, 4294901760
        %v1765 = vsub.f32 %v719, %v1764
        %v1766 = vand.u32 %v1765, 4294901760
        %1767 = vmatpush1.msra.mxu0 %v1766
        %1768 = vmatprep.subr.mxu0 0.0
        %v1769 = vand.u32 %v720, 4294901760
        %v1770 = vsub.f32 %v720, %v1769
        %v1771 = vand.u32 %v1770, 4294901760
        %1772 = vmatpush1.msra.mxu0 %v1771
        %1773 = vmatprep.subr.mxu0 0.0
        %v1774 = vand.u32 %v721, 4294901760
        %v1775 = vsub.f32 %v721, %v1774
        %v1776 = vand.u32 %v1775, 4294901760
        %1777 = vmatpush1.msra.mxu0 %v1776
        %1778 = vmatprep.subr.mxu0 0.0
        %v1779 = vand.u32 %v722, 4294901760
        %v1780 = vsub.f32 %v722, %v1779
        %v1781 = vand.u32 %v1780, 4294901760
        %1782 = vmatpush1.msra.mxu0 %v1781
        %1783 = vmatprep.subr.mxu0 0.0
        %v1784 = vand.u32 %v723, 4294901760
        %v1785 = vsub.f32 %v723, %v1784
        %v1786 = vand.u32 %v1785, 4294901760
        %1787 = vmatpush1.msra.mxu0 %v1786
        %1788 = vmatprep.subr.mxu0 0.0
        %v1789 = vand.u32 %v724, 4294901760
        %v1790 = vsub.f32 %v724, %v1789
        %v1791 = vand.u32 %v1790, 4294901760
        %1792 = vmatpush1.msra.mxu0 %v1791
        %1793 = vmatprep.subr.mxu0 0.0
        %v1794 = vand.u32 %v725, 4294901760
        %v1795 = vsub.f32 %v725, %v1794
        %v1796 = vand.u32 %v1795, 4294901760
        %1797 = vmatpush1.msra.mxu0 %v1796
        %1798 = vmatprep.subr.mxu0 0.0
        %v1799 = vand.u32 %v726, 4294901760
        %v1800 = vsub.f32 %v726, %v1799
        %v1801 = vand.u32 %v1800, 4294901760
        %1802 = vmatpush1.msra.mxu0 %v1801
        %1803 = vmatprep.subr.mxu0 0.0
        %v1804 = vand.u32 %v727, 4294901760
        %v1805 = vsub.f32 %v727, %v1804
        %v1806 = vand.u32 %v1805, 4294901760
        %1807 = vmatpush1.msra.mxu0 %v1806
        %1808 = vmatprep.subr.mxu0 0.0
        %v1809 = vand.u32 %v728, 4294901760
        %v1810 = vsub.f32 %v728, %v1809
        %v1811 = vand.u32 %v1810, 4294901760
        %1812 = vmatpush1.msra.mxu0 %v1811
        %1813 = vmatprep.subr.mxu0 0.0
        %v1814 = vand.u32 %v729, 4294901760
        %v1815 = vsub.f32 %v729, %v1814
        %v1816 = vand.u32 %v1815, 4294901760
        %1817 = vmatpush1.msra.mxu0 %v1816
        %1818 = vmatprep.subr.mxu0 0.0
        %v1819 = vand.u32 %v730, 4294901760
        %v1820 = vsub.f32 %v730, %v1819
        %v1821 = vand.u32 %v1820, 4294901760
        %1822 = vmatpush1.msra.mxu0 %v1821
        %1823 = vmatprep.subr.mxu0 0.0
        %v1824 = vand.u32 %v731, 4294901760
        %v1825 = vsub.f32 %v731, %v1824
        %v1826 = vand.u32 %v1825, 4294901760
        %1827 = vmatpush1.msra.mxu0 %v1826
        %1828 = vmatprep.subr.mxu0 0.0
        %v1829 = vand.u32 %v732, 4294901760
        %v1830 = vsub.f32 %v732, %v1829
        %v1831 = vand.u32 %v1830, 4294901760
        %1832 = vmatpush1.msra.mxu0 %v1831
        %1833 = vmatprep.subr.mxu0 0.0
        %v1834 = vand.u32 %v733, 4294901760
        %v1835 = vsub.f32 %v733, %v1834
        %v1836 = vand.u32 %v1835, 4294901760
        %1837 = vmatpush1.msra.mxu0 %v1836
        %1838 = vmatprep.subr.mxu0 0.0
        %v1839 = vand.u32 %v734, 4294901760
        %v1840 = vsub.f32 %v734, %v1839
        %v1841 = vand.u32 %v1840, 4294901760
        %1842 = vmatpush1.msra.mxu0 %v1841
        %v1843 = vand.u32 %v656, 4294901760
        %1844 = vmatprep.mubr.f32.mxu0 %v1843
        %v1845 = vand.u32 %v655, 4294901760
        %1846 = vmatmul.mubr.f32.gmra.mrb[0].mxu0 %v1845
        %v1847 = vpop.f32.mrb[0].mxu0
        %v1848 = vadd.f32 %v1603, %v1847
        %v1849 = vpop.f32.mrb[0].mxu0
        %v1850 = vand.u32 %v662, 4294901760
        %1851 = vmatprep.mubr.f32.mxu0 %v1850
        %v1852 = vand.u32 %v661, 4294901760
        %1853 = vmatmul.mubr.f32.gmra.mrb[0].mxu0 %v1852
        %v1854 = vpop.f32.mrb[0].mxu0
        %v1855 = vadd.f32 %v1614, %v1854
        %v1856 = vpop.f32.mrb[0].mxu0
        %v1857 = vand.u32 %v668, 4294901760
        %1858 = vmatprep.mubr.f32.mxu0 %v1857
        %v1859 = vand.u32 %v667, 4294901760
        %1860 = vmatmul.mubr.f32.gmra.mrb[0].mxu0 %v1859
        %v1861 = vpop.f32.mrb[0].mxu0
        %v1862 = vadd.f32 %v1625, %v1861
        %v1863 = vpop.f32.mrb[0].mxu0
        %v1864 = vand.u32 %v674, 4294901760
        %1865 = vmatprep.mubr.f32.mxu0 %v1864
        %v1866 = vand.u32 %v673, 4294901760
        %1867 = vmatmul.mubr.f32.gmra.mrb[0].mxu0 %v1866
        %v1868 = vpop.f32.mrb[0].mxu0
        %v1869 = vadd.f32 %v1636, %v1868
        %v1870 = vpop.f32.mrb[0].mxu0
        %v1871 = vand.u32 %v680, 4294901760
        %1872 = vmatprep.mubr.f32.mxu0 %v1871
        %v1873 = vand.u32 %v679, 4294901760
        %1874 = vmatmul.mubr.f32.gmra.mrb[0].mxu0 %v1873
        %v1875 = vpop.f32.mrb[0].mxu0
        %v1876 = vadd.f32 %v1647, %v1875
        %v1877 = vpop.f32.mrb[0].mxu0
        %v1878 = vand.u32 %v686, 4294901760
        %1879 = vmatprep.mubr.f32.mxu0 %v1878
        %v1880 = vand.u32 %v685, 4294901760
        %1881 = vmatmul.mubr.f32.gmra.mrb[0].mxu0 %v1880
        %v1882 = vpop.f32.mrb[0].mxu0
        %v1883 = vadd.f32 %v1658, %v1882
        %v1884 = vpop.f32.mrb[0].mxu0
        %v1885 = vand.u32 %v692, 4294901760
        %1886 = vmatprep.mubr.f32.mxu0 %v1885
        %v1887 = vand.u32 %v691, 4294901760
        %1888 = vmatmul.mubr.f32.gmra.mrb[0].mxu0 %v1887
        %v1889 = vpop.f32.mrb[0].mxu0
        %v1890 = vadd.f32 %v1669, %v1889
        %v1891 = vpop.f32.mrb[0].mxu0
        %v1892 = vand.u32 %v698, 4294901760
        %1893 = vmatprep.mubr.f32.mxu0 %v1892
        %v1894 = vand.u32 %v697, 4294901760
        %1895 = vmatmul.mubr.f32.gmra.mrb[0].mxu0 %v1894
        %v1896 = vpop.f32.mrb[0].mxu0
        %v1897 = vadd.f32 %v1680, %v1896
        %v1898 = vpop.f32.mrb[0].mxu0
        %1899 = vdwg.mxu0
        %1900 = vmatprep.subr.mxu0 0.0
        %v1901 = vand.u32 %v703, 4294901760
        %1902 = vmatpush1.msra.mxu0 %v1901
        %1903 = vmatprep.subr.mxu0 0.0
        %v1904 = vand.u32 %v704, 4294901760
        %1905 = vmatpush1.msra.mxu0 %v1904
        %1906 = vmatprep.subr.mxu0 0.0
        %v1907 = vand.u32 %v705, 4294901760
        %1908 = vmatpush1.msra.mxu0 %v1907
        %1909 = vmatprep.subr.mxu0 0.0
        %v1910 = vand.u32 %v706, 4294901760
        %1911 = vmatpush1.msra.mxu0 %v1910
        %1912 = vmatprep.subr.mxu0 0.0
        %v1913 = vand.u32 %v707, 4294901760
        %1914 = vmatpush1.msra.mxu0 %v1913
        %1915 = vmatprep.subr.mxu0 0.0
        %v1916 = vand.u32 %v708, 4294901760
        %1917 = vmatpush1.msra.mxu0 %v1916
        %1918 = vmatprep.subr.mxu0 0.0
        %v1919 = vand.u32 %v709, 4294901760
        %1920 = vmatpush1.msra.mxu0 %v1919
        %1921 = vmatprep.subr.mxu0 0.0
        %v1922 = vand.u32 %v710, 4294901760
        %1923 = vmatpush1.msra.mxu0 %v1922
        %1924 = vmatprep.subr.mxu0 0.0
        %v1925 = vand.u32 %v711, 4294901760
        %1926 = vmatpush1.msra.mxu0 %v1925
        %1927 = vmatprep.subr.mxu0 0.0
        %v1928 = vand.u32 %v712, 4294901760
        %1929 = vmatpush1.msra.mxu0 %v1928
        %1930 = vmatprep.subr.mxu0 0.0
        %v1931 = vand.u32 %v713, 4294901760
        %1932 = vmatpush1.msra.mxu0 %v1931
        %1933 = vmatprep.subr.mxu0 0.0
        %v1934 = vand.u32 %v714, 4294901760
        %1935 = vmatpush1.msra.mxu0 %v1934
        %1936 = vmatprep.subr.mxu0 0.0
        %v1937 = vand.u32 %v715, 4294901760
        %1938 = vmatpush1.msra.mxu0 %v1937
        %1939 = vmatprep.subr.mxu0 0.0
        %v1940 = vand.u32 %v716, 4294901760
        %1941 = vmatpush1.msra.mxu0 %v1940
        %1942 = vmatprep.subr.mxu0 0.0
        %v1943 = vand.u32 %v717, 4294901760
        %1944 = vmatpush1.msra.mxu0 %v1943
        %1945 = vmatprep.subr.mxu0 0.0
        %v1946 = vand.u32 %v718, 4294901760
        %1947 = vmatpush1.msra.mxu0 %v1946
        %1948 = vmatprep.subr.mxu0 0.0
        %v1949 = vand.u32 %v719, 4294901760
        %1950 = vmatpush1.msra.mxu0 %v1949
        %1951 = vmatprep.subr.mxu0 0.0
        %v1952 = vand.u32 %v720, 4294901760
        %1953 = vmatpush1.msra.mxu0 %v1952
        %1954 = vmatprep.subr.mxu0 0.0
        %v1955 = vand.u32 %v721, 4294901760
        %1956 = vmatpush1.msra.mxu0 %v1955
        %1957 = vmatprep.subr.mxu0 0.0
        %v1958 = vand.u32 %v722, 4294901760
        %1959 = vmatpush1.msra.mxu0 %v1958
        %1960 = vmatprep.subr.mxu0 0.0
        %v1961 = vand.u32 %v723, 4294901760
        %1962 = vmatpush1.msra.mxu0 %v1961
        %1963 = vmatprep.subr.mxu0 0.0
        %v1964 = vand.u32 %v724, 4294901760
        %1965 = vmatpush1.msra.mxu0 %v1964
        %1966 = vmatprep.subr.mxu0 0.0
        %v1967 = vand.u32 %v725, 4294901760
        %1968 = vmatpush1.msra.mxu0 %v1967
        %1969 = vmatprep.subr.mxu0 0.0
        %v1970 = vand.u32 %v726, 4294901760
        %1971 = vmatpush1.msra.mxu0 %v1970
        %1972 = vmatprep.subr.mxu0 0.0
        %v1973 = vand.u32 %v727, 4294901760
        %1974 = vmatpush1.msra.mxu0 %v1973
        %1975 = vmatprep.subr.mxu0 0.0
        %v1976 = vand.u32 %v728, 4294901760
        %1977 = vmatpush1.msra.mxu0 %v1976
        %1978 = vmatprep.subr.mxu0 0.0
        %v1979 = vand.u32 %v729, 4294901760
        %1980 = vmatpush1.msra.mxu0 %v1979
        %1981 = vmatprep.subr.mxu0 0.0
        %v1982 = vand.u32 %v730, 4294901760
        %1983 = vmatpush1.msra.mxu0 %v1982
        %1984 = vmatprep.subr.mxu0 0.0
        %v1985 = vand.u32 %v731, 4294901760
        %1986 = vmatpush1.msra.mxu0 %v1985
        %1987 = vmatprep.subr.mxu0 0.0
        %v1988 = vand.u32 %v732, 4294901760
        %1989 = vmatpush1.msra.mxu0 %v1988
        %1990 = vmatprep.subr.mxu0 0.0
        %v1991 = vand.u32 %v733, 4294901760
        %1992 = vmatpush1.msra.mxu0 %v1991
        %1993 = vmatprep.subr.mxu0 0.0
        %v1994 = vand.u32 %v734, 4294901760
        %1995 = vmatpush1.msra.mxu0 %v1994
        %v1996 = vand.u32 %v656, 4294901760
        %1997 = vmatprep.mubr.f32.mxu0 %v1996
        %v1998 = vand.u32 %v655, 4294901760
        %1999 = vmatmul.mubr.f32.gmra.mrb[0].mxu0 %v1998
        %v2000 = vpop.f32.mrb[0].mxu0
        %v2001 = vadd.f32 %v1848, %v2000
        %v2002 = vpop.f32.mrb[0].mxu0
        %v2003 = vand.u32 %v662, 4294901760
        %2004 = vmatprep.mubr.f32.mxu0 %v2003
        %v2005 = vand.u32 %v661, 4294901760
        %2006 = vmatmul.mubr.f32.gmra.mrb[0].mxu0 %v2005
        %v2007 = vpop.f32.mrb[0].mxu0
        %v2008 = vadd.f32 %v1855, %v2007
        %v2009 = vpop.f32.mrb[0].mxu0
        %v2010 = vand.u32 %v668, 4294901760
        %2011 = vmatprep.mubr.f32.mxu0 %v2010
        %v2012 = vand.u32 %v667, 4294901760
        %2013 = vmatmul.mubr.f32.gmra.mrb[0].mxu0 %v2012
        %v2014 = vpop.f32.mrb[0].mxu0
        %v2015 = vadd.f32 %v1862, %v2014
        %v2016 = vpop.f32.mrb[0].mxu0
        %v2017 = vand.u32 %v674, 4294901760
        %2018 = vmatprep.mubr.f32.mxu0 %v2017
        %v2019 = vand.u32 %v673, 4294901760
        %2020 = vmatmul.mubr.f32.gmra.mrb[0].mxu0 %v2019
        %v2021 = vpop.f32.mrb[0].mxu0
        %v2022 = vadd.f32 %v1869, %v2021
        %v2023 = vpop.f32.mrb[0].mxu0
        %v2024 = vand.u32 %v680, 4294901760
        %2025 = vmatprep.mubr.f32.mxu0 %v2024
        %v2026 = vand.u32 %v679, 4294901760
        %2027 = vmatmul.mubr.f32.gmra.mrb[0].mxu0 %v2026
        %v2028 = vpop.f32.mrb[0].mxu0
        %v2029 = vadd.f32 %v1876, %v2028
        %v2030 = vpop.f32.mrb[0].mxu0
        %v2031 = vand.u32 %v686, 4294901760
        %2032 = vmatprep.mubr.f32.mxu0 %v2031
        %v2033 = vand.u32 %v685, 4294901760
        %2034 = vmatmul.mubr.f32.gmra.mrb[0].mxu0 %v2033
        %v2035 = vpop.f32.mrb[0].mxu0
        %v2036 = vadd.f32 %v1883, %v2035
        %v2037 = vpop.f32.mrb[0].mxu0
        %v2038 = vand.u32 %v692, 4294901760
        %2039 = vmatprep.mubr.f32.mxu0 %v2038
        %v2040 = vand.u32 %v691, 4294901760
        %2041 = vmatmul.mubr.f32.gmra.mrb[0].mxu0 %v2040
        %v2042 = vpop.f32.mrb[0].mxu0
        %v2043 = vadd.f32 %v1890, %v2042
        %v2044 = vpop.f32.mrb[0].mxu0
        %v2045 = vand.u32 %v698, 4294901760
        %2046 = vmatprep.mubr.f32.mxu0 %v2045
        %v2047 = vand.u32 %v697, 4294901760
        %2048 = vmatmul.mubr.f32.gmra.mrb[0].mxu0 %v2047
        %v2049 = vpop.f32.mrb[0].mxu0
        %v2050 = vadd.f32 %v1897, %v2049
        %v2051 = vpop.f32.mrb[0].mxu0
        %2052 = vdwg.mxu0
        %2053 = vmatprep.subr.mxu0 0.0
        %v2054 = vand.u32 %v735, 4294901760
        %2055 = vmatpush1.msra.mxu0 %v2054
        %2056 = vmatprep.subr.mxu0 0.0
        %v2057 = vand.u32 %v736, 4294901760
        %2058 = vmatpush1.msra.mxu0 %v2057
        %2059 = vmatprep.subr.mxu0 0.0
        %v2060 = vand.u32 %v737, 4294901760
        %2061 = vmatpush1.msra.mxu0 %v2060
        %2062 = vmatprep.subr.mxu0 0.0
        %v2063 = vand.u32 %v738, 4294901760
        %2064 = vmatpush1.msra.mxu0 %v2063
        %2065 = vmatprep.subr.mxu0 0.0
        %v2066 = vand.u32 %v739, 4294901760
        %2067 = vmatpush1.msra.mxu0 %v2066
        %2068 = vmatprep.subr.mxu0 0.0
        %v2069 = vand.u32 %v740, 4294901760
        %2070 = vmatpush1.msra.mxu0 %v2069
        %2071 = vmatprep.subr.mxu0 0.0
        %v2072 = vand.u32 %v741, 4294901760
        %2073 = vmatpush1.msra.mxu0 %v2072
        %2074 = vmatprep.subr.mxu0 0.0
        %v2075 = vand.u32 %v742, 4294901760
        %2076 = vmatpush1.msra.mxu0 %v2075
        %2077 = vmatprep.subr.mxu0 0.0
        %v2078 = vand.u32 %v743, 4294901760
        %2079 = vmatpush1.msra.mxu0 %v2078
        %2080 = vmatprep.subr.mxu0 0.0
        %v2081 = vand.u32 %v744, 4294901760
        %2082 = vmatpush1.msra.mxu0 %v2081
        %2083 = vmatprep.subr.mxu0 0.0
        %v2084 = vand.u32 %v745, 4294901760
        %2085 = vmatpush1.msra.mxu0 %v2084
        %2086 = vmatprep.subr.mxu0 0.0
        %v2087 = vand.u32 %v746, 4294901760
        %2088 = vmatpush1.msra.mxu0 %v2087
        %2089 = vmatprep.subr.mxu0 0.0
        %v2090 = vand.u32 %v747, 4294901760
        %2091 = vmatpush1.msra.mxu0 %v2090
        %2092 = vmatprep.subr.mxu0 0.0
        %v2093 = vand.u32 %v748, 4294901760
        %2094 = vmatpush1.msra.mxu0 %v2093
        %2095 = vmatprep.subr.mxu0 0.0
        %v2096 = vand.u32 %v749, 4294901760
        %2097 = vmatpush1.msra.mxu0 %v2096
        %2098 = vmatprep.subr.mxu0 0.0
        %v2099 = vand.u32 %v750, 4294901760
        %2100 = vmatpush1.msra.mxu0 %v2099
        %2101 = vmatprep.subr.mxu0 0.0
        %v2102 = vand.u32 %v751, 4294901760
        %2103 = vmatpush1.msra.mxu0 %v2102
        %2104 = vmatprep.subr.mxu0 0.0
        %v2105 = vand.u32 %v752, 4294901760
        %2106 = vmatpush1.msra.mxu0 %v2105
        %2107 = vmatprep.subr.mxu0 0.0
        %v2108 = vand.u32 %v753, 4294901760
        %2109 = vmatpush1.msra.mxu0 %v2108
        %2110 = vmatprep.subr.mxu0 0.0
        %v2111 = vand.u32 %v754, 4294901760
        %2112 = vmatpush1.msra.mxu0 %v2111
        %2113 = vmatprep.subr.mxu0 0.0
        %v2114 = vand.u32 %v755, 4294901760
        %2115 = vmatpush1.msra.mxu0 %v2114
        %2116 = vmatprep.subr.mxu0 0.0
        %v2117 = vand.u32 %v756, 4294901760
        %2118 = vmatpush1.msra.mxu0 %v2117
        %2119 = vmatprep.subr.mxu0 0.0
        %v2120 = vand.u32 %v757, 4294901760
        %2121 = vmatpush1.msra.mxu0 %v2120
        %2122 = vmatprep.subr.mxu0 0.0
        %v2123 = vand.u32 %v758, 4294901760
        %2124 = vmatpush1.msra.mxu0 %v2123
        %2125 = vmatprep.subr.mxu0 0.0
        %v2126 = vand.u32 %v759, 4294901760
        %2127 = vmatpush1.msra.mxu0 %v2126
        %2128 = vmatprep.subr.mxu0 0.0
        %v2129 = vand.u32 %v760, 4294901760
        %2130 = vmatpush1.msra.mxu0 %v2129
        %2131 = vmatprep.subr.mxu0 0.0
        %v2132 = vand.u32 %v761, 4294901760
        %2133 = vmatpush1.msra.mxu0 %v2132
        %2134 = vmatprep.subr.mxu0 0.0
        %v2135 = vand.u32 %v762, 4294901760
        %2136 = vmatpush1.msra.mxu0 %v2135
        %2137 = vmatprep.subr.mxu0 0.0
        %v2138 = vand.u32 %v763, 4294901760
        %2139 = vmatpush1.msra.mxu0 %v2138
        %2140 = vmatprep.subr.mxu0 0.0
        %v2141 = vand.u32 %v764, 4294901760
        %2142 = vmatpush1.msra.mxu0 %v2141
        %2143 = vmatprep.subr.mxu0 0.0
        %v2144 = vand.u32 %v765, 4294901760
        %2145 = vmatpush1.msra.mxu0 %v2144
        %2146 = vmatprep.subr.mxu0 0.0
        %v2147 = vand.u32 %v766, 4294901760
        %2148 = vmatpush1.msra.mxu0 %v2147
        %v2149 = vand.u32 %v658, 4294901760
        %v2150 = vsub.f32 %v658, %v2149
        %v2151 = vand.u32 %v2150, 4294901760
        %v2152 = vsub.f32 %v2150, %v2151
        %v2153 = vand.u32 %v2152, 4294901760
        %2154 = vmatprep.mubr.f32.mxu0 %v2153
        %v2155 = vand.u32 %v657, 4294901760
        %v2156 = vsub.f32 %v657, %v2155
        %v2157 = vand.u32 %v2156, 4294901760
        %v2158 = vsub.f32 %v2156, %v2157
        %v2159 = vand.u32 %v2158, 4294901760
        %2160 = vmatmul.mubr.f32.gmra.mrb[0].mxu0 %v2159
        %v2161 = vpop.f32.mrb[0].mxu0
        %v2162 = vadd.f32 %v2001, %v2161
        %v2163 = vpop.f32.mrb[0].mxu0
        %v2164 = vand.u32 %v664, 4294901760
        %v2165 = vsub.f32 %v664, %v2164
        %v2166 = vand.u32 %v2165, 4294901760
        %v2167 = vsub.f32 %v2165, %v2166
        %v2168 = vand.u32 %v2167, 4294901760
        %2169 = vmatprep.mubr.f32.mxu0 %v2168
        %v2170 = vand.u32 %v663, 4294901760
        %v2171 = vsub.f32 %v663, %v2170
        %v2172 = vand.u32 %v2171, 4294901760
        %v2173 = vsub.f32 %v2171, %v2172
        %v2174 = vand.u32 %v2173, 4294901760
        %2175 = vmatmul.mubr.f32.gmra.mrb[0].mxu0 %v2174
        %v2176 = vpop.f32.mrb[0].mxu0
        %v2177 = vadd.f32 %v2008, %v2176
        %v2178 = vpop.f32.mrb[0].mxu0
        %v2179 = vand.u32 %v670, 4294901760
        %v2180 = vsub.f32 %v670, %v2179
        %v2181 = vand.u32 %v2180, 4294901760
        %v2182 = vsub.f32 %v2180, %v2181
        %v2183 = vand.u32 %v2182, 4294901760
        %2184 = vmatprep.mubr.f32.mxu0 %v2183
        %v2185 = vand.u32 %v669, 4294901760
        %v2186 = vsub.f32 %v669, %v2185
        %v2187 = vand.u32 %v2186, 4294901760
        %v2188 = vsub.f32 %v2186, %v2187
        %v2189 = vand.u32 %v2188, 4294901760
        %2190 = vmatmul.mubr.f32.gmra.mrb[0].mxu0 %v2189
        %v2191 = vpop.f32.mrb[0].mxu0
        %v2192 = vadd.f32 %v2015, %v2191
        %v2193 = vpop.f32.mrb[0].mxu0
        %v2194 = vand.u32 %v676, 4294901760
        %v2195 = vsub.f32 %v676, %v2194
        %v2196 = vand.u32 %v2195, 4294901760
        %v2197 = vsub.f32 %v2195, %v2196
        %v2198 = vand.u32 %v2197, 4294901760
        %2199 = vmatprep.mubr.f32.mxu0 %v2198
        %v2200 = vand.u32 %v675, 4294901760
        %v2201 = vsub.f32 %v675, %v2200
        %v2202 = vand.u32 %v2201, 4294901760
        %v2203 = vsub.f32 %v2201, %v2202
        %v2204 = vand.u32 %v2203, 4294901760
        %2205 = vmatmul.mubr.f32.gmra.mrb[0].mxu0 %v2204
        %v2206 = vpop.f32.mrb[0].mxu0
        %v2207 = vadd.f32 %v2022, %v2206
        %v2208 = vpop.f32.mrb[0].mxu0
        %v2209 = vand.u32 %v682, 4294901760
        %v2210 = vsub.f32 %v682, %v2209
        %v2211 = vand.u32 %v2210, 4294901760
        %v2212 = vsub.f32 %v2210, %v2211
        %v2213 = vand.u32 %v2212, 4294901760
        %2214 = vmatprep.mubr.f32.mxu0 %v2213
        %v2215 = vand.u32 %v681, 4294901760
        %v2216 = vsub.f32 %v681, %v2215
        %v2217 = vand.u32 %v2216, 4294901760
        %v2218 = vsub.f32 %v2216, %v2217
        %v2219 = vand.u32 %v2218, 4294901760
        %2220 = vmatmul.mubr.f32.gmra.mrb[0].mxu0 %v2219
        %v2221 = vpop.f32.mrb[0].mxu0
        %v2222 = vadd.f32 %v2029, %v2221
        %v2223 = vpop.f32.mrb[0].mxu0
        %v2224 = vand.u32 %v688, 4294901760
        %v2225 = vsub.f32 %v688, %v2224
        %v2226 = vand.u32 %v2225, 4294901760
        %v2227 = vsub.f32 %v2225, %v2226
        %v2228 = vand.u32 %v2227, 4294901760
        %2229 = vmatprep.mubr.f32.mxu0 %v2228
        %v2230 = vand.u32 %v687, 4294901760
        %v2231 = vsub.f32 %v687, %v2230
        %v2232 = vand.u32 %v2231, 4294901760
        %v2233 = vsub.f32 %v2231, %v2232
        %v2234 = vand.u32 %v2233, 4294901760
        %2235 = vmatmul.mubr.f32.gmra.mrb[0].mxu0 %v2234
        %v2236 = vpop.f32.mrb[0].mxu0
        %v2237 = vadd.f32 %v2036, %v2236
        %v2238 = vpop.f32.mrb[0].mxu0
        %v2239 = vand.u32 %v694, 4294901760
        %v2240 = vsub.f32 %v694, %v2239
        %v2241 = vand.u32 %v2240, 4294901760
        %v2242 = vsub.f32 %v2240, %v2241
        %v2243 = vand.u32 %v2242, 4294901760
        %2244 = vmatprep.mubr.f32.mxu0 %v2243
        %v2245 = vand.u32 %v693, 4294901760
        %v2246 = vsub.f32 %v693, %v2245
        %v2247 = vand.u32 %v2246, 4294901760
        %v2248 = vsub.f32 %v2246, %v2247
        %v2249 = vand.u32 %v2248, 4294901760
        %2250 = vmatmul.mubr.f32.gmra.mrb[0].mxu0 %v2249
        %v2251 = vpop.f32.mrb[0].mxu0
        %v2252 = vadd.f32 %v2043, %v2251
        %v2253 = vpop.f32.mrb[0].mxu0
        %v2254 = vand.u32 %v700, 4294901760
        %v2255 = vsub.f32 %v700, %v2254
        %v2256 = vand.u32 %v2255, 4294901760
        %v2257 = vsub.f32 %v2255, %v2256
        %v2258 = vand.u32 %v2257, 4294901760
        %2259 = vmatprep.mubr.f32.mxu0 %v2258
        %v2260 = vand.u32 %v699, 4294901760
        %v2261 = vsub.f32 %v699, %v2260
        %v2262 = vand.u32 %v2261, 4294901760
        %v2263 = vsub.f32 %v2261, %v2262
        %v2264 = vand.u32 %v2263, 4294901760
        %2265 = vmatmul.mubr.f32.gmra.mrb[0].mxu0 %v2264
        %v2266 = vpop.f32.mrb[0].mxu0
        %v2267 = vadd.f32 %v2050, %v2266
        %v2268 = vpop.f32.mrb[0].mxu0
        %2269 = vdwg.mxu0
        %2270 = vmatprep.subr.mxu0 0.0
        %v2271 = vand.u32 %v735, 4294901760
        %v2272 = vsub.f32 %v735, %v2271
        %v2273 = vand.u32 %v2272, 4294901760
        %v2274 = vsub.f32 %v2272, %v2273
        %v2275 = vand.u32 %v2274, 4294901760
        %2276 = vmatpush1.msra.mxu0 %v2275
        %2277 = vmatprep.subr.mxu0 0.0
        %v2278 = vand.u32 %v736, 4294901760
        %v2279 = vsub.f32 %v736, %v2278
        %v2280 = vand.u32 %v2279, 4294901760
        %v2281 = vsub.f32 %v2279, %v2280
        %v2282 = vand.u32 %v2281, 4294901760
        %2283 = vmatpush1.msra.mxu0 %v2282
        %2284 = vmatprep.subr.mxu0 0.0
        %v2285 = vand.u32 %v737, 4294901760
        %v2286 = vsub.f32 %v737, %v2285
        %v2287 = vand.u32 %v2286, 4294901760
        %v2288 = vsub.f32 %v2286, %v2287
        %v2289 = vand.u32 %v2288, 4294901760
        %2290 = vmatpush1.msra.mxu0 %v2289
        %2291 = vmatprep.subr.mxu0 0.0
        %v2292 = vand.u32 %v738, 4294901760
        %v2293 = vsub.f32 %v738, %v2292
        %v2294 = vand.u32 %v2293, 4294901760
        %v2295 = vsub.f32 %v2293, %v2294
        %v2296 = vand.u32 %v2295, 4294901760
        %2297 = vmatpush1.msra.mxu0 %v2296
        %2298 = vmatprep.subr.mxu0 0.0
        %v2299 = vand.u32 %v739, 4294901760
        %v2300 = vsub.f32 %v739, %v2299
        %v2301 = vand.u32 %v2300, 4294901760
        %v2302 = vsub.f32 %v2300, %v2301
        %v2303 = vand.u32 %v2302, 4294901760
        %2304 = vmatpush1.msra.mxu0 %v2303
        %2305 = vmatprep.subr.mxu0 0.0
        %v2306 = vand.u32 %v740, 4294901760
        %v2307 = vsub.f32 %v740, %v2306
        %v2308 = vand.u32 %v2307, 4294901760
        %v2309 = vsub.f32 %v2307, %v2308
        %v2310 = vand.u32 %v2309, 4294901760
        %2311 = vmatpush1.msra.mxu0 %v2310
        %2312 = vmatprep.subr.mxu0 0.0
        %v2313 = vand.u32 %v741, 4294901760
        %v2314 = vsub.f32 %v741, %v2313
        %v2315 = vand.u32 %v2314, 4294901760
        %v2316 = vsub.f32 %v2314, %v2315
        %v2317 = vand.u32 %v2316, 4294901760
        %2318 = vmatpush1.msra.mxu0 %v2317
        %2319 = vmatprep.subr.mxu0 0.0
        %v2320 = vand.u32 %v742, 4294901760
        %v2321 = vsub.f32 %v742, %v2320
        %v2322 = vand.u32 %v2321, 4294901760
        %v2323 = vsub.f32 %v2321, %v2322
        %v2324 = vand.u32 %v2323, 4294901760
        %2325 = vmatpush1.msra.mxu0 %v2324
        %2326 = vmatprep.subr.mxu0 0.0
        %v2327 = vand.u32 %v743, 4294901760
        %v2328 = vsub.f32 %v743, %v2327
        %v2329 = vand.u32 %v2328, 4294901760
        %v2330 = vsub.f32 %v2328, %v2329
        %v2331 = vand.u32 %v2330, 4294901760
        %2332 = vmatpush1.msra.mxu0 %v2331
        %2333 = vmatprep.subr.mxu0 0.0
        %v2334 = vand.u32 %v744, 4294901760
        %v2335 = vsub.f32 %v744, %v2334
        %v2336 = vand.u32 %v2335, 4294901760
        %v2337 = vsub.f32 %v2335, %v2336
        %v2338 = vand.u32 %v2337, 4294901760
        %2339 = vmatpush1.msra.mxu0 %v2338
        %2340 = vmatprep.subr.mxu0 0.0
        %v2341 = vand.u32 %v745, 4294901760
        %v2342 = vsub.f32 %v745, %v2341
        %v2343 = vand.u32 %v2342, 4294901760
        %v2344 = vsub.f32 %v2342, %v2343
        %v2345 = vand.u32 %v2344, 4294901760
        %2346 = vmatpush1.msra.mxu0 %v2345
        %2347 = vmatprep.subr.mxu0 0.0
        %v2348 = vand.u32 %v746, 4294901760
        %v2349 = vsub.f32 %v746, %v2348
        %v2350 = vand.u32 %v2349, 4294901760
        %v2351 = vsub.f32 %v2349, %v2350
        %v2352 = vand.u32 %v2351, 4294901760
        %2353 = vmatpush1.msra.mxu0 %v2352
        %2354 = vmatprep.subr.mxu0 0.0
        %v2355 = vand.u32 %v747, 4294901760
        %v2356 = vsub.f32 %v747, %v2355
        %v2357 = vand.u32 %v2356, 4294901760
        %v2358 = vsub.f32 %v2356, %v2357
        %v2359 = vand.u32 %v2358, 4294901760
        %2360 = vmatpush1.msra.mxu0 %v2359
        %2361 = vmatprep.subr.mxu0 0.0
        %v2362 = vand.u32 %v748, 4294901760
        %v2363 = vsub.f32 %v748, %v2362
        %v2364 = vand.u32 %v2363, 4294901760
        %v2365 = vsub.f32 %v2363, %v2364
        %v2366 = vand.u32 %v2365, 4294901760
        %2367 = vmatpush1.msra.mxu0 %v2366
        %2368 = vmatprep.subr.mxu0 0.0
        %v2369 = vand.u32 %v749, 4294901760
        %v2370 = vsub.f32 %v749, %v2369
        %v2371 = vand.u32 %v2370, 4294901760
        %v2372 = vsub.f32 %v2370, %v2371
        %v2373 = vand.u32 %v2372, 4294901760
        %2374 = vmatpush1.msra.mxu0 %v2373
        %2375 = vmatprep.subr.mxu0 0.0
        %v2376 = vand.u32 %v750, 4294901760
        %v2377 = vsub.f32 %v750, %v2376
        %v2378 = vand.u32 %v2377, 4294901760
        %v2379 = vsub.f32 %v2377, %v2378
        %v2380 = vand.u32 %v2379, 4294901760
        %2381 = vmatpush1.msra.mxu0 %v2380
        %2382 = vmatprep.subr.mxu0 0.0
        %v2383 = vand.u32 %v751, 4294901760
        %v2384 = vsub.f32 %v751, %v2383
        %v2385 = vand.u32 %v2384, 4294901760
        %v2386 = vsub.f32 %v2384, %v2385
        %v2387 = vand.u32 %v2386, 4294901760
        %2388 = vmatpush1.msra.mxu0 %v2387
        %2389 = vmatprep.subr.mxu0 0.0
        %v2390 = vand.u32 %v752, 4294901760
        %v2391 = vsub.f32 %v752, %v2390
        %v2392 = vand.u32 %v2391, 4294901760
        %v2393 = vsub.f32 %v2391, %v2392
        %v2394 = vand.u32 %v2393, 4294901760
        %2395 = vmatpush1.msra.mxu0 %v2394
        %2396 = vmatprep.subr.mxu0 0.0
        %v2397 = vand.u32 %v753, 4294901760
        %v2398 = vsub.f32 %v753, %v2397
        %v2399 = vand.u32 %v2398, 4294901760
        %v2400 = vsub.f32 %v2398, %v2399
        %v2401 = vand.u32 %v2400, 4294901760
        %2402 = vmatpush1.msra.mxu0 %v2401
        %2403 = vmatprep.subr.mxu0 0.0
        %v2404 = vand.u32 %v754, 4294901760
        %v2405 = vsub.f32 %v754, %v2404
        %v2406 = vand.u32 %v2405, 4294901760
        %v2407 = vsub.f32 %v2405, %v2406
        %v2408 = vand.u32 %v2407, 4294901760
        %2409 = vmatpush1.msra.mxu0 %v2408
        %2410 = vmatprep.subr.mxu0 0.0
        %v2411 = vand.u32 %v755, 4294901760
        %v2412 = vsub.f32 %v755, %v2411
        %v2413 = vand.u32 %v2412, 4294901760
        %v2414 = vsub.f32 %v2412, %v2413
        %v2415 = vand.u32 %v2414, 4294901760
        %2416 = vmatpush1.msra.mxu0 %v2415
        %2417 = vmatprep.subr.mxu0 0.0
        %v2418 = vand.u32 %v756, 4294901760
        %v2419 = vsub.f32 %v756, %v2418
        %v2420 = vand.u32 %v2419, 4294901760
        %v2421 = vsub.f32 %v2419, %v2420
        %v2422 = vand.u32 %v2421, 4294901760
        %2423 = vmatpush1.msra.mxu0 %v2422
        %2424 = vmatprep.subr.mxu0 0.0
        %v2425 = vand.u32 %v757, 4294901760
        %v2426 = vsub.f32 %v757, %v2425
        %v2427 = vand.u32 %v2426, 4294901760
        %v2428 = vsub.f32 %v2426, %v2427
        %v2429 = vand.u32 %v2428, 4294901760
        %2430 = vmatpush1.msra.mxu0 %v2429
        %2431 = vmatprep.subr.mxu0 0.0
        %v2432 = vand.u32 %v758, 4294901760
        %v2433 = vsub.f32 %v758, %v2432
        %v2434 = vand.u32 %v2433, 4294901760
        %v2435 = vsub.f32 %v2433, %v2434
        %v2436 = vand.u32 %v2435, 4294901760
        %2437 = vmatpush1.msra.mxu0 %v2436
        %2438 = vmatprep.subr.mxu0 0.0
        %v2439 = vand.u32 %v759, 4294901760
        %v2440 = vsub.f32 %v759, %v2439
        %v2441 = vand.u32 %v2440, 4294901760
        %v2442 = vsub.f32 %v2440, %v2441
        %v2443 = vand.u32 %v2442, 4294901760
        %2444 = vmatpush1.msra.mxu0 %v2443
        %2445 = vmatprep.subr.mxu0 0.0
        %v2446 = vand.u32 %v760, 4294901760
        %v2447 = vsub.f32 %v760, %v2446
        %v2448 = vand.u32 %v2447, 4294901760
        %v2449 = vsub.f32 %v2447, %v2448
        %v2450 = vand.u32 %v2449, 4294901760
        %2451 = vmatpush1.msra.mxu0 %v2450
        %2452 = vmatprep.subr.mxu0 0.0
        %v2453 = vand.u32 %v761, 4294901760
        %v2454 = vsub.f32 %v761, %v2453
        %v2455 = vand.u32 %v2454, 4294901760
        %v2456 = vsub.f32 %v2454, %v2455
        %v2457 = vand.u32 %v2456, 4294901760
        %2458 = vmatpush1.msra.mxu0 %v2457
        %2459 = vmatprep.subr.mxu0 0.0
        %v2460 = vand.u32 %v762, 4294901760
        %v2461 = vsub.f32 %v762, %v2460
        %v2462 = vand.u32 %v2461, 4294901760
        %v2463 = vsub.f32 %v2461, %v2462
        %v2464 = vand.u32 %v2463, 4294901760
        %2465 = vmatpush1.msra.mxu0 %v2464
        %2466 = vmatprep.subr.mxu0 0.0
        %v2467 = vand.u32 %v763, 4294901760
        %v2468 = vsub.f32 %v763, %v2467
        %v2469 = vand.u32 %v2468, 4294901760
        %v2470 = vsub.f32 %v2468, %v2469
        %v2471 = vand.u32 %v2470, 4294901760
        %2472 = vmatpush1.msra.mxu0 %v2471
        %2473 = vmatprep.subr.mxu0 0.0
        %v2474 = vand.u32 %v764, 4294901760
        %v2475 = vsub.f32 %v764, %v2474
        %v2476 = vand.u32 %v2475, 4294901760
        %v2477 = vsub.f32 %v2475, %v2476
        %v2478 = vand.u32 %v2477, 4294901760
        %2479 = vmatpush1.msra.mxu0 %v2478
        %2480 = vmatprep.subr.mxu0 0.0
        %v2481 = vand.u32 %v765, 4294901760
        %v2482 = vsub.f32 %v765, %v2481
        %v2483 = vand.u32 %v2482, 4294901760
        %v2484 = vsub.f32 %v2482, %v2483
        %v2485 = vand.u32 %v2484, 4294901760
        %2486 = vmatpush1.msra.mxu0 %v2485
        %2487 = vmatprep.subr.mxu0 0.0
        %v2488 = vand.u32 %v766, 4294901760
        %v2489 = vsub.f32 %v766, %v2488
        %v2490 = vand.u32 %v2489, 4294901760
        %v2491 = vsub.f32 %v2489, %v2490
        %v2492 = vand.u32 %v2491, 4294901760
        %2493 = vmatpush1.msra.mxu0 %v2492
        %v2494 = vand.u32 %v658, 4294901760
        %2495 = vmatprep.mubr.f32.mxu0 %v2494
        %v2496 = vand.u32 %v657, 4294901760
        %2497 = vmatmul.mubr.f32.gmra.mrb[0].mxu0 %v2496
        %v2498 = vpop.f32.mrb[0].mxu0
        %v2499 = vadd.f32 %v2162, %v2498
        %v2500 = vpop.f32.mrb[0].mxu0
        %v2501 = vand.u32 %v664, 4294901760
        %2502 = vmatprep.mubr.f32.mxu0 %v2501
        %v2503 = vand.u32 %v663, 4294901760
        %2504 = vmatmul.mubr.f32.gmra.mrb[0].mxu0 %v2503
        %v2505 = vpop.f32.mrb[0].mxu0
        %v2506 = vadd.f32 %v2177, %v2505
        %v2507 = vpop.f32.mrb[0].mxu0
        %v2508 = vand.u32 %v670, 4294901760
        %2509 = vmatprep.mubr.f32.mxu0 %v2508
        %v2510 = vand.u32 %v669, 4294901760
        %2511 = vmatmul.mubr.f32.gmra.mrb[0].mxu0 %v2510
        %v2512 = vpop.f32.mrb[0].mxu0
        %v2513 = vadd.f32 %v2192, %v2512
        %v2514 = vpop.f32.mrb[0].mxu0
        %v2515 = vand.u32 %v676, 4294901760
        %2516 = vmatprep.mubr.f32.mxu0 %v2515
        %v2517 = vand.u32 %v675, 4294901760
        %2518 = vmatmul.mubr.f32.gmra.mrb[0].mxu0 %v2517
        %v2519 = vpop.f32.mrb[0].mxu0
        %v2520 = vadd.f32 %v2207, %v2519
        %v2521 = vpop.f32.mrb[0].mxu0
        %v2522 = vand.u32 %v682, 4294901760
        %2523 = vmatprep.mubr.f32.mxu0 %v2522
        %v2524 = vand.u32 %v681, 4294901760
        %2525 = vmatmul.mubr.f32.gmra.mrb[0].mxu0 %v2524
        %v2526 = vpop.f32.mrb[0].mxu0
        %v2527 = vadd.f32 %v2222, %v2526
        %v2528 = vpop.f32.mrb[0].mxu0
        %v2529 = vand.u32 %v688, 4294901760
        %2530 = vmatprep.mubr.f32.mxu0 %v2529
        %v2531 = vand.u32 %v687, 4294901760
        %2532 = vmatmul.mubr.f32.gmra.mrb[0].mxu0 %v2531
        %v2533 = vpop.f32.mrb[0].mxu0
        %v2534 = vadd.f32 %v2237, %v2533
        %v2535 = vpop.f32.mrb[0].mxu0
        %v2536 = vand.u32 %v694, 4294901760
        %2537 = vmatprep.mubr.f32.mxu0 %v2536
        %v2538 = vand.u32 %v693, 4294901760
        %2539 = vmatmul.mubr.f32.gmra.mrb[0].mxu0 %v2538
        %v2540 = vpop.f32.mrb[0].mxu0
        %v2541 = vadd.f32 %v2252, %v2540
        %v2542 = vpop.f32.mrb[0].mxu0
        %v2543 = vand.u32 %v700, 4294901760
        %2544 = vmatprep.mubr.f32.mxu0 %v2543
        %v2545 = vand.u32 %v699, 4294901760
        %2546 = vmatmul.mubr.f32.gmra.mrb[0].mxu0 %v2545
        %v2547 = vpop.f32.mrb[0].mxu0
        %v2548 = vadd.f32 %v2267, %v2547
        %v2549 = vpop.f32.mrb[0].mxu0
        %2550 = vdwg.mxu0
        %2551 = vmatprep.subr.mxu0 0.0
        %v2552 = vand.u32 %v735, 4294901760
        %v2553 = vsub.f32 %v735, %v2552
        %2554 = vmatpush1.msra.mxu0 %v2553
        %2555 = vmatprep.subr.mxu0 0.0
        %v2556 = vand.u32 %v736, 4294901760
        %v2557 = vsub.f32 %v736, %v2556
        %2558 = vmatpush1.msra.mxu0 %v2557
        %2559 = vmatprep.subr.mxu0 0.0
        %v2560 = vand.u32 %v737, 4294901760
        %v2561 = vsub.f32 %v737, %v2560
        %2562 = vmatpush1.msra.mxu0 %v2561
        %2563 = vmatprep.subr.mxu0 0.0
        %v2564 = vand.u32 %v738, 4294901760
        %v2565 = vsub.f32 %v738, %v2564
        %2566 = vmatpush1.msra.mxu0 %v2565
        %2567 = vmatprep.subr.mxu0 0.0
        %v2568 = vand.u32 %v739, 4294901760
        %v2569 = vsub.f32 %v739, %v2568
        %2570 = vmatpush1.msra.mxu0 %v2569
        %2571 = vmatprep.subr.mxu0 0.0
        %v2572 = vand.u32 %v740, 4294901760
        %v2573 = vsub.f32 %v740, %v2572
        %2574 = vmatpush1.msra.mxu0 %v2573
        %2575 = vmatprep.subr.mxu0 0.0
        %v2576 = vand.u32 %v741, 4294901760
        %v2577 = vsub.f32 %v741, %v2576
        %2578 = vmatpush1.msra.mxu0 %v2577
        %2579 = vmatprep.subr.mxu0 0.0
        %v2580 = vand.u32 %v742, 4294901760
        %v2581 = vsub.f32 %v742, %v2580
        %2582 = vmatpush1.msra.mxu0 %v2581
        %2583 = vmatprep.subr.mxu0 0.0
        %v2584 = vand.u32 %v743, 4294901760
        %v2585 = vsub.f32 %v743, %v2584
        %2586 = vmatpush1.msra.mxu0 %v2585
        %2587 = vmatprep.subr.mxu0 0.0
        %v2588 = vand.u32 %v744, 4294901760
        %v2589 = vsub.f32 %v744, %v2588
        %2590 = vmatpush1.msra.mxu0 %v2589
        %2591 = vmatprep.subr.mxu0 0.0
        %v2592 = vand.u32 %v745, 4294901760
        %v2593 = vsub.f32 %v745, %v2592
        %2594 = vmatpush1.msra.mxu0 %v2593
        %2595 = vmatprep.subr.mxu0 0.0
        %v2596 = vand.u32 %v746, 4294901760
        %v2597 = vsub.f32 %v746, %v2596
        %2598 = vmatpush1.msra.mxu0 %v2597
        %2599 = vmatprep.subr.mxu0 0.0
        %v2600 = vand.u32 %v747, 4294901760
        %v2601 = vsub.f32 %v747, %v2600
        %2602 = vmatpush1.msra.mxu0 %v2601
        %2603 = vmatprep.subr.mxu0 0.0
        %v2604 = vand.u32 %v748, 4294901760
        %v2605 = vsub.f32 %v748, %v2604
        %2606 = vmatpush1.msra.mxu0 %v2605
        %2607 = vmatprep.subr.mxu0 0.0
        %v2608 = vand.u32 %v749, 4294901760
        %v2609 = vsub.f32 %v749, %v2608
        %2610 = vmatpush1.msra.mxu0 %v2609
        %2611 = vmatprep.subr.mxu0 0.0
        %v2612 = vand.u32 %v750, 4294901760
        %v2613 = vsub.f32 %v750, %v2612
        %2614 = vmatpush1.msra.mxu0 %v2613
        %2615 = vmatprep.subr.mxu0 0.0
        %v2616 = vand.u32 %v751, 4294901760
        %v2617 = vsub.f32 %v751, %v2616
        %2618 = vmatpush1.msra.mxu0 %v2617
        %2619 = vmatprep.subr.mxu0 0.0
        %v2620 = vand.u32 %v752, 4294901760
        %v2621 = vsub.f32 %v752, %v2620
        %2622 = vmatpush1.msra.mxu0 %v2621
        %2623 = vmatprep.subr.mxu0 0.0
        %v2624 = vand.u32 %v753, 4294901760
        %v2625 = vsub.f32 %v753, %v2624
        %2626 = vmatpush1.msra.mxu0 %v2625
        %2627 = vmatprep.subr.mxu0 0.0
        %v2628 = vand.u32 %v754, 4294901760
        %v2629 = vsub.f32 %v754, %v2628
        %2630 = vmatpush1.msra.mxu0 %v2629
        %2631 = vmatprep.subr.mxu0 0.0
        %v2632 = vand.u32 %v755, 4294901760
        %v2633 = vsub.f32 %v755, %v2632
        %2634 = vmatpush1.msra.mxu0 %v2633
        %2635 = vmatprep.subr.mxu0 0.0
        %v2636 = vand.u32 %v756, 4294901760
        %v2637 = vsub.f32 %v756, %v2636
        %2638 = vmatpush1.msra.mxu0 %v2637
        %2639 = vmatprep.subr.mxu0 0.0
        %v2640 = vand.u32 %v757, 4294901760
        %v2641 = vsub.f32 %v757, %v2640
        %2642 = vmatpush1.msra.mxu0 %v2641
        %2643 = vmatprep.subr.mxu0 0.0
        %v2644 = vand.u32 %v758, 4294901760
        %v2645 = vsub.f32 %v758, %v2644
        %2646 = vmatpush1.msra.mxu0 %v2645
        %2647 = vmatprep.subr.mxu0 0.0
        %v2648 = vand.u32 %v759, 4294901760
        %v2649 = vsub.f32 %v759, %v2648
        %2650 = vmatpush1.msra.mxu0 %v2649
        %2651 = vmatprep.subr.mxu0 0.0
        %v2652 = vand.u32 %v760, 4294901760
        %v2653 = vsub.f32 %v760, %v2652
        %2654 = vmatpush1.msra.mxu0 %v2653
        %2655 = vmatprep.subr.mxu0 0.0
        %v2656 = vand.u32 %v761, 4294901760
        %v2657 = vsub.f32 %v761, %v2656
        %2658 = vmatpush1.msra.mxu0 %v2657
        %2659 = vmatprep.subr.mxu0 0.0
        %v2660 = vand.u32 %v762, 4294901760
        %v2661 = vsub.f32 %v762, %v2660
        %2662 = vmatpush1.msra.mxu0 %v2661
        %2663 = vmatprep.subr.mxu0 0.0
        %v2664 = vand.u32 %v763, 4294901760
        %v2665 = vsub.f32 %v763, %v2664
        %2666 = vmatpush1.msra.mxu0 %v2665
        %2667 = vmatprep.subr.mxu0 0.0
        %v2668 = vand.u32 %v764, 4294901760
        %v2669 = vsub.f32 %v764, %v2668
        %2670 = vmatpush1.msra.mxu0 %v2669
        %2671 = vmatprep.subr.mxu0 0.0
        %v2672 = vand.u32 %v765, 4294901760
        %v2673 = vsub.f32 %v765, %v2672
        %2674 = vmatpush1.msra.mxu0 %v2673
        %2675 = vmatprep.subr.mxu0 0.0
        %v2676 = vand.u32 %v766, 4294901760
        %v2677 = vsub.f32 %v766, %v2676
        %2678 = vmatpush1.msra.mxu0 %v2677
        %v2679 = vand.u32 %v658, 4294901760
        %v2680 = vsub.f32 %v658, %v2679
        %2681 = vmatprep.mubr.f32.mxu0 %v2680
        %v2682 = vand.u32 %v657, 4294901760
        %v2683 = vsub.f32 %v657, %v2682
        %2684 = vmatmul.mubr.f32.gmra.mrb[0].mxu0 %v2683
        %v2685 = vpop.f32.mrb[0].mxu0
        %v2686 = vadd.f32 %v2499, %v2685
        %v2687 = vpop.f32.mrb[0].mxu0
        %v2688 = vand.u32 %v664, 4294901760
        %v2689 = vsub.f32 %v664, %v2688
        %2690 = vmatprep.mubr.f32.mxu0 %v2689
        %v2691 = vand.u32 %v663, 4294901760
        %v2692 = vsub.f32 %v663, %v2691
        %2693 = vmatmul.mubr.f32.gmra.mrb[0].mxu0 %v2692
        %v2694 = vpop.f32.mrb[0].mxu0
        %v2695 = vadd.f32 %v2506, %v2694
        %v2696 = vpop.f32.mrb[0].mxu0
        %v2697 = vand.u32 %v670, 4294901760
        %v2698 = vsub.f32 %v670, %v2697
        %2699 = vmatprep.mubr.f32.mxu0 %v2698
        %v2700 = vand.u32 %v669, 4294901760
        %v2701 = vsub.f32 %v669, %v2700
        %2702 = vmatmul.mubr.f32.gmra.mrb[0].mxu0 %v2701
        %v2703 = vpop.f32.mrb[0].mxu0
        %v2704 = vadd.f32 %v2513, %v2703
        %v2705 = vpop.f32.mrb[0].mxu0
        %v2706 = vand.u32 %v676, 4294901760
        %v2707 = vsub.f32 %v676, %v2706
        %2708 = vmatprep.mubr.f32.mxu0 %v2707
        %v2709 = vand.u32 %v675, 4294901760
        %v2710 = vsub.f32 %v675, %v2709
        %2711 = vmatmul.mubr.f32.gmra.mrb[0].mxu0 %v2710
        %v2712 = vpop.f32.mrb[0].mxu0
        %v2713 = vadd.f32 %v2520, %v2712
        %v2714 = vpop.f32.mrb[0].mxu0
        %v2715 = vand.u32 %v682, 4294901760
        %v2716 = vsub.f32 %v682, %v2715
        %2717 = vmatprep.mubr.f32.mxu0 %v2716
        %v2718 = vand.u32 %v681, 4294901760
        %v2719 = vsub.f32 %v681, %v2718
        %2720 = vmatmul.mubr.f32.gmra.mrb[0].mxu0 %v2719
        %v2721 = vpop.f32.mrb[0].mxu0
        %v2722 = vadd.f32 %v2527, %v2721
        %v2723 = vpop.f32.mrb[0].mxu0
        %v2724 = vand.u32 %v688, 4294901760
        %v2725 = vsub.f32 %v688, %v2724
        %2726 = vmatprep.mubr.f32.mxu0 %v2725
        %v2727 = vand.u32 %v687, 4294901760
        %v2728 = vsub.f32 %v687, %v2727
        %2729 = vmatmul.mubr.f32.gmra.mrb[0].mxu0 %v2728
        %v2730 = vpop.f32.mrb[0].mxu0
        %v2731 = vadd.f32 %v2534, %v2730
        %v2732 = vpop.f32.mrb[0].mxu0
        %v2733 = vand.u32 %v694, 4294901760
        %v2734 = vsub.f32 %v694, %v2733
        %2735 = vmatprep.mubr.f32.mxu0 %v2734
        %v2736 = vand.u32 %v693, 4294901760
        %v2737 = vsub.f32 %v693, %v2736
        %2738 = vmatmul.mubr.f32.gmra.mrb[0].mxu0 %v2737
        %v2739 = vpop.f32.mrb[0].mxu0
        %v2740 = vadd.f32 %v2541, %v2739
        %v2741 = vpop.f32.mrb[0].mxu0
        %v2742 = vand.u32 %v700, 4294901760
        %v2743 = vsub.f32 %v700, %v2742
        %2744 = vmatprep.mubr.f32.mxu0 %v2743
        %v2745 = vand.u32 %v699, 4294901760
        %v2746 = vsub.f32 %v699, %v2745
        %2747 = vmatmul.mubr.f32.gmra.mrb[0].mxu0 %v2746
        %v2748 = vpop.f32.mrb[0].mxu0
        %v2749 = vadd.f32 %v2548, %v2748
        %v2750 = vpop.f32.mrb[0].mxu0
        %2751 = vdwg.mxu0
        %2752 = vmatprep.subr.mxu0 0.0
        %v2753 = vand.u32 %v735, 4294901760
        %2754 = vmatpush1.msra.mxu0 %v2753
        %2755 = vmatprep.subr.mxu0 0.0
        %v2756 = vand.u32 %v736, 4294901760
        %2757 = vmatpush1.msra.mxu0 %v2756
        %2758 = vmatprep.subr.mxu0 0.0
        %v2759 = vand.u32 %v737, 4294901760
        %2760 = vmatpush1.msra.mxu0 %v2759
        %2761 = vmatprep.subr.mxu0 0.0
        %v2762 = vand.u32 %v738, 4294901760
        %2763 = vmatpush1.msra.mxu0 %v2762
        %2764 = vmatprep.subr.mxu0 0.0
        %v2765 = vand.u32 %v739, 4294901760
        %2766 = vmatpush1.msra.mxu0 %v2765
        %2767 = vmatprep.subr.mxu0 0.0
        %v2768 = vand.u32 %v740, 4294901760
        %2769 = vmatpush1.msra.mxu0 %v2768
        %2770 = vmatprep.subr.mxu0 0.0
        %v2771 = vand.u32 %v741, 4294901760
        %2772 = vmatpush1.msra.mxu0 %v2771
        %2773 = vmatprep.subr.mxu0 0.0
        %v2774 = vand.u32 %v742, 4294901760
        %2775 = vmatpush1.msra.mxu0 %v2774
        %2776 = vmatprep.subr.mxu0 0.0
        %v2777 = vand.u32 %v743, 4294901760
        %2778 = vmatpush1.msra.mxu0 %v2777
        %2779 = vmatprep.subr.mxu0 0.0
        %v2780 = vand.u32 %v744, 4294901760
        %2781 = vmatpush1.msra.mxu0 %v2780
        %2782 = vmatprep.subr.mxu0 0.0
        %v2783 = vand.u32 %v745, 4294901760
        %2784 = vmatpush1.msra.mxu0 %v2783
        %2785 = vmatprep.subr.mxu0 0.0
        %v2786 = vand.u32 %v746, 4294901760
        %2787 = vmatpush1.msra.mxu0 %v2786
        %2788 = vmatprep.subr.mxu0 0.0
        %v2789 = vand.u32 %v747, 4294901760
        %2790 = vmatpush1.msra.mxu0 %v2789
        %2791 = vmatprep.subr.mxu0 0.0
        %v2792 = vand.u32 %v748, 4294901760
        %2793 = vmatpush1.msra.mxu0 %v2792
        %2794 = vmatprep.subr.mxu0 0.0
        %v2795 = vand.u32 %v749, 4294901760
        %2796 = vmatpush1.msra.mxu0 %v2795
        %2797 = vmatprep.subr.mxu0 0.0
        %v2798 = vand.u32 %v750, 4294901760
        %2799 = vmatpush1.msra.mxu0 %v2798
        %2800 = vmatprep.subr.mxu0 0.0
        %v2801 = vand.u32 %v751, 4294901760
        %2802 = vmatpush1.msra.mxu0 %v2801
        %2803 = vmatprep.subr.mxu0 0.0
        %v2804 = vand.u32 %v752, 4294901760
        %2805 = vmatpush1.msra.mxu0 %v2804
        %2806 = vmatprep.subr.mxu0 0.0
        %v2807 = vand.u32 %v753, 4294901760
        %2808 = vmatpush1.msra.mxu0 %v2807
        %2809 = vmatprep.subr.mxu0 0.0
        %v2810 = vand.u32 %v754, 4294901760
        %2811 = vmatpush1.msra.mxu0 %v2810
        %2812 = vmatprep.subr.mxu0 0.0
        %v2813 = vand.u32 %v755, 4294901760
        %2814 = vmatpush1.msra.mxu0 %v2813
        %2815 = vmatprep.subr.mxu0 0.0
        %v2816 = vand.u32 %v756, 4294901760
        %2817 = vmatpush1.msra.mxu0 %v2816
        %2818 = vmatprep.subr.mxu0 0.0
        %v2819 = vand.u32 %v757, 4294901760
        %2820 = vmatpush1.msra.mxu0 %v2819
        %2821 = vmatprep.subr.mxu0 0.0
        %v2822 = vand.u32 %v758, 4294901760
        %2823 = vmatpush1.msra.mxu0 %v2822
        %2824 = vmatprep.subr.mxu0 0.0
        %v2825 = vand.u32 %v759, 4294901760
        %2826 = vmatpush1.msra.mxu0 %v2825
        %2827 = vmatprep.subr.mxu0 0.0
        %v2828 = vand.u32 %v760, 4294901760
        %2829 = vmatpush1.msra.mxu0 %v2828
        %2830 = vmatprep.subr.mxu0 0.0
        %v2831 = vand.u32 %v761, 4294901760
        %2832 = vmatpush1.msra.mxu0 %v2831
        %2833 = vmatprep.subr.mxu0 0.0
        %v2834 = vand.u32 %v762, 4294901760
        %2835 = vmatpush1.msra.mxu0 %v2834
        %2836 = vmatprep.subr.mxu0 0.0
        %v2837 = vand.u32 %v763, 4294901760
        %2838 = vmatpush1.msra.mxu0 %v2837
        %2839 = vmatprep.subr.mxu0 0.0
        %v2840 = vand.u32 %v764, 4294901760
        %2841 = vmatpush1.msra.mxu0 %v2840
        %2842 = vmatprep.subr.mxu0 0.0
        %v2843 = vand.u32 %v765, 4294901760
        %2844 = vmatpush1.msra.mxu0 %v2843
        %2845 = vmatprep.subr.mxu0 0.0
        %v2846 = vand.u32 %v766, 4294901760
        %2847 = vmatpush1.msra.mxu0 %v2846
        %v2848 = vand.u32 %v658, 4294901760
        %v2849 = vsub.f32 %v658, %v2848
        %v2850 = vand.u32 %v2849, 4294901760
        %2851 = vmatprep.mubr.f32.mxu0 %v2850
        %v2852 = vand.u32 %v657, 4294901760
        %v2853 = vsub.f32 %v657, %v2852
        %v2854 = vand.u32 %v2853, 4294901760
        %2855 = vmatmul.mubr.f32.gmra.mrb[0].mxu0 %v2854
        %v2856 = vpop.f32.mrb[0].mxu0
        %v2857 = vadd.f32 %v2686, %v2856
        %v2858 = vpop.f32.mrb[0].mxu0
        %v2859 = vand.u32 %v664, 4294901760
        %v2860 = vsub.f32 %v664, %v2859
        %v2861 = vand.u32 %v2860, 4294901760
        %2862 = vmatprep.mubr.f32.mxu0 %v2861
        %v2863 = vand.u32 %v663, 4294901760
        %v2864 = vsub.f32 %v663, %v2863
        %v2865 = vand.u32 %v2864, 4294901760
        %2866 = vmatmul.mubr.f32.gmra.mrb[0].mxu0 %v2865
        %v2867 = vpop.f32.mrb[0].mxu0
        %v2868 = vadd.f32 %v2695, %v2867
        %v2869 = vpop.f32.mrb[0].mxu0
        %v2870 = vand.u32 %v670, 4294901760
        %v2871 = vsub.f32 %v670, %v2870
        %v2872 = vand.u32 %v2871, 4294901760
        %2873 = vmatprep.mubr.f32.mxu0 %v2872
        %v2874 = vand.u32 %v669, 4294901760
        %v2875 = vsub.f32 %v669, %v2874
        %v2876 = vand.u32 %v2875, 4294901760
        %2877 = vmatmul.mubr.f32.gmra.mrb[0].mxu0 %v2876
        %v2878 = vpop.f32.mrb[0].mxu0
        %v2879 = vadd.f32 %v2704, %v2878
        %v2880 = vpop.f32.mrb[0].mxu0
        %v2881 = vand.u32 %v676, 4294901760
        %v2882 = vsub.f32 %v676, %v2881
        %v2883 = vand.u32 %v2882, 4294901760
        %2884 = vmatprep.mubr.f32.mxu0 %v2883
        %v2885 = vand.u32 %v675, 4294901760
        %v2886 = vsub.f32 %v675, %v2885
        %v2887 = vand.u32 %v2886, 4294901760
        %2888 = vmatmul.mubr.f32.gmra.mrb[0].mxu0 %v2887
        %v2889 = vpop.f32.mrb[0].mxu0
        %v2890 = vadd.f32 %v2713, %v2889
        %v2891 = vpop.f32.mrb[0].mxu0
        %v2892 = vand.u32 %v682, 4294901760
        %v2893 = vsub.f32 %v682, %v2892
        %v2894 = vand.u32 %v2893, 4294901760
        %2895 = vmatprep.mubr.f32.mxu0 %v2894
        %v2896 = vand.u32 %v681, 4294901760
        %v2897 = vsub.f32 %v681, %v2896
        %v2898 = vand.u32 %v2897, 4294901760
        %2899 = vmatmul.mubr.f32.gmra.mrb[0].mxu0 %v2898
        %v2900 = vpop.f32.mrb[0].mxu0
        %v2901 = vadd.f32 %v2722, %v2900
        %v2902 = vpop.f32.mrb[0].mxu0
        %v2903 = vand.u32 %v688, 4294901760
        %v2904 = vsub.f32 %v688, %v2903
        %v2905 = vand.u32 %v2904, 4294901760
        %2906 = vmatprep.mubr.f32.mxu0 %v2905
        %v2907 = vand.u32 %v687, 4294901760
        %v2908 = vsub.f32 %v687, %v2907
        %v2909 = vand.u32 %v2908, 4294901760
        %2910 = vmatmul.mubr.f32.gmra.mrb[0].mxu0 %v2909
        %v2911 = vpop.f32.mrb[0].mxu0
        %v2912 = vadd.f32 %v2731, %v2911
        %v2913 = vpop.f32.mrb[0].mxu0
        %v2914 = vand.u32 %v694, 4294901760
        %v2915 = vsub.f32 %v694, %v2914
        %v2916 = vand.u32 %v2915, 4294901760
        %2917 = vmatprep.mubr.f32.mxu0 %v2916
        %v2918 = vand.u32 %v693, 4294901760
        %v2919 = vsub.f32 %v693, %v2918
        %v2920 = vand.u32 %v2919, 4294901760
        %2921 = vmatmul.mubr.f32.gmra.mrb[0].mxu0 %v2920
        %v2922 = vpop.f32.mrb[0].mxu0
        %v2923 = vadd.f32 %v2740, %v2922
        %v2924 = vpop.f32.mrb[0].mxu0
        %v2925 = vand.u32 %v700, 4294901760
        %v2926 = vsub.f32 %v700, %v2925
        %v2927 = vand.u32 %v2926, 4294901760
        %2928 = vmatprep.mubr.f32.mxu0 %v2927
        %v2929 = vand.u32 %v699, 4294901760
        %v2930 = vsub.f32 %v699, %v2929
        %v2931 = vand.u32 %v2930, 4294901760
        %2932 = vmatmul.mubr.f32.gmra.mrb[0].mxu0 %v2931
        %v2933 = vpop.f32.mrb[0].mxu0
        %v2934 = vadd.f32 %v2749, %v2933
        %v2935 = vpop.f32.mrb[0].mxu0
        %2936 = vdwg.mxu0
        %2937 = vmatprep.subr.mxu0 0.0
        %v2938 = vand.u32 %v735, 4294901760
        %v2939 = vsub.f32 %v735, %v2938
        %v2940 = vand.u32 %v2939, 4294901760
        %2941 = vmatpush1.msra.mxu0 %v2940
        %2942 = vmatprep.subr.mxu0 0.0
        %v2943 = vand.u32 %v736, 4294901760
        %v2944 = vsub.f32 %v736, %v2943
        %v2945 = vand.u32 %v2944, 4294901760
        %2946 = vmatpush1.msra.mxu0 %v2945
        %2947 = vmatprep.subr.mxu0 0.0
        %v2948 = vand.u32 %v737, 4294901760
        %v2949 = vsub.f32 %v737, %v2948
        %v2950 = vand.u32 %v2949, 4294901760
        %2951 = vmatpush1.msra.mxu0 %v2950
        %2952 = vmatprep.subr.mxu0 0.0
        %v2953 = vand.u32 %v738, 4294901760
        %v2954 = vsub.f32 %v738, %v2953
        %v2955 = vand.u32 %v2954, 4294901760
        %2956 = vmatpush1.msra.mxu0 %v2955
        %2957 = vmatprep.subr.mxu0 0.0
        %v2958 = vand.u32 %v739, 4294901760
        %v2959 = vsub.f32 %v739, %v2958
        %v2960 = vand.u32 %v2959, 4294901760
        %2961 = vmatpush1.msra.mxu0 %v2960
        %2962 = vmatprep.subr.mxu0 0.0
        %v2963 = vand.u32 %v740, 4294901760
        %v2964 = vsub.f32 %v740, %v2963
        %v2965 = vand.u32 %v2964, 4294901760
        %2966 = vmatpush1.msra.mxu0 %v2965
        %2967 = vmatprep.subr.mxu0 0.0
        %v2968 = vand.u32 %v741, 4294901760
        %v2969 = vsub.f32 %v741, %v2968
        %v2970 = vand.u32 %v2969, 4294901760
        %2971 = vmatpush1.msra.mxu0 %v2970
        %2972 = vmatprep.subr.mxu0 0.0
        %v2973 = vand.u32 %v742, 4294901760
        %v2974 = vsub.f32 %v742, %v2973
        %v2975 = vand.u32 %v2974, 4294901760
        %2976 = vmatpush1.msra.mxu0 %v2975
        %2977 = vmatprep.subr.mxu0 0.0
        %v2978 = vand.u32 %v743, 4294901760
        %v2979 = vsub.f32 %v743, %v2978
        %v2980 = vand.u32 %v2979, 4294901760
        %2981 = vmatpush1.msra.mxu0 %v2980
        %2982 = vmatprep.subr.mxu0 0.0
        %v2983 = vand.u32 %v744, 4294901760
        %v2984 = vsub.f32 %v744, %v2983
        %v2985 = vand.u32 %v2984, 4294901760
        %2986 = vmatpush1.msra.mxu0 %v2985
        %2987 = vmatprep.subr.mxu0 0.0
        %v2988 = vand.u32 %v745, 4294901760
        %v2989 = vsub.f32 %v745, %v2988
        %v2990 = vand.u32 %v2989, 4294901760
        %2991 = vmatpush1.msra.mxu0 %v2990
        %2992 = vmatprep.subr.mxu0 0.0
        %v2993 = vand.u32 %v746, 4294901760
        %v2994 = vsub.f32 %v746, %v2993
        %v2995 = vand.u32 %v2994, 4294901760
        %2996 = vmatpush1.msra.mxu0 %v2995
        %2997 = vmatprep.subr.mxu0 0.0
        %v2998 = vand.u32 %v747, 4294901760
        %v2999 = vsub.f32 %v747, %v2998
        %v3000 = vand.u32 %v2999, 4294901760
        %3001 = vmatpush1.msra.mxu0 %v3000
        %3002 = vmatprep.subr.mxu0 0.0
        %v3003 = vand.u32 %v748, 4294901760
        %v3004 = vsub.f32 %v748, %v3003
        %v3005 = vand.u32 %v3004, 4294901760
        %3006 = vmatpush1.msra.mxu0 %v3005
        %3007 = vmatprep.subr.mxu0 0.0
        %v3008 = vand.u32 %v749, 4294901760
        %v3009 = vsub.f32 %v749, %v3008
        %v3010 = vand.u32 %v3009, 4294901760
        %3011 = vmatpush1.msra.mxu0 %v3010
        %3012 = vmatprep.subr.mxu0 0.0
        %v3013 = vand.u32 %v750, 4294901760
        %v3014 = vsub.f32 %v750, %v3013
        %v3015 = vand.u32 %v3014, 4294901760
        %3016 = vmatpush1.msra.mxu0 %v3015
        %3017 = vmatprep.subr.mxu0 0.0
        %v3018 = vand.u32 %v751, 4294901760
        %v3019 = vsub.f32 %v751, %v3018
        %v3020 = vand.u32 %v3019, 4294901760
        %3021 = vmatpush1.msra.mxu0 %v3020
        %3022 = vmatprep.subr.mxu0 0.0
        %v3023 = vand.u32 %v752, 4294901760
        %v3024 = vsub.f32 %v752, %v3023
        %v3025 = vand.u32 %v3024, 4294901760
        %3026 = vmatpush1.msra.mxu0 %v3025
        %3027 = vmatprep.subr.mxu0 0.0
        %v3028 = vand.u32 %v753, 4294901760
        %v3029 = vsub.f32 %v753, %v3028
        %v3030 = vand.u32 %v3029, 4294901760
        %3031 = vmatpush1.msra.mxu0 %v3030
        %3032 = vmatprep.subr.mxu0 0.0
        %v3033 = vand.u32 %v754, 4294901760
        %v3034 = vsub.f32 %v754, %v3033
        %v3035 = vand.u32 %v3034, 4294901760
        %3036 = vmatpush1.msra.mxu0 %v3035
        %3037 = vmatprep.subr.mxu0 0.0
        %v3038 = vand.u32 %v755, 4294901760
        %v3039 = vsub.f32 %v755, %v3038
        %v3040 = vand.u32 %v3039, 4294901760
        %3041 = vmatpush1.msra.mxu0 %v3040
        %3042 = vmatprep.subr.mxu0 0.0
        %v3043 = vand.u32 %v756, 4294901760
        %v3044 = vsub.f32 %v756, %v3043
        %v3045 = vand.u32 %v3044, 4294901760
        %3046 = vmatpush1.msra.mxu0 %v3045
        %3047 = vmatprep.subr.mxu0 0.0
        %v3048 = vand.u32 %v757, 4294901760
        %v3049 = vsub.f32 %v757, %v3048
        %v3050 = vand.u32 %v3049, 4294901760
        %3051 = vmatpush1.msra.mxu0 %v3050
        %3052 = vmatprep.subr.mxu0 0.0
        %v3053 = vand.u32 %v758, 4294901760
        %v3054 = vsub.f32 %v758, %v3053
        %v3055 = vand.u32 %v3054, 4294901760
        %3056 = vmatpush1.msra.mxu0 %v3055
        %3057 = vmatprep.subr.mxu0 0.0
        %v3058 = vand.u32 %v759, 4294901760
        %v3059 = vsub.f32 %v759, %v3058
        %v3060 = vand.u32 %v3059, 4294901760
        %3061 = vmatpush1.msra.mxu0 %v3060
        %3062 = vmatprep.subr.mxu0 0.0
        %v3063 = vand.u32 %v760, 4294901760
        %v3064 = vsub.f32 %v760, %v3063
        %v3065 = vand.u32 %v3064, 4294901760
        %3066 = vmatpush1.msra.mxu0 %v3065
        %3067 = vmatprep.subr.mxu0 0.0
        %v3068 = vand.u32 %v761, 4294901760
        %v3069 = vsub.f32 %v761, %v3068
        %v3070 = vand.u32 %v3069, 4294901760
        %3071 = vmatpush1.msra.mxu0 %v3070
        %3072 = vmatprep.subr.mxu0 0.0
        %v3073 = vand.u32 %v762, 4294901760
        %v3074 = vsub.f32 %v762, %v3073
        %v3075 = vand.u32 %v3074, 4294901760
        %3076 = vmatpush1.msra.mxu0 %v3075
        %3077 = vmatprep.subr.mxu0 0.0
        %v3078 = vand.u32 %v763, 4294901760
        %v3079 = vsub.f32 %v763, %v3078
        %v3080 = vand.u32 %v3079, 4294901760
        %3081 = vmatpush1.msra.mxu0 %v3080
        %3082 = vmatprep.subr.mxu0 0.0
        %v3083 = vand.u32 %v764, 4294901760
        %v3084 = vsub.f32 %v764, %v3083
        %v3085 = vand.u32 %v3084, 4294901760
        %3086 = vmatpush1.msra.mxu0 %v3085
        %3087 = vmatprep.subr.mxu0 0.0
        %v3088 = vand.u32 %v765, 4294901760
        %v3089 = vsub.f32 %v765, %v3088
        %v3090 = vand.u32 %v3089, 4294901760
        %3091 = vmatpush1.msra.mxu0 %v3090
        %3092 = vmatprep.subr.mxu0 0.0
        %v3093 = vand.u32 %v766, 4294901760
        %v3094 = vsub.f32 %v766, %v3093
        %v3095 = vand.u32 %v3094, 4294901760
        %3096 = vmatpush1.msra.mxu0 %v3095
        %v3097 = vand.u32 %v658, 4294901760
        %3098 = vmatprep.mubr.f32.mxu0 %v3097
        %v3099 = vand.u32 %v657, 4294901760
        %3100 = vmatmul.mubr.f32.gmra.mrb[0].mxu0 %v3099
        %v3101 = vpop.f32.mrb[0].mxu0
        %v3102 = vadd.f32 %v2857, %v3101
        %v3103 = vpop.f32.mrb[0].mxu0
        %v3104 = vand.u32 %v664, 4294901760
        %3105 = vmatprep.mubr.f32.mxu0 %v3104
        %v3106 = vand.u32 %v663, 4294901760
        %3107 = vmatmul.mubr.f32.gmra.mrb[0].mxu0 %v3106
        %v3108 = vpop.f32.mrb[0].mxu0
        %v3109 = vadd.f32 %v2868, %v3108
        %v3110 = vpop.f32.mrb[0].mxu0
        %v3111 = vand.u32 %v670, 4294901760
        %3112 = vmatprep.mubr.f32.mxu0 %v3111
        %v3113 = vand.u32 %v669, 4294901760
        %3114 = vmatmul.mubr.f32.gmra.mrb[0].mxu0 %v3113
        %v3115 = vpop.f32.mrb[0].mxu0
        %v3116 = vadd.f32 %v2879, %v3115
        %v3117 = vpop.f32.mrb[0].mxu0
        %v3118 = vand.u32 %v676, 4294901760
        %3119 = vmatprep.mubr.f32.mxu0 %v3118
        %v3120 = vand.u32 %v675, 4294901760
        %3121 = vmatmul.mubr.f32.gmra.mrb[0].mxu0 %v3120
        %v3122 = vpop.f32.mrb[0].mxu0
        %v3123 = vadd.f32 %v2890, %v3122
        %v3124 = vpop.f32.mrb[0].mxu0
        %v3125 = vand.u32 %v682, 4294901760
        %3126 = vmatprep.mubr.f32.mxu0 %v3125
        %v3127 = vand.u32 %v681, 4294901760
        %3128 = vmatmul.mubr.f32.gmra.mrb[0].mxu0 %v3127
        %v3129 = vpop.f32.mrb[0].mxu0
        %v3130 = vadd.f32 %v2901, %v3129
        %v3131 = vpop.f32.mrb[0].mxu0
        %v3132 = vand.u32 %v688, 4294901760
        %3133 = vmatprep.mubr.f32.mxu0 %v3132
        %v3134 = vand.u32 %v687, 4294901760
        %3135 = vmatmul.mubr.f32.gmra.mrb[0].mxu0 %v3134
        %v3136 = vpop.f32.mrb[0].mxu0
        %v3137 = vadd.f32 %v2912, %v3136
        %v3138 = vpop.f32.mrb[0].mxu0
        %v3139 = vand.u32 %v694, 4294901760
        %3140 = vmatprep.mubr.f32.mxu0 %v3139
        %v3141 = vand.u32 %v693, 4294901760
        %3142 = vmatmul.mubr.f32.gmra.mrb[0].mxu0 %v3141
        %v3143 = vpop.f32.mrb[0].mxu0
        %v3144 = vadd.f32 %v2923, %v3143
        %v3145 = vpop.f32.mrb[0].mxu0
        %v3146 = vand.u32 %v700, 4294901760
        %3147 = vmatprep.mubr.f32.mxu0 %v3146
        %v3148 = vand.u32 %v699, 4294901760
        %3149 = vmatmul.mubr.f32.gmra.mrb[0].mxu0 %v3148
        %v3150 = vpop.f32.mrb[0].mxu0
        %v3151 = vadd.f32 %v2934, %v3150
        %v3152 = vpop.f32.mrb[0].mxu0
        %3153 = vdwg.mxu0
        %3154 = vmatprep.subr.mxu0 0.0
        %v3155 = vand.u32 %v735, 4294901760
        %3156 = vmatpush1.msra.mxu0 %v3155
        %3157 = vmatprep.subr.mxu0 0.0
        %v3158 = vand.u32 %v736, 4294901760
        %3159 = vmatpush1.msra.mxu0 %v3158
        %3160 = vmatprep.subr.mxu0 0.0
        %v3161 = vand.u32 %v737, 4294901760
        %3162 = vmatpush1.msra.mxu0 %v3161
        %3163 = vmatprep.subr.mxu0 0.0
        %v3164 = vand.u32 %v738, 4294901760
        %3165 = vmatpush1.msra.mxu0 %v3164
        %3166 = vmatprep.subr.mxu0 0.0
        %v3167 = vand.u32 %v739, 4294901760
        %3168 = vmatpush1.msra.mxu0 %v3167
        %3169 = vmatprep.subr.mxu0 0.0
        %v3170 = vand.u32 %v740, 4294901760
        %3171 = vmatpush1.msra.mxu0 %v3170
        %3172 = vmatprep.subr.mxu0 0.0
        %v3173 = vand.u32 %v741, 4294901760
        %3174 = vmatpush1.msra.mxu0 %v3173
        %3175 = vmatprep.subr.mxu0 0.0
        %v3176 = vand.u32 %v742, 4294901760
        %3177 = vmatpush1.msra.mxu0 %v3176
        %3178 = vmatprep.subr.mxu0 0.0
        %v3179 = vand.u32 %v743, 4294901760
        %3180 = vmatpush1.msra.mxu0 %v3179
        %3181 = vmatprep.subr.mxu0 0.0
        %v3182 = vand.u32 %v744, 4294901760
        %3183 = vmatpush1.msra.mxu0 %v3182
        %3184 = vmatprep.subr.mxu0 0.0
        %v3185 = vand.u32 %v745, 4294901760
        %3186 = vmatpush1.msra.mxu0 %v3185
        %3187 = vmatprep.subr.mxu0 0.0
        %v3188 = vand.u32 %v746, 4294901760
        %3189 = vmatpush1.msra.mxu0 %v3188
        %3190 = vmatprep.subr.mxu0 0.0
        %v3191 = vand.u32 %v747, 4294901760
        %3192 = vmatpush1.msra.mxu0 %v3191
        %3193 = vmatprep.subr.mxu0 0.0
        %v3194 = vand.u32 %v748, 4294901760
        %3195 = vmatpush1.msra.mxu0 %v3194
        %3196 = vmatprep.subr.mxu0 0.0
        %v3197 = vand.u32 %v749, 4294901760
        %3198 = vmatpush1.msra.mxu0 %v3197
        %3199 = vmatprep.subr.mxu0 0.0
        %v3200 = vand.u32 %v750, 4294901760
        %3201 = vmatpush1.msra.mxu0 %v3200
        %3202 = vmatprep.subr.mxu0 0.0
        %v3203 = vand.u32 %v751, 4294901760
        %3204 = vmatpush1.msra.mxu0 %v3203
        %3205 = vmatprep.subr.mxu0 0.0
        %v3206 = vand.u32 %v752, 4294901760
        %3207 = vmatpush1.msra.mxu0 %v3206
        %3208 = vmatprep.subr.mxu0 0.0
        %v3209 = vand.u32 %v753, 4294901760
        %3210 = vmatpush1.msra.mxu0 %v3209
        %3211 = vmatprep.subr.mxu0 0.0
        %v3212 = vand.u32 %v754, 4294901760
        %3213 = vmatpush1.msra.mxu0 %v3212
        %3214 = vmatprep.subr.mxu0 0.0
        %v3215 = vand.u32 %v755, 4294901760
        %3216 = vmatpush1.msra.mxu0 %v3215
        %3217 = vmatprep.subr.mxu0 0.0
        %v3218 = vand.u32 %v756, 4294901760
        %3219 = vmatpush1.msra.mxu0 %v3218
        %3220 = vmatprep.subr.mxu0 0.0
        %v3221 = vand.u32 %v757, 4294901760
        %3222 = vmatpush1.msra.mxu0 %v3221
        %3223 = vmatprep.subr.mxu0 0.0
        %v3224 = vand.u32 %v758, 4294901760
        %3225 = vmatpush1.msra.mxu0 %v3224
        %3226 = vmatprep.subr.mxu0 0.0
        %v3227 = vand.u32 %v759, 4294901760
        %3228 = vmatpush1.msra.mxu0 %v3227
        %3229 = vmatprep.subr.mxu0 0.0
        %v3230 = vand.u32 %v760, 4294901760
        %3231 = vmatpush1.msra.mxu0 %v3230
        %3232 = vmatprep.subr.mxu0 0.0
        %v3233 = vand.u32 %v761, 4294901760
        %3234 = vmatpush1.msra.mxu0 %v3233
        %3235 = vmatprep.subr.mxu0 0.0
        %v3236 = vand.u32 %v762, 4294901760
        %3237 = vmatpush1.msra.mxu0 %v3236
        %3238 = vmatprep.subr.mxu0 0.0
        %v3239 = vand.u32 %v763, 4294901760
        %3240 = vmatpush1.msra.mxu0 %v3239
        %3241 = vmatprep.subr.mxu0 0.0
        %v3242 = vand.u32 %v764, 4294901760
        %3243 = vmatpush1.msra.mxu0 %v3242
        %3244 = vmatprep.subr.mxu0 0.0
        %v3245 = vand.u32 %v765, 4294901760
        %3246 = vmatpush1.msra.mxu0 %v3245
        %3247 = vmatprep.subr.mxu0 0.0
        %v3248 = vand.u32 %v766, 4294901760
        %3249 = vmatpush1.msra.mxu0 %v3248
        %v3250 = vand.u32 %v658, 4294901760
        %3251 = vmatprep.mubr.f32.mxu0 %v3250
        %v3252 = vand.u32 %v657, 4294901760
        %3253 = vmatmul.mubr.f32.gmra.mrb[0].mxu0 %v3252
        %v3254 = vpop.f32.mrb[0].mxu0
        %v3255 = vadd.f32 %v3102, %v3254
        %v3256 = vpop.f32.mrb[0].mxu0
        %v3257 = vand.u32 %v664, 4294901760
        %3258 = vmatprep.mubr.f32.mxu0 %v3257
        %v3259 = vand.u32 %v663, 4294901760
        %3260 = vmatmul.mubr.f32.gmra.mrb[0].mxu0 %v3259
        %v3261 = vpop.f32.mrb[0].mxu0
        %v3262 = vadd.f32 %v3109, %v3261
        %v3263 = vpop.f32.mrb[0].mxu0
        %v3264 = vand.u32 %v670, 4294901760
        %3265 = vmatprep.mubr.f32.mxu0 %v3264
        %v3266 = vand.u32 %v669, 4294901760
        %3267 = vmatmul.mubr.f32.gmra.mrb[0].mxu0 %v3266
        %v3268 = vpop.f32.mrb[0].mxu0
        %v3269 = vadd.f32 %v3116, %v3268
        %v3270 = vpop.f32.mrb[0].mxu0
        %v3271 = vand.u32 %v676, 4294901760
        %3272 = vmatprep.mubr.f32.mxu0 %v3271
        %v3273 = vand.u32 %v675, 4294901760
        %3274 = vmatmul.mubr.f32.gmra.mrb[0].mxu0 %v3273
        %v3275 = vpop.f32.mrb[0].mxu0
        %v3276 = vadd.f32 %v3123, %v3275
        %v3277 = vpop.f32.mrb[0].mxu0
        %v3278 = vand.u32 %v682, 4294901760
        %3279 = vmatprep.mubr.f32.mxu0 %v3278
        %v3280 = vand.u32 %v681, 4294901760
        %3281 = vmatmul.mubr.f32.gmra.mrb[0].mxu0 %v3280
        %v3282 = vpop.f32.mrb[0].mxu0
        %v3283 = vadd.f32 %v3130, %v3282
        %v3284 = vpop.f32.mrb[0].mxu0
        %v3285 = vand.u32 %v688, 4294901760
        %3286 = vmatprep.mubr.f32.mxu0 %v3285
        %v3287 = vand.u32 %v687, 4294901760
        %3288 = vmatmul.mubr.f32.gmra.mrb[0].mxu0 %v3287
        %v3289 = vpop.f32.mrb[0].mxu0
        %v3290 = vadd.f32 %v3137, %v3289
        %v3291 = vpop.f32.mrb[0].mxu0
        %v3292 = vand.u32 %v694, 4294901760
        %3293 = vmatprep.mubr.f32.mxu0 %v3292
        %v3294 = vand.u32 %v693, 4294901760
        %3295 = vmatmul.mubr.f32.gmra.mrb[0].mxu0 %v3294
        %v3296 = vpop.f32.mrb[0].mxu0
        %v3297 = vadd.f32 %v3144, %v3296
        %v3298 = vpop.f32.mrb[0].mxu0
        %v3299 = vand.u32 %v700, 4294901760
        %3300 = vmatprep.mubr.f32.mxu0 %v3299
        %v3301 = vand.u32 %v699, 4294901760
        %3302 = vmatmul.mubr.f32.gmra.mrb[0].mxu0 %v3301
        %v3303 = vpop.f32.mrb[0].mxu0
        %v3304 = vadd.f32 %v3151, %v3303
        %v3305 = vpop.f32.mrb[0].mxu0
        %3306 = vdwg.mxu0
        %3307 = vmatprep.subr.mxu0 0.0
        %v3308 = vand.u32 %v767, 4294901760
        %3309 = vmatpush1.msra.mxu0 %v3308
        %3310 = vmatprep.subr.mxu0 0.0
        %v3311 = vand.u32 %v768, 4294901760
        %3312 = vmatpush1.msra.mxu0 %v3311
        %3313 = vmatprep.subr.mxu0 0.0
        %v3314 = vand.u32 %v769, 4294901760
        %3315 = vmatpush1.msra.mxu0 %v3314
        %3316 = vmatprep.subr.mxu0 0.0
        %v3317 = vand.u32 %v770, 4294901760
        %3318 = vmatpush1.msra.mxu0 %v3317
        %3319 = vmatprep.subr.mxu0 0.0
        %v3320 = vand.u32 %v771, 4294901760
        %3321 = vmatpush1.msra.mxu0 %v3320
        %3322 = vmatprep.subr.mxu0 0.0
        %v3323 = vand.u32 %v772, 4294901760
        %3324 = vmatpush1.msra.mxu0 %v3323
        %3325 = vmatprep.subr.mxu0 0.0
        %v3326 = vand.u32 %v773, 4294901760
        %3327 = vmatpush1.msra.mxu0 %v3326
        %3328 = vmatprep.subr.mxu0 0.0
        %v3329 = vand.u32 %v774, 4294901760
        %3330 = vmatpush1.msra.mxu0 %v3329
        %3331 = vmatprep.subr.mxu0 0.0
        %v3332 = vand.u32 %v775, 4294901760
        %3333 = vmatpush1.msra.mxu0 %v3332
        %3334 = vmatprep.subr.mxu0 0.0
        %v3335 = vand.u32 %v776, 4294901760
        %3336 = vmatpush1.msra.mxu0 %v3335
        %3337 = vmatprep.subr.mxu0 0.0
        %v3338 = vand.u32 %v777, 4294901760
        %3339 = vmatpush1.msra.mxu0 %v3338
        %3340 = vmatprep.subr.mxu0 0.0
        %v3341 = vand.u32 %v778, 4294901760
        %3342 = vmatpush1.msra.mxu0 %v3341
        %3343 = vmatprep.subr.mxu0 0.0
        %v3344 = vand.u32 %v779, 4294901760
        %3345 = vmatpush1.msra.mxu0 %v3344
        %3346 = vmatprep.subr.mxu0 0.0
        %v3347 = vand.u32 %v780, 4294901760
        %3348 = vmatpush1.msra.mxu0 %v3347
        %3349 = vmatprep.subr.mxu0 0.0
        %v3350 = vand.u32 %v781, 4294901760
        %3351 = vmatpush1.msra.mxu0 %v3350
        %3352 = vmatprep.subr.mxu0 0.0
        %v3353 = vand.u32 %v782, 4294901760
        %3354 = vmatpush1.msra.mxu0 %v3353
        %3355 = vmatprep.subr.mxu0 0.0
        %v3356 = vand.u32 %v783, 4294901760
        %3357 = vmatpush1.msra.mxu0 %v3356
        %3358 = vmatprep.subr.mxu0 0.0
        %v3359 = vand.u32 %v784, 4294901760
        %3360 = vmatpush1.msra.mxu0 %v3359
        %3361 = vmatprep.subr.mxu0 0.0
        %v3362 = vand.u32 %v785, 4294901760
        %3363 = vmatpush1.msra.mxu0 %v3362
        %3364 = vmatprep.subr.mxu0 0.0
        %v3365 = vand.u32 %v786, 4294901760
        %3366 = vmatpush1.msra.mxu0 %v3365
        %3367 = vmatprep.subr.mxu0 0.0
        %v3368 = vand.u32 %v787, 4294901760
        %3369 = vmatpush1.msra.mxu0 %v3368
        %3370 = vmatprep.subr.mxu0 0.0
        %v3371 = vand.u32 %v788, 4294901760
        %3372 = vmatpush1.msra.mxu0 %v3371
        %3373 = vmatprep.subr.mxu0 0.0
        %v3374 = vand.u32 %v789, 4294901760
        %3375 = vmatpush1.msra.mxu0 %v3374
        %3376 = vmatprep.subr.mxu0 0.0
        %v3377 = vand.u32 %v790, 4294901760
        %3378 = vmatpush1.msra.mxu0 %v3377
        %3379 = vmatprep.subr.mxu0 0.0
        %v3380 = vand.u32 %v791, 4294901760
        %3381 = vmatpush1.msra.mxu0 %v3380
        %3382 = vmatprep.subr.mxu0 0.0
        %v3383 = vand.u32 %v792, 4294901760
        %3384 = vmatpush1.msra.mxu0 %v3383
        %3385 = vmatprep.subr.mxu0 0.0
        %v3386 = vand.u32 %v793, 4294901760
        %3387 = vmatpush1.msra.mxu0 %v3386
        %3388 = vmatprep.subr.mxu0 0.0
        %v3389 = vand.u32 %v794, 4294901760
        %3390 = vmatpush1.msra.mxu0 %v3389
        %3391 = vmatprep.subr.mxu0 0.0
        %v3392 = vand.u32 %v795, 4294901760
        %3393 = vmatpush1.msra.mxu0 %v3392
        %3394 = vmatprep.subr.mxu0 0.0
        %v3395 = vand.u32 %v796, 4294901760
        %3396 = vmatpush1.msra.mxu0 %v3395
        %3397 = vmatprep.subr.mxu0 0.0
        %v3398 = vand.u32 %v797, 4294901760
        %3399 = vmatpush1.msra.mxu0 %v3398
        %3400 = vmatprep.subr.mxu0 0.0
        %v3401 = vand.u32 %v798, 4294901760
        %3402 = vmatpush1.msra.mxu0 %v3401
        %v3403 = vand.u32 %v660, 4294901760
        %v3404 = vsub.f32 %v660, %v3403
        %v3405 = vand.u32 %v3404, 4294901760
        %v3406 = vsub.f32 %v3404, %v3405
        %v3407 = vand.u32 %v3406, 4294901760
        %3408 = vmatprep.mubr.f32.mxu0 %v3407
        %v3409 = vand.u32 %v659, 4294901760
        %v3410 = vsub.f32 %v659, %v3409
        %v3411 = vand.u32 %v3410, 4294901760
        %v3412 = vsub.f32 %v3410, %v3411
        %v3413 = vand.u32 %v3412, 4294901760
        %3414 = vmatmul.mubr.f32.gmra.mrb[0].mxu0 %v3413
        %v3415 = vpop.f32.mrb[0].mxu0
        %v3416 = vadd.f32 %v3255, %v3415
        %v3417 = vpop.f32.mrb[0].mxu0
        %v3418 = vand.u32 %v666, 4294901760
        %v3419 = vsub.f32 %v666, %v3418
        %v3420 = vand.u32 %v3419, 4294901760
        %v3421 = vsub.f32 %v3419, %v3420
        %v3422 = vand.u32 %v3421, 4294901760
        %3423 = vmatprep.mubr.f32.mxu0 %v3422
        %v3424 = vand.u32 %v665, 4294901760
        %v3425 = vsub.f32 %v665, %v3424
        %v3426 = vand.u32 %v3425, 4294901760
        %v3427 = vsub.f32 %v3425, %v3426
        %v3428 = vand.u32 %v3427, 4294901760
        %3429 = vmatmul.mubr.f32.gmra.mrb[0].mxu0 %v3428
        %v3430 = vpop.f32.mrb[0].mxu0
        %v3431 = vadd.f32 %v3262, %v3430
        %v3432 = vpop.f32.mrb[0].mxu0
        %v3433 = vand.u32 %v672, 4294901760
        %v3434 = vsub.f32 %v672, %v3433
        %v3435 = vand.u32 %v3434, 4294901760
        %v3436 = vsub.f32 %v3434, %v3435
        %v3437 = vand.u32 %v3436, 4294901760
        %3438 = vmatprep.mubr.f32.mxu0 %v3437
        %v3439 = vand.u32 %v671, 4294901760
        %v3440 = vsub.f32 %v671, %v3439
        %v3441 = vand.u32 %v3440, 4294901760
        %v3442 = vsub.f32 %v3440, %v3441
        %v3443 = vand.u32 %v3442, 4294901760
        %3444 = vmatmul.mubr.f32.gmra.mrb[0].mxu0 %v3443
        %v3445 = vpop.f32.mrb[0].mxu0
        %v3446 = vadd.f32 %v3269, %v3445
        %v3447 = vpop.f32.mrb[0].mxu0
        %v3448 = vand.u32 %v678, 4294901760
        %v3449 = vsub.f32 %v678, %v3448
        %v3450 = vand.u32 %v3449, 4294901760
        %v3451 = vsub.f32 %v3449, %v3450
        %v3452 = vand.u32 %v3451, 4294901760
        %3453 = vmatprep.mubr.f32.mxu0 %v3452
        %v3454 = vand.u32 %v677, 4294901760
        %v3455 = vsub.f32 %v677, %v3454
        %v3456 = vand.u32 %v3455, 4294901760
        %v3457 = vsub.f32 %v3455, %v3456
        %v3458 = vand.u32 %v3457, 4294901760
        %3459 = vmatmul.mubr.f32.gmra.mrb[0].mxu0 %v3458
        %v3460 = vpop.f32.mrb[0].mxu0
        %v3461 = vadd.f32 %v3276, %v3460
        %v3462 = vpop.f32.mrb[0].mxu0
        %v3463 = vand.u32 %v684, 4294901760
        %v3464 = vsub.f32 %v684, %v3463
        %v3465 = vand.u32 %v3464, 4294901760
        %v3466 = vsub.f32 %v3464, %v3465
        %v3467 = vand.u32 %v3466, 4294901760
        %3468 = vmatprep.mubr.f32.mxu0 %v3467
        %v3469 = vand.u32 %v683, 4294901760
        %v3470 = vsub.f32 %v683, %v3469
        %v3471 = vand.u32 %v3470, 4294901760
        %v3472 = vsub.f32 %v3470, %v3471
        %v3473 = vand.u32 %v3472, 4294901760
        %3474 = vmatmul.mubr.f32.gmra.mrb[0].mxu0 %v3473
        %v3475 = vpop.f32.mrb[0].mxu0
        %v3476 = vadd.f32 %v3283, %v3475
        %v3477 = vpop.f32.mrb[0].mxu0
        %v3478 = vand.u32 %v690, 4294901760
        %v3479 = vsub.f32 %v690, %v3478
        %v3480 = vand.u32 %v3479, 4294901760
        %v3481 = vsub.f32 %v3479, %v3480
        %v3482 = vand.u32 %v3481, 4294901760
        %3483 = vmatprep.mubr.f32.mxu0 %v3482
        %v3484 = vand.u32 %v689, 4294901760
        %v3485 = vsub.f32 %v689, %v3484
        %v3486 = vand.u32 %v3485, 4294901760
        %v3487 = vsub.f32 %v3485, %v3486
        %v3488 = vand.u32 %v3487, 4294901760
        %3489 = vmatmul.mubr.f32.gmra.mrb[0].mxu0 %v3488
        %v3490 = vpop.f32.mrb[0].mxu0
        %v3491 = vadd.f32 %v3290, %v3490
        %v3492 = vpop.f32.mrb[0].mxu0
        %v3493 = vand.u32 %v696, 4294901760
        %v3494 = vsub.f32 %v696, %v3493
        %v3495 = vand.u32 %v3494, 4294901760
        %v3496 = vsub.f32 %v3494, %v3495
        %v3497 = vand.u32 %v3496, 4294901760
        %3498 = vmatprep.mubr.f32.mxu0 %v3497
        %v3499 = vand.u32 %v695, 4294901760
        %v3500 = vsub.f32 %v695, %v3499
        %v3501 = vand.u32 %v3500, 4294901760
        %v3502 = vsub.f32 %v3500, %v3501
        %v3503 = vand.u32 %v3502, 4294901760
        %3504 = vmatmul.mubr.f32.gmra.mrb[0].mxu0 %v3503
        %v3505 = vpop.f32.mrb[0].mxu0
        %v3506 = vadd.f32 %v3297, %v3505
        %v3507 = vpop.f32.mrb[0].mxu0
        %v3508 = vand.u32 %v702, 4294901760
        %v3509 = vsub.f32 %v702, %v3508
        %v3510 = vand.u32 %v3509, 4294901760
        %v3511 = vsub.f32 %v3509, %v3510
        %v3512 = vand.u32 %v3511, 4294901760
        %3513 = vmatprep.mubr.f32.mxu0 %v3512
        %v3514 = vand.u32 %v701, 4294901760
        %v3515 = vsub.f32 %v701, %v3514
        %v3516 = vand.u32 %v3515, 4294901760
        %v3517 = vsub.f32 %v3515, %v3516
        %v3518 = vand.u32 %v3517, 4294901760
        %3519 = vmatmul.mubr.f32.gmra.mrb[0].mxu0 %v3518
        %v3520 = vpop.f32.mrb[0].mxu0
        %v3521 = vadd.f32 %v3304, %v3520
        %v3522 = vpop.f32.mrb[0].mxu0
        %3523 = vdwg.mxu0
        %3524 = vmatprep.subr.mxu0 0.0
        %v3525 = vand.u32 %v767, 4294901760
        %v3526 = vsub.f32 %v767, %v3525
        %v3527 = vand.u32 %v3526, 4294901760
        %v3528 = vsub.f32 %v3526, %v3527
        %v3529 = vand.u32 %v3528, 4294901760
        %3530 = vmatpush1.msra.mxu0 %v3529
        %3531 = vmatprep.subr.mxu0 0.0
        %v3532 = vand.u32 %v768, 4294901760
        %v3533 = vsub.f32 %v768, %v3532
        %v3534 = vand.u32 %v3533, 4294901760
        %v3535 = vsub.f32 %v3533, %v3534
        %v3536 = vand.u32 %v3535, 4294901760
        %3537 = vmatpush1.msra.mxu0 %v3536
        %3538 = vmatprep.subr.mxu0 0.0
        %v3539 = vand.u32 %v769, 4294901760
        %v3540 = vsub.f32 %v769, %v3539
        %v3541 = vand.u32 %v3540, 4294901760
        %v3542 = vsub.f32 %v3540, %v3541
        %v3543 = vand.u32 %v3542, 4294901760
        %3544 = vmatpush1.msra.mxu0 %v3543
        %3545 = vmatprep.subr.mxu0 0.0
        %v3546 = vand.u32 %v770, 4294901760
        %v3547 = vsub.f32 %v770, %v3546
        %v3548 = vand.u32 %v3547, 4294901760
        %v3549 = vsub.f32 %v3547, %v3548
        %v3550 = vand.u32 %v3549, 4294901760
        %3551 = vmatpush1.msra.mxu0 %v3550
        %3552 = vmatprep.subr.mxu0 0.0
        %v3553 = vand.u32 %v771, 4294901760
        %v3554 = vsub.f32 %v771, %v3553
        %v3555 = vand.u32 %v3554, 4294901760
        %v3556 = vsub.f32 %v3554, %v3555
        %v3557 = vand.u32 %v3556, 4294901760
        %3558 = vmatpush1.msra.mxu0 %v3557
        %3559 = vmatprep.subr.mxu0 0.0
        %v3560 = vand.u32 %v772, 4294901760
        %v3561 = vsub.f32 %v772, %v3560
        %v3562 = vand.u32 %v3561, 4294901760
        %v3563 = vsub.f32 %v3561, %v3562
        %v3564 = vand.u32 %v3563, 4294901760
        %3565 = vmatpush1.msra.mxu0 %v3564
        %3566 = vmatprep.subr.mxu0 0.0
        %v3567 = vand.u32 %v773, 4294901760
        %v3568 = vsub.f32 %v773, %v3567
        %v3569 = vand.u32 %v3568, 4294901760
        %v3570 = vsub.f32 %v3568, %v3569
        %v3571 = vand.u32 %v3570, 4294901760
        %3572 = vmatpush1.msra.mxu0 %v3571
        %3573 = vmatprep.subr.mxu0 0.0
        %v3574 = vand.u32 %v774, 4294901760
        %v3575 = vsub.f32 %v774, %v3574
        %v3576 = vand.u32 %v3575, 4294901760
        %v3577 = vsub.f32 %v3575, %v3576
        %v3578 = vand.u32 %v3577, 4294901760
        %3579 = vmatpush1.msra.mxu0 %v3578
        %3580 = vmatprep.subr.mxu0 0.0
        %v3581 = vand.u32 %v775, 4294901760
        %v3582 = vsub.f32 %v775, %v3581
        %v3583 = vand.u32 %v3582, 4294901760
        %v3584 = vsub.f32 %v3582, %v3583
        %v3585 = vand.u32 %v3584, 4294901760
        %3586 = vmatpush1.msra.mxu0 %v3585
        %3587 = vmatprep.subr.mxu0 0.0
        %v3588 = vand.u32 %v776, 4294901760
        %v3589 = vsub.f32 %v776, %v3588
        %v3590 = vand.u32 %v3589, 4294901760
        %v3591 = vsub.f32 %v3589, %v3590
        %v3592 = vand.u32 %v3591, 4294901760
        %3593 = vmatpush1.msra.mxu0 %v3592
        %3594 = vmatprep.subr.mxu0 0.0
        %v3595 = vand.u32 %v777, 4294901760
        %v3596 = vsub.f32 %v777, %v3595
        %v3597 = vand.u32 %v3596, 4294901760
        %v3598 = vsub.f32 %v3596, %v3597
        %v3599 = vand.u32 %v3598, 4294901760
        %3600 = vmatpush1.msra.mxu0 %v3599
        %3601 = vmatprep.subr.mxu0 0.0
        %v3602 = vand.u32 %v778, 4294901760
        %v3603 = vsub.f32 %v778, %v3602
        %v3604 = vand.u32 %v3603, 4294901760
        %v3605 = vsub.f32 %v3603, %v3604
        %v3606 = vand.u32 %v3605, 4294901760
        %3607 = vmatpush1.msra.mxu0 %v3606
        %3608 = vmatprep.subr.mxu0 0.0
        %v3609 = vand.u32 %v779, 4294901760
        %v3610 = vsub.f32 %v779, %v3609
        %v3611 = vand.u32 %v3610, 4294901760
        %v3612 = vsub.f32 %v3610, %v3611
        %v3613 = vand.u32 %v3612, 4294901760
        %3614 = vmatpush1.msra.mxu0 %v3613
        %3615 = vmatprep.subr.mxu0 0.0
        %v3616 = vand.u32 %v780, 4294901760
        %v3617 = vsub.f32 %v780, %v3616
        %v3618 = vand.u32 %v3617, 4294901760
        %v3619 = vsub.f32 %v3617, %v3618
        %v3620 = vand.u32 %v3619, 4294901760
        %3621 = vmatpush1.msra.mxu0 %v3620
        %3622 = vmatprep.subr.mxu0 0.0
        %v3623 = vand.u32 %v781, 4294901760
        %v3624 = vsub.f32 %v781, %v3623
        %v3625 = vand.u32 %v3624, 4294901760
        %v3626 = vsub.f32 %v3624, %v3625
        %v3627 = vand.u32 %v3626, 4294901760
        %3628 = vmatpush1.msra.mxu0 %v3627
        %3629 = vmatprep.subr.mxu0 0.0
        %v3630 = vand.u32 %v782, 4294901760
        %v3631 = vsub.f32 %v782, %v3630
        %v3632 = vand.u32 %v3631, 4294901760
        %v3633 = vsub.f32 %v3631, %v3632
        %v3634 = vand.u32 %v3633, 4294901760
        %3635 = vmatpush1.msra.mxu0 %v3634
        %3636 = vmatprep.subr.mxu0 0.0
        %v3637 = vand.u32 %v783, 4294901760
        %v3638 = vsub.f32 %v783, %v3637
        %v3639 = vand.u32 %v3638, 4294901760
        %v3640 = vsub.f32 %v3638, %v3639
        %v3641 = vand.u32 %v3640, 4294901760
        %3642 = vmatpush1.msra.mxu0 %v3641
        %3643 = vmatprep.subr.mxu0 0.0
        %v3644 = vand.u32 %v784, 4294901760
        %v3645 = vsub.f32 %v784, %v3644
        %v3646 = vand.u32 %v3645, 4294901760
        %v3647 = vsub.f32 %v3645, %v3646
        %v3648 = vand.u32 %v3647, 4294901760
        %3649 = vmatpush1.msra.mxu0 %v3648
        %3650 = vmatprep.subr.mxu0 0.0
        %v3651 = vand.u32 %v785, 4294901760
        %v3652 = vsub.f32 %v785, %v3651
        %v3653 = vand.u32 %v3652, 4294901760
        %v3654 = vsub.f32 %v3652, %v3653
        %v3655 = vand.u32 %v3654, 4294901760
        %3656 = vmatpush1.msra.mxu0 %v3655
        %3657 = vmatprep.subr.mxu0 0.0
        %v3658 = vand.u32 %v786, 4294901760
        %v3659 = vsub.f32 %v786, %v3658
        %v3660 = vand.u32 %v3659, 4294901760
        %v3661 = vsub.f32 %v3659, %v3660
        %v3662 = vand.u32 %v3661, 4294901760
        %3663 = vmatpush1.msra.mxu0 %v3662
        %3664 = vmatprep.subr.mxu0 0.0
        %v3665 = vand.u32 %v787, 4294901760
        %v3666 = vsub.f32 %v787, %v3665
        %v3667 = vand.u32 %v3666, 4294901760
        %v3668 = vsub.f32 %v3666, %v3667
        %v3669 = vand.u32 %v3668, 4294901760
        %3670 = vmatpush1.msra.mxu0 %v3669
        %3671 = vmatprep.subr.mxu0 0.0
        %v3672 = vand.u32 %v788, 4294901760
        %v3673 = vsub.f32 %v788, %v3672
        %v3674 = vand.u32 %v3673, 4294901760
        %v3675 = vsub.f32 %v3673, %v3674
        %v3676 = vand.u32 %v3675, 4294901760
        %3677 = vmatpush1.msra.mxu0 %v3676
        %3678 = vmatprep.subr.mxu0 0.0
        %v3679 = vand.u32 %v789, 4294901760
        %v3680 = vsub.f32 %v789, %v3679
        %v3681 = vand.u32 %v3680, 4294901760
        %v3682 = vsub.f32 %v3680, %v3681
        %v3683 = vand.u32 %v3682, 4294901760
        %3684 = vmatpush1.msra.mxu0 %v3683
        %3685 = vmatprep.subr.mxu0 0.0
        %v3686 = vand.u32 %v790, 4294901760
        %v3687 = vsub.f32 %v790, %v3686
        %v3688 = vand.u32 %v3687, 4294901760
        %v3689 = vsub.f32 %v3687, %v3688
        %v3690 = vand.u32 %v3689, 4294901760
        %3691 = vmatpush1.msra.mxu0 %v3690
        %3692 = vmatprep.subr.mxu0 0.0
        %v3693 = vand.u32 %v791, 4294901760
        %v3694 = vsub.f32 %v791, %v3693
        %v3695 = vand.u32 %v3694, 4294901760
        %v3696 = vsub.f32 %v3694, %v3695
        %v3697 = vand.u32 %v3696, 4294901760
        %3698 = vmatpush1.msra.mxu0 %v3697
        %3699 = vmatprep.subr.mxu0 0.0
        %v3700 = vand.u32 %v792, 4294901760
        %v3701 = vsub.f32 %v792, %v3700
        %v3702 = vand.u32 %v3701, 4294901760
        %v3703 = vsub.f32 %v3701, %v3702
        %v3704 = vand.u32 %v3703, 4294901760
        %3705 = vmatpush1.msra.mxu0 %v3704
        %3706 = vmatprep.subr.mxu0 0.0
        %v3707 = vand.u32 %v793, 4294901760
        %v3708 = vsub.f32 %v793, %v3707
        %v3709 = vand.u32 %v3708, 4294901760
        %v3710 = vsub.f32 %v3708, %v3709
        %v3711 = vand.u32 %v3710, 4294901760
        %3712 = vmatpush1.msra.mxu0 %v3711
        %3713 = vmatprep.subr.mxu0 0.0
        %v3714 = vand.u32 %v794, 4294901760
        %v3715 = vsub.f32 %v794, %v3714
        %v3716 = vand.u32 %v3715, 4294901760
        %v3717 = vsub.f32 %v3715, %v3716
        %v3718 = vand.u32 %v3717, 4294901760
        %3719 = vmatpush1.msra.mxu0 %v3718
        %3720 = vmatprep.subr.mxu0 0.0
        %v3721 = vand.u32 %v795, 4294901760
        %v3722 = vsub.f32 %v795, %v3721
        %v3723 = vand.u32 %v3722, 4294901760
        %v3724 = vsub.f32 %v3722, %v3723
        %v3725 = vand.u32 %v3724, 4294901760
        %3726 = vmatpush1.msra.mxu0 %v3725
        %3727 = vmatprep.subr.mxu0 0.0
        %v3728 = vand.u32 %v796, 4294901760
        %v3729 = vsub.f32 %v796, %v3728
        %v3730 = vand.u32 %v3729, 4294901760
        %v3731 = vsub.f32 %v3729, %v3730
        %v3732 = vand.u32 %v3731, 4294901760
        %3733 = vmatpush1.msra.mxu0 %v3732
        %3734 = vmatprep.subr.mxu0 0.0
        %v3735 = vand.u32 %v797, 4294901760
        %v3736 = vsub.f32 %v797, %v3735
        %v3737 = vand.u32 %v3736, 4294901760
        %v3738 = vsub.f32 %v3736, %v3737
        %v3739 = vand.u32 %v3738, 4294901760
        %3740 = vmatpush1.msra.mxu0 %v3739
        %3741 = vmatprep.subr.mxu0 0.0
        %v3742 = vand.u32 %v798, 4294901760
        %v3743 = vsub.f32 %v798, %v3742
        %v3744 = vand.u32 %v3743, 4294901760
        %v3745 = vsub.f32 %v3743, %v3744
        %v3746 = vand.u32 %v3745, 4294901760
        %3747 = vmatpush1.msra.mxu0 %v3746
        %v3748 = vand.u32 %v660, 4294901760
        %3749 = vmatprep.mubr.f32.mxu0 %v3748
        %v3750 = vand.u32 %v659, 4294901760
        %3751 = vmatmul.mubr.f32.gmra.mrb[0].mxu0 %v3750
        %v3752 = vpop.f32.mrb[0].mxu0
        %v3753 = vadd.f32 %v3416, %v3752
        %v3754 = vpop.f32.mrb[0].mxu0
        %v3755 = vand.u32 %v666, 4294901760
        %3756 = vmatprep.mubr.f32.mxu0 %v3755
        %v3757 = vand.u32 %v665, 4294901760
        %3758 = vmatmul.mubr.f32.gmra.mrb[0].mxu0 %v3757
        %v3759 = vpop.f32.mrb[0].mxu0
        %v3760 = vadd.f32 %v3431, %v3759
        %v3761 = vpop.f32.mrb[0].mxu0
        %v3762 = vand.u32 %v672, 4294901760
        %3763 = vmatprep.mubr.f32.mxu0 %v3762
        %v3764 = vand.u32 %v671, 4294901760
        %3765 = vmatmul.mubr.f32.gmra.mrb[0].mxu0 %v3764
        %v3766 = vpop.f32.mrb[0].mxu0
        %v3767 = vadd.f32 %v3446, %v3766
        %v3768 = vpop.f32.mrb[0].mxu0
        %v3769 = vand.u32 %v678, 4294901760
        %3770 = vmatprep.mubr.f32.mxu0 %v3769
        %v3771 = vand.u32 %v677, 4294901760
        %3772 = vmatmul.mubr.f32.gmra.mrb[0].mxu0 %v3771
        %v3773 = vpop.f32.mrb[0].mxu0
        %v3774 = vadd.f32 %v3461, %v3773
        %v3775 = vpop.f32.mrb[0].mxu0
        %v3776 = vand.u32 %v684, 4294901760
        %3777 = vmatprep.mubr.f32.mxu0 %v3776
        %v3778 = vand.u32 %v683, 4294901760
        %3779 = vmatmul.mubr.f32.gmra.mrb[0].mxu0 %v3778
        %v3780 = vpop.f32.mrb[0].mxu0
        %v3781 = vadd.f32 %v3476, %v3780
        %v3782 = vpop.f32.mrb[0].mxu0
        %v3783 = vand.u32 %v690, 4294901760
        %3784 = vmatprep.mubr.f32.mxu0 %v3783
        %v3785 = vand.u32 %v689, 4294901760
        %3786 = vmatmul.mubr.f32.gmra.mrb[0].mxu0 %v3785
        %v3787 = vpop.f32.mrb[0].mxu0
        %v3788 = vadd.f32 %v3491, %v3787
        %v3789 = vpop.f32.mrb[0].mxu0
        %v3790 = vand.u32 %v696, 4294901760
        %3791 = vmatprep.mubr.f32.mxu0 %v3790
        %v3792 = vand.u32 %v695, 4294901760
        %3793 = vmatmul.mubr.f32.gmra.mrb[0].mxu0 %v3792
        %v3794 = vpop.f32.mrb[0].mxu0
        %v3795 = vadd.f32 %v3506, %v3794
        %v3796 = vpop.f32.mrb[0].mxu0
        %v3797 = vand.u32 %v702, 4294901760
        %3798 = vmatprep.mubr.f32.mxu0 %v3797
        %v3799 = vand.u32 %v701, 4294901760
        %3800 = vmatmul.mubr.f32.gmra.mrb[0].mxu0 %v3799
        %v3801 = vpop.f32.mrb[0].mxu0
        %v3802 = vadd.f32 %v3521, %v3801
        %v3803 = vpop.f32.mrb[0].mxu0
        %3804 = vdwg.mxu0
        %3805 = vmatprep.subr.mxu0 0.0
        %v3806 = vand.u32 %v767, 4294901760
        %v3807 = vsub.f32 %v767, %v3806
        %3808 = vmatpush1.msra.mxu0 %v3807
        %3809 = vmatprep.subr.mxu0 0.0
        %v3810 = vand.u32 %v768, 4294901760
        %v3811 = vsub.f32 %v768, %v3810
        %3812 = vmatpush1.msra.mxu0 %v3811
        %3813 = vmatprep.subr.mxu0 0.0
        %v3814 = vand.u32 %v769, 4294901760
        %v3815 = vsub.f32 %v769, %v3814
        %3816 = vmatpush1.msra.mxu0 %v3815
        %3817 = vmatprep.subr.mxu0 0.0
        %v3818 = vand.u32 %v770, 4294901760
        %v3819 = vsub.f32 %v770, %v3818
        %3820 = vmatpush1.msra.mxu0 %v3819
        %3821 = vmatprep.subr.mxu0 0.0
        %v3822 = vand.u32 %v771, 4294901760
        %v3823 = vsub.f32 %v771, %v3822
        %3824 = vmatpush1.msra.mxu0 %v3823
        %3825 = vmatprep.subr.mxu0 0.0
        %v3826 = vand.u32 %v772, 4294901760
        %v3827 = vsub.f32 %v772, %v3826
        %3828 = vmatpush1.msra.mxu0 %v3827
        %3829 = vmatprep.subr.mxu0 0.0
        %v3830 = vand.u32 %v773, 4294901760
        %v3831 = vsub.f32 %v773, %v3830
        %3832 = vmatpush1.msra.mxu0 %v3831
        %3833 = vmatprep.subr.mxu0 0.0
        %v3834 = vand.u32 %v774, 4294901760
        %v3835 = vsub.f32 %v774, %v3834
        %3836 = vmatpush1.msra.mxu0 %v3835
        %3837 = vmatprep.subr.mxu0 0.0
        %v3838 = vand.u32 %v775, 4294901760
        %v3839 = vsub.f32 %v775, %v3838
        %3840 = vmatpush1.msra.mxu0 %v3839
        %3841 = vmatprep.subr.mxu0 0.0
        %v3842 = vand.u32 %v776, 4294901760
        %v3843 = vsub.f32 %v776, %v3842
        %3844 = vmatpush1.msra.mxu0 %v3843
        %3845 = vmatprep.subr.mxu0 0.0
        %v3846 = vand.u32 %v777, 4294901760
        %v3847 = vsub.f32 %v777, %v3846
        %3848 = vmatpush1.msra.mxu0 %v3847
        %3849 = vmatprep.subr.mxu0 0.0
        %v3850 = vand.u32 %v778, 4294901760
        %v3851 = vsub.f32 %v778, %v3850
        %3852 = vmatpush1.msra.mxu0 %v3851
        %3853 = vmatprep.subr.mxu0 0.0
        %v3854 = vand.u32 %v779, 4294901760
        %v3855 = vsub.f32 %v779, %v3854
        %3856 = vmatpush1.msra.mxu0 %v3855
        %3857 = vmatprep.subr.mxu0 0.0
        %v3858 = vand.u32 %v780, 4294901760
        %v3859 = vsub.f32 %v780, %v3858
        %3860 = vmatpush1.msra.mxu0 %v3859
        %3861 = vmatprep.subr.mxu0 0.0
        %v3862 = vand.u32 %v781, 4294901760
        %v3863 = vsub.f32 %v781, %v3862
        %3864 = vmatpush1.msra.mxu0 %v3863
        %3865 = vmatprep.subr.mxu0 0.0
        %v3866 = vand.u32 %v782, 4294901760
        %v3867 = vsub.f32 %v782, %v3866
        %3868 = vmatpush1.msra.mxu0 %v3867
        %3869 = vmatprep.subr.mxu0 0.0
        %v3870 = vand.u32 %v783, 4294901760
        %v3871 = vsub.f32 %v783, %v3870
        %3872 = vmatpush1.msra.mxu0 %v3871
        %3873 = vmatprep.subr.mxu0 0.0
        %v3874 = vand.u32 %v784, 4294901760
        %v3875 = vsub.f32 %v784, %v3874
        %3876 = vmatpush1.msra.mxu0 %v3875
        %3877 = vmatprep.subr.mxu0 0.0
        %v3878 = vand.u32 %v785, 4294901760
        %v3879 = vsub.f32 %v785, %v3878
        %3880 = vmatpush1.msra.mxu0 %v3879
        %3881 = vmatprep.subr.mxu0 0.0
        %v3882 = vand.u32 %v786, 4294901760
        %v3883 = vsub.f32 %v786, %v3882
        %3884 = vmatpush1.msra.mxu0 %v3883
        %3885 = vmatprep.subr.mxu0 0.0
        %v3886 = vand.u32 %v787, 4294901760
        %v3887 = vsub.f32 %v787, %v3886
        %3888 = vmatpush1.msra.mxu0 %v3887
        %3889 = vmatprep.subr.mxu0 0.0
        %v3890 = vand.u32 %v788, 4294901760
        %v3891 = vsub.f32 %v788, %v3890
        %3892 = vmatpush1.msra.mxu0 %v3891
        %3893 = vmatprep.subr.mxu0 0.0
        %v3894 = vand.u32 %v789, 4294901760
        %v3895 = vsub.f32 %v789, %v3894
        %3896 = vmatpush1.msra.mxu0 %v3895
        %3897 = vmatprep.subr.mxu0 0.0
        %v3898 = vand.u32 %v790, 4294901760
        %v3899 = vsub.f32 %v790, %v3898
        %3900 = vmatpush1.msra.mxu0 %v3899
        %3901 = vmatprep.subr.mxu0 0.0
        %v3902 = vand.u32 %v791, 4294901760
        %v3903 = vsub.f32 %v791, %v3902
        %3904 = vmatpush1.msra.mxu0 %v3903
        %3905 = vmatprep.subr.mxu0 0.0
        %v3906 = vand.u32 %v792, 4294901760
        %v3907 = vsub.f32 %v792, %v3906
        %3908 = vmatpush1.msra.mxu0 %v3907
        %3909 = vmatprep.subr.mxu0 0.0
        %v3910 = vand.u32 %v793, 4294901760
        %v3911 = vsub.f32 %v793, %v3910
        %3912 = vmatpush1.msra.mxu0 %v3911
        %3913 = vmatprep.subr.mxu0 0.0
        %v3914 = vand.u32 %v794, 4294901760
        %v3915 = vsub.f32 %v794, %v3914
        %3916 = vmatpush1.msra.mxu0 %v3915
        %3917 = vmatprep.subr.mxu0 0.0
        %v3918 = vand.u32 %v795, 4294901760
        %v3919 = vsub.f32 %v795, %v3918
        %3920 = vmatpush1.msra.mxu0 %v3919
        %3921 = vmatprep.subr.mxu0 0.0
        %v3922 = vand.u32 %v796, 4294901760
        %v3923 = vsub.f32 %v796, %v3922
        %3924 = vmatpush1.msra.mxu0 %v3923
        %3925 = vmatprep.subr.mxu0 0.0
        %v3926 = vand.u32 %v797, 4294901760
        %v3927 = vsub.f32 %v797, %v3926
        %3928 = vmatpush1.msra.mxu0 %v3927
        %3929 = vmatprep.subr.mxu0 0.0
        %v3930 = vand.u32 %v798, 4294901760
        %v3931 = vsub.f32 %v798, %v3930
        %3932 = vmatpush1.msra.mxu0 %v3931
        %v3933 = vand.u32 %v660, 4294901760
        %v3934 = vsub.f32 %v660, %v3933
        %3935 = vmatprep.mubr.f32.mxu0 %v3934
        %v3936 = vand.u32 %v659, 4294901760
        %v3937 = vsub.f32 %v659, %v3936
        %3938 = vmatmul.mubr.f32.gmra.mrb[0].mxu0 %v3937
        %v3939 = vpop.f32.mrb[0].mxu0
        %v3940 = vadd.f32 %v3753, %v3939
        %v3941 = vpop.f32.mrb[0].mxu0
        %v3942 = vand.u32 %v666, 4294901760
        %v3943 = vsub.f32 %v666, %v3942
        %3944 = vmatprep.mubr.f32.mxu0 %v3943
        %v3945 = vand.u32 %v665, 4294901760
        %v3946 = vsub.f32 %v665, %v3945
        %3947 = vmatmul.mubr.f32.gmra.mrb[0].mxu0 %v3946
        %v3948 = vpop.f32.mrb[0].mxu0
        %v3949 = vadd.f32 %v3760, %v3948
        %v3950 = vpop.f32.mrb[0].mxu0
        %v3951 = vand.u32 %v672, 4294901760
        %v3952 = vsub.f32 %v672, %v3951
        %3953 = vmatprep.mubr.f32.mxu0 %v3952
        %v3954 = vand.u32 %v671, 4294901760
        %v3955 = vsub.f32 %v671, %v3954
        %3956 = vmatmul.mubr.f32.gmra.mrb[0].mxu0 %v3955
        %v3957 = vpop.f32.mrb[0].mxu0
        %v3958 = vadd.f32 %v3767, %v3957
        %v3959 = vpop.f32.mrb[0].mxu0
        %v3960 = vand.u32 %v678, 4294901760
        %v3961 = vsub.f32 %v678, %v3960
        %3962 = vmatprep.mubr.f32.mxu0 %v3961
        %v3963 = vand.u32 %v677, 4294901760
        %v3964 = vsub.f32 %v677, %v3963
        %3965 = vmatmul.mubr.f32.gmra.mrb[0].mxu0 %v3964
        %v3966 = vpop.f32.mrb[0].mxu0
        %v3967 = vadd.f32 %v3774, %v3966
        %v3968 = vpop.f32.mrb[0].mxu0
        %v3969 = vand.u32 %v684, 4294901760
        %v3970 = vsub.f32 %v684, %v3969
        %3971 = vmatprep.mubr.f32.mxu0 %v3970
        %v3972 = vand.u32 %v683, 4294901760
        %v3973 = vsub.f32 %v683, %v3972
        %3974 = vmatmul.mubr.f32.gmra.mrb[0].mxu0 %v3973
        %v3975 = vpop.f32.mrb[0].mxu0
        %v3976 = vadd.f32 %v3781, %v3975
        %v3977 = vpop.f32.mrb[0].mxu0
        %v3978 = vand.u32 %v690, 4294901760
        %v3979 = vsub.f32 %v690, %v3978
        %3980 = vmatprep.mubr.f32.mxu0 %v3979
        %v3981 = vand.u32 %v689, 4294901760
        %v3982 = vsub.f32 %v689, %v3981
        %3983 = vmatmul.mubr.f32.gmra.mrb[0].mxu0 %v3982
        %v3984 = vpop.f32.mrb[0].mxu0
        %v3985 = vadd.f32 %v3788, %v3984
        %v3986 = vpop.f32.mrb[0].mxu0
        %v3987 = vand.u32 %v696, 4294901760
        %v3988 = vsub.f32 %v696, %v3987
        %3989 = vmatprep.mubr.f32.mxu0 %v3988
        %v3990 = vand.u32 %v695, 4294901760
        %v3991 = vsub.f32 %v695, %v3990
        %3992 = vmatmul.mubr.f32.gmra.mrb[0].mxu0 %v3991
        %v3993 = vpop.f32.mrb[0].mxu0
        %v3994 = vadd.f32 %v3795, %v3993
        %v3995 = vpop.f32.mrb[0].mxu0
        %v3996 = vand.u32 %v702, 4294901760
        %v3997 = vsub.f32 %v702, %v3996
        %3998 = vmatprep.mubr.f32.mxu0 %v3997
        %v3999 = vand.u32 %v701, 4294901760
        %v4000 = vsub.f32 %v701, %v3999
        %4001 = vmatmul.mubr.f32.gmra.mrb[0].mxu0 %v4000
        %v4002 = vpop.f32.mrb[0].mxu0
        %v4003 = vadd.f32 %v3802, %v4002
        %v4004 = vpop.f32.mrb[0].mxu0
        %4005 = vdwg.mxu0
        %4006 = vmatprep.subr.mxu0 0.0
        %v4007 = vand.u32 %v767, 4294901760
        %4008 = vmatpush1.msra.mxu0 %v4007
        %4009 = vmatprep.subr.mxu0 0.0
        %v4010 = vand.u32 %v768, 4294901760
        %4011 = vmatpush1.msra.mxu0 %v4010
        %4012 = vmatprep.subr.mxu0 0.0
        %v4013 = vand.u32 %v769, 4294901760
        %4014 = vmatpush1.msra.mxu0 %v4013
        %4015 = vmatprep.subr.mxu0 0.0
        %v4016 = vand.u32 %v770, 4294901760
        %4017 = vmatpush1.msra.mxu0 %v4016
        %4018 = vmatprep.subr.mxu0 0.0
        %v4019 = vand.u32 %v771, 4294901760
        %4020 = vmatpush1.msra.mxu0 %v4019
        %4021 = vmatprep.subr.mxu0 0.0
        %v4022 = vand.u32 %v772, 4294901760
        %4023 = vmatpush1.msra.mxu0 %v4022
        %4024 = vmatprep.subr.mxu0 0.0
        %v4025 = vand.u32 %v773, 4294901760
        %4026 = vmatpush1.msra.mxu0 %v4025
        %4027 = vmatprep.subr.mxu0 0.0
        %v4028 = vand.u32 %v774, 4294901760
        %4029 = vmatpush1.msra.mxu0 %v4028
        %4030 = vmatprep.subr.mxu0 0.0
        %v4031 = vand.u32 %v775, 4294901760
        %4032 = vmatpush1.msra.mxu0 %v4031
        %4033 = vmatprep.subr.mxu0 0.0
        %v4034 = vand.u32 %v776, 4294901760
        %4035 = vmatpush1.msra.mxu0 %v4034
        %4036 = vmatprep.subr.mxu0 0.0
        %v4037 = vand.u32 %v777, 4294901760
        %4038 = vmatpush1.msra.mxu0 %v4037
        %4039 = vmatprep.subr.mxu0 0.0
        %v4040 = vand.u32 %v778, 4294901760
        %4041 = vmatpush1.msra.mxu0 %v4040
        %4042 = vmatprep.subr.mxu0 0.0
        %v4043 = vand.u32 %v779, 4294901760
        %4044 = vmatpush1.msra.mxu0 %v4043
        %4045 = vmatprep.subr.mxu0 0.0
        %v4046 = vand.u32 %v780, 4294901760
        %4047 = vmatpush1.msra.mxu0 %v4046
        %4048 = vmatprep.subr.mxu0 0.0
        %v4049 = vand.u32 %v781, 4294901760
        %4050 = vmatpush1.msra.mxu0 %v4049
        %4051 = vmatprep.subr.mxu0 0.0
        %v4052 = vand.u32 %v782, 4294901760
        %4053 = vmatpush1.msra.mxu0 %v4052
        %4054 = vmatprep.subr.mxu0 0.0
        %v4055 = vand.u32 %v783, 4294901760
        %4056 = vmatpush1.msra.mxu0 %v4055
        %4057 = vmatprep.subr.mxu0 0.0
        %v4058 = vand.u32 %v784, 4294901760
        %4059 = vmatpush1.msra.mxu0 %v4058
        %4060 = vmatprep.subr.mxu0 0.0
        %v4061 = vand.u32 %v785, 4294901760
        %4062 = vmatpush1.msra.mxu0 %v4061
        %4063 = vmatprep.subr.mxu0 0.0
        %v4064 = vand.u32 %v786, 4294901760
        %4065 = vmatpush1.msra.mxu0 %v4064
        %4066 = vmatprep.subr.mxu0 0.0
        %v4067 = vand.u32 %v787, 4294901760
        %4068 = vmatpush1.msra.mxu0 %v4067
        %4069 = vmatprep.subr.mxu0 0.0
        %v4070 = vand.u32 %v788, 4294901760
        %4071 = vmatpush1.msra.mxu0 %v4070
        %4072 = vmatprep.subr.mxu0 0.0
        %v4073 = vand.u32 %v789, 4294901760
        %4074 = vmatpush1.msra.mxu0 %v4073
        %4075 = vmatprep.subr.mxu0 0.0
        %v4076 = vand.u32 %v790, 4294901760
        %4077 = vmatpush1.msra.mxu0 %v4076
        %4078 = vmatprep.subr.mxu0 0.0
        %v4079 = vand.u32 %v791, 4294901760
        %4080 = vmatpush1.msra.mxu0 %v4079
        %4081 = vmatprep.subr.mxu0 0.0
        %v4082 = vand.u32 %v792, 4294901760
        %4083 = vmatpush1.msra.mxu0 %v4082
        %4084 = vmatprep.subr.mxu0 0.0
        %v4085 = vand.u32 %v793, 4294901760
        %4086 = vmatpush1.msra.mxu0 %v4085
        %4087 = vmatprep.subr.mxu0 0.0
        %v4088 = vand.u32 %v794, 4294901760
        %4089 = vmatpush1.msra.mxu0 %v4088
        %4090 = vmatprep.subr.mxu0 0.0
        %v4091 = vand.u32 %v795, 4294901760
        %4092 = vmatpush1.msra.mxu0 %v4091
        %4093 = vmatprep.subr.mxu0 0.0
        %v4094 = vand.u32 %v796, 4294901760
        %4095 = vmatpush1.msra.mxu0 %v4094
        %4096 = vmatprep.subr.mxu0 0.0
        %v4097 = vand.u32 %v797, 4294901760
        %4098 = vmatpush1.msra.mxu0 %v4097
        %4099 = vmatprep.subr.mxu0 0.0
        %v4100 = vand.u32 %v798, 4294901760
        %4101 = vmatpush1.msra.mxu0 %v4100
        %v4102 = vand.u32 %v660, 4294901760
        %v4103 = vsub.f32 %v660, %v4102
        %v4104 = vand.u32 %v4103, 4294901760
        %4105 = vmatprep.mubr.f32.mxu0 %v4104
        %v4106 = vand.u32 %v659, 4294901760
        %v4107 = vsub.f32 %v659, %v4106
        %v4108 = vand.u32 %v4107, 4294901760
        %4109 = vmatmul.mubr.f32.gmra.mrb[0].mxu0 %v4108
        %v4110 = vpop.f32.mrb[0].mxu0
        %v4111 = vadd.f32 %v3940, %v4110
        %v4112 = vpop.f32.mrb[0].mxu0
        %v4113 = vand.u32 %v666, 4294901760
        %v4114 = vsub.f32 %v666, %v4113
        %v4115 = vand.u32 %v4114, 4294901760
        %4116 = vmatprep.mubr.f32.mxu0 %v4115
        %v4117 = vand.u32 %v665, 4294901760
        %v4118 = vsub.f32 %v665, %v4117
        %v4119 = vand.u32 %v4118, 4294901760
        %4120 = vmatmul.mubr.f32.gmra.mrb[0].mxu0 %v4119
        %v4121 = vpop.f32.mrb[0].mxu0
        %v4122 = vadd.f32 %v3949, %v4121
        %v4123 = vpop.f32.mrb[0].mxu0
        %v4124 = vand.u32 %v672, 4294901760
        %v4125 = vsub.f32 %v672, %v4124
        %v4126 = vand.u32 %v4125, 4294901760
        %4127 = vmatprep.mubr.f32.mxu0 %v4126
        %v4128 = vand.u32 %v671, 4294901760
        %v4129 = vsub.f32 %v671, %v4128
        %v4130 = vand.u32 %v4129, 4294901760
        %4131 = vmatmul.mubr.f32.gmra.mrb[0].mxu0 %v4130
        %v4132 = vpop.f32.mrb[0].mxu0
        %v4133 = vadd.f32 %v3958, %v4132
        %v4134 = vpop.f32.mrb[0].mxu0
        %v4135 = vand.u32 %v678, 4294901760
        %v4136 = vsub.f32 %v678, %v4135
        %v4137 = vand.u32 %v4136, 4294901760
        %4138 = vmatprep.mubr.f32.mxu0 %v4137
        %v4139 = vand.u32 %v677, 4294901760
        %v4140 = vsub.f32 %v677, %v4139
        %v4141 = vand.u32 %v4140, 4294901760
        %4142 = vmatmul.mubr.f32.gmra.mrb[0].mxu0 %v4141
        %v4143 = vpop.f32.mrb[0].mxu0
        %v4144 = vadd.f32 %v3967, %v4143
        %v4145 = vpop.f32.mrb[0].mxu0
        %v4146 = vand.u32 %v684, 4294901760
        %v4147 = vsub.f32 %v684, %v4146
        %v4148 = vand.u32 %v4147, 4294901760
        %4149 = vmatprep.mubr.f32.mxu0 %v4148
        %v4150 = vand.u32 %v683, 4294901760
        %v4151 = vsub.f32 %v683, %v4150
        %v4152 = vand.u32 %v4151, 4294901760
        %4153 = vmatmul.mubr.f32.gmra.mrb[0].mxu0 %v4152
        %v4154 = vpop.f32.mrb[0].mxu0
        %v4155 = vadd.f32 %v3976, %v4154
        %v4156 = vpop.f32.mrb[0].mxu0
        %v4157 = vand.u32 %v690, 4294901760
        %v4158 = vsub.f32 %v690, %v4157
        %v4159 = vand.u32 %v4158, 4294901760
        %4160 = vmatprep.mubr.f32.mxu0 %v4159
        %v4161 = vand.u32 %v689, 4294901760
        %v4162 = vsub.f32 %v689, %v4161
        %v4163 = vand.u32 %v4162, 4294901760
        %4164 = vmatmul.mubr.f32.gmra.mrb[0].mxu0 %v4163
        %v4165 = vpop.f32.mrb[0].mxu0
        %v4166 = vadd.f32 %v3985, %v4165
        %v4167 = vpop.f32.mrb[0].mxu0
        %v4168 = vand.u32 %v696, 4294901760
        %v4169 = vsub.f32 %v696, %v4168
        %v4170 = vand.u32 %v4169, 4294901760
        %4171 = vmatprep.mubr.f32.mxu0 %v4170
        %v4172 = vand.u32 %v695, 4294901760
        %v4173 = vsub.f32 %v695, %v4172
        %v4174 = vand.u32 %v4173, 4294901760
        %4175 = vmatmul.mubr.f32.gmra.mrb[0].mxu0 %v4174
        %v4176 = vpop.f32.mrb[0].mxu0
        %v4177 = vadd.f32 %v3994, %v4176
        %v4178 = vpop.f32.mrb[0].mxu0
        %v4179 = vand.u32 %v702, 4294901760
        %v4180 = vsub.f32 %v702, %v4179
        %v4181 = vand.u32 %v4180, 4294901760
        %4182 = vmatprep.mubr.f32.mxu0 %v4181
        %v4183 = vand.u32 %v701, 4294901760
        %v4184 = vsub.f32 %v701, %v4183
        %v4185 = vand.u32 %v4184, 4294901760
        %4186 = vmatmul.mubr.f32.gmra.mrb[0].mxu0 %v4185
        %v4187 = vpop.f32.mrb[0].mxu0
        %v4188 = vadd.f32 %v4003, %v4187
        %v4189 = vpop.f32.mrb[0].mxu0
        %4190 = vdwg.mxu0
        %4191 = vmatprep.subr.mxu0 0.0
        %v4192 = vand.u32 %v767, 4294901760
        %v4193 = vsub.f32 %v767, %v4192
        %v4194 = vand.u32 %v4193, 4294901760
        %4195 = vmatpush1.msra.mxu0 %v4194
        %4196 = vmatprep.subr.mxu0 0.0
        %v4197 = vand.u32 %v768, 4294901760
        %v4198 = vsub.f32 %v768, %v4197
        %v4199 = vand.u32 %v4198, 4294901760
        %4200 = vmatpush1.msra.mxu0 %v4199
        %4201 = vmatprep.subr.mxu0 0.0
        %v4202 = vand.u32 %v769, 4294901760
        %v4203 = vsub.f32 %v769, %v4202
        %v4204 = vand.u32 %v4203, 4294901760
        %4205 = vmatpush1.msra.mxu0 %v4204
        %4206 = vmatprep.subr.mxu0 0.0
        %v4207 = vand.u32 %v770, 4294901760
        %v4208 = vsub.f32 %v770, %v4207
        %v4209 = vand.u32 %v4208, 4294901760
        %4210 = vmatpush1.msra.mxu0 %v4209
        %4211 = vmatprep.subr.mxu0 0.0
        %v4212 = vand.u32 %v771, 4294901760
        %v4213 = vsub.f32 %v771, %v4212
        %v4214 = vand.u32 %v4213, 4294901760
        %4215 = vmatpush1.msra.mxu0 %v4214
        %4216 = vmatprep.subr.mxu0 0.0
        %v4217 = vand.u32 %v772, 4294901760
        %v4218 = vsub.f32 %v772, %v4217
        %v4219 = vand.u32 %v4218, 4294901760
        %4220 = vmatpush1.msra.mxu0 %v4219
        %4221 = vmatprep.subr.mxu0 0.0
        %v4222 = vand.u32 %v773, 4294901760
        %v4223 = vsub.f32 %v773, %v4222
        %v4224 = vand.u32 %v4223, 4294901760
        %4225 = vmatpush1.msra.mxu0 %v4224
        %4226 = vmatprep.subr.mxu0 0.0
        %v4227 = vand.u32 %v774, 4294901760
        %v4228 = vsub.f32 %v774, %v4227
        %v4229 = vand.u32 %v4228, 4294901760
        %4230 = vmatpush1.msra.mxu0 %v4229
        %4231 = vmatprep.subr.mxu0 0.0
        %v4232 = vand.u32 %v775, 4294901760
        %v4233 = vsub.f32 %v775, %v4232
        %v4234 = vand.u32 %v4233, 4294901760
        %4235 = vmatpush1.msra.mxu0 %v4234
        %4236 = vmatprep.subr.mxu0 0.0
        %v4237 = vand.u32 %v776, 4294901760
        %v4238 = vsub.f32 %v776, %v4237
        %v4239 = vand.u32 %v4238, 4294901760
        %4240 = vmatpush1.msra.mxu0 %v4239
        %4241 = vmatprep.subr.mxu0 0.0
        %v4242 = vand.u32 %v777, 4294901760
        %v4243 = vsub.f32 %v777, %v4242
        %v4244 = vand.u32 %v4243, 4294901760
        %4245 = vmatpush1.msra.mxu0 %v4244
        %4246 = vmatprep.subr.mxu0 0.0
        %v4247 = vand.u32 %v778, 4294901760
        %v4248 = vsub.f32 %v778, %v4247
        %v4249 = vand.u32 %v4248, 4294901760
        %4250 = vmatpush1.msra.mxu0 %v4249
        %4251 = vmatprep.subr.mxu0 0.0
        %v4252 = vand.u32 %v779, 4294901760
        %v4253 = vsub.f32 %v779, %v4252
        %v4254 = vand.u32 %v4253, 4294901760
        %4255 = vmatpush1.msra.mxu0 %v4254
        %4256 = vmatprep.subr.mxu0 0.0
        %v4257 = vand.u32 %v780, 4294901760
        %v4258 = vsub.f32 %v780, %v4257
        %v4259 = vand.u32 %v4258, 4294901760
        %4260 = vmatpush1.msra.mxu0 %v4259
        %4261 = vmatprep.subr.mxu0 0.0
        %v4262 = vand.u32 %v781, 4294901760
        %v4263 = vsub.f32 %v781, %v4262
        %v4264 = vand.u32 %v4263, 4294901760
        %4265 = vmatpush1.msra.mxu0 %v4264
        %4266 = vmatprep.subr.mxu0 0.0
        %v4267 = vand.u32 %v782, 4294901760
        %v4268 = vsub.f32 %v782, %v4267
        %v4269 = vand.u32 %v4268, 4294901760
        %4270 = vmatpush1.msra.mxu0 %v4269
        %4271 = vmatprep.subr.mxu0 0.0
        %v4272 = vand.u32 %v783, 4294901760
        %v4273 = vsub.f32 %v783, %v4272
        %v4274 = vand.u32 %v4273, 4294901760
        %4275 = vmatpush1.msra.mxu0 %v4274
        %4276 = vmatprep.subr.mxu0 0.0
        %v4277 = vand.u32 %v784, 4294901760
        %v4278 = vsub.f32 %v784, %v4277
        %v4279 = vand.u32 %v4278, 4294901760
        %4280 = vmatpush1.msra.mxu0 %v4279
        %4281 = vmatprep.subr.mxu0 0.0
        %v4282 = vand.u32 %v785, 4294901760
        %v4283 = vsub.f32 %v785, %v4282
        %v4284 = vand.u32 %v4283, 4294901760
        %4285 = vmatpush1.msra.mxu0 %v4284
        %4286 = vmatprep.subr.mxu0 0.0
        %v4287 = vand.u32 %v786, 4294901760
        %v4288 = vsub.f32 %v786, %v4287
        %v4289 = vand.u32 %v4288, 4294901760
        %4290 = vmatpush1.msra.mxu0 %v4289
        %4291 = vmatprep.subr.mxu0 0.0
        %v4292 = vand.u32 %v787, 4294901760
        %v4293 = vsub.f32 %v787, %v4292
        %v4294 = vand.u32 %v4293, 4294901760
        %4295 = vmatpush1.msra.mxu0 %v4294
        %4296 = vmatprep.subr.mxu0 0.0
        %v4297 = vand.u32 %v788, 4294901760
        %v4298 = vsub.f32 %v788, %v4297
        %v4299 = vand.u32 %v4298, 4294901760
        %4300 = vmatpush1.msra.mxu0 %v4299
        %4301 = vmatprep.subr.mxu0 0.0
        %v4302 = vand.u32 %v789, 4294901760
        %v4303 = vsub.f32 %v789, %v4302
        %v4304 = vand.u32 %v4303, 4294901760
        %4305 = vmatpush1.msra.mxu0 %v4304
        %4306 = vmatprep.subr.mxu0 0.0
        %v4307 = vand.u32 %v790, 4294901760
        %v4308 = vsub.f32 %v790, %v4307
        %v4309 = vand.u32 %v4308, 4294901760
        %4310 = vmatpush1.msra.mxu0 %v4309
        %4311 = vmatprep.subr.mxu0 0.0
        %v4312 = vand.u32 %v791, 4294901760
        %v4313 = vsub.f32 %v791, %v4312
        %v4314 = vand.u32 %v4313, 4294901760
        %4315 = vmatpush1.msra.mxu0 %v4314
        %4316 = vmatprep.subr.mxu0 0.0
        %v4317 = vand.u32 %v792, 4294901760
        %v4318 = vsub.f32 %v792, %v4317
        %v4319 = vand.u32 %v4318, 4294901760
        %4320 = vmatpush1.msra.mxu0 %v4319
        %4321 = vmatprep.subr.mxu0 0.0
        %v4322 = vand.u32 %v793, 4294901760
        %v4323 = vsub.f32 %v793, %v4322
        %v4324 = vand.u32 %v4323, 4294901760
        %4325 = vmatpush1.msra.mxu0 %v4324
        %4326 = vmatprep.subr.mxu0 0.0
        %v4327 = vand.u32 %v794, 4294901760
        %v4328 = vsub.f32 %v794, %v4327
        %v4329 = vand.u32 %v4328, 4294901760
        %4330 = vmatpush1.msra.mxu0 %v4329
        %4331 = vmatprep.subr.mxu0 0.0
        %v4332 = vand.u32 %v795, 4294901760
        %v4333 = vsub.f32 %v795, %v4332
        %v4334 = vand.u32 %v4333, 4294901760
        %4335 = vmatpush1.msra.mxu0 %v4334
        %4336 = vmatprep.subr.mxu0 0.0
        %v4337 = vand.u32 %v796, 4294901760
        %v4338 = vsub.f32 %v796, %v4337
        %v4339 = vand.u32 %v4338, 4294901760
        %4340 = vmatpush1.msra.mxu0 %v4339
        %4341 = vmatprep.subr.mxu0 0.0
        %v4342 = vand.u32 %v797, 4294901760
        %v4343 = vsub.f32 %v797, %v4342
        %v4344 = vand.u32 %v4343, 4294901760
        %4345 = vmatpush1.msra.mxu0 %v4344
        %4346 = vmatprep.subr.mxu0 0.0
        %v4347 = vand.u32 %v798, 4294901760
        %v4348 = vsub.f32 %v798, %v4347
        %v4349 = vand.u32 %v4348, 4294901760
        %4350 = vmatpush1.msra.mxu0 %v4349
        %v4351 = vand.u32 %v660, 4294901760
        %4352 = vmatprep.mubr.f32.mxu0 %v4351
        %v4353 = vand.u32 %v659, 4294901760
        %4354 = vmatmul.mubr.f32.gmra.mrb[0].mxu0 %v4353
        %v4355 = vpop.f32.mrb[0].mxu0
        %v4356 = vadd.f32 %v4111, %v4355
        %v4357 = vpop.f32.mrb[0].mxu0
        %v4358 = vand.u32 %v666, 4294901760
        %4359 = vmatprep.mubr.f32.mxu0 %v4358
        %v4360 = vand.u32 %v665, 4294901760
        %4361 = vmatmul.mubr.f32.gmra.mrb[0].mxu0 %v4360
        %v4362 = vpop.f32.mrb[0].mxu0
        %v4363 = vadd.f32 %v4122, %v4362
        %v4364 = vpop.f32.mrb[0].mxu0
        %v4365 = vand.u32 %v672, 4294901760
        %4366 = vmatprep.mubr.f32.mxu0 %v4365
        %v4367 = vand.u32 %v671, 4294901760
        %4368 = vmatmul.mubr.f32.gmra.mrb[0].mxu0 %v4367
        %v4369 = vpop.f32.mrb[0].mxu0
        %v4370 = vadd.f32 %v4133, %v4369
        %v4371 = vpop.f32.mrb[0].mxu0
        %v4372 = vand.u32 %v678, 4294901760
        %4373 = vmatprep.mubr.f32.mxu0 %v4372
        %v4374 = vand.u32 %v677, 4294901760
        %4375 = vmatmul.mubr.f32.gmra.mrb[0].mxu0 %v4374
        %v4376 = vpop.f32.mrb[0].mxu0
        %v4377 = vadd.f32 %v4144, %v4376
        %v4378 = vpop.f32.mrb[0].mxu0
        %v4379 = vand.u32 %v684, 4294901760
        %4380 = vmatprep.mubr.f32.mxu0 %v4379
        %v4381 = vand.u32 %v683, 4294901760
        %4382 = vmatmul.mubr.f32.gmra.mrb[0].mxu0 %v4381
        %v4383 = vpop.f32.mrb[0].mxu0
        %v4384 = vadd.f32 %v4155, %v4383
        %v4385 = vpop.f32.mrb[0].mxu0
        %v4386 = vand.u32 %v690, 4294901760
        %4387 = vmatprep.mubr.f32.mxu0 %v4386
        %v4388 = vand.u32 %v689, 4294901760
        %4389 = vmatmul.mubr.f32.gmra.mrb[0].mxu0 %v4388
        %v4390 = vpop.f32.mrb[0].mxu0
        %v4391 = vadd.f32 %v4166, %v4390
        %v4392 = vpop.f32.mrb[0].mxu0
        %v4393 = vand.u32 %v696, 4294901760
        %4394 = vmatprep.mubr.f32.mxu0 %v4393
        %v4395 = vand.u32 %v695, 4294901760
        %4396 = vmatmul.mubr.f32.gmra.mrb[0].mxu0 %v4395
        %v4397 = vpop.f32.mrb[0].mxu0
        %v4398 = vadd.f32 %v4177, %v4397
        %v4399 = vpop.f32.mrb[0].mxu0
        %v4400 = vand.u32 %v702, 4294901760
        %4401 = vmatprep.mubr.f32.mxu0 %v4400
        %v4402 = vand.u32 %v701, 4294901760
        %4403 = vmatmul.mubr.f32.gmra.mrb[0].mxu0 %v4402
        %v4404 = vpop.f32.mrb[0].mxu0
        %v4405 = vadd.f32 %v4188, %v4404
        %v4406 = vpop.f32.mrb[0].mxu0
        %4407 = vdwg.mxu0
        %4408 = vmatprep.subr.mxu0 0.0
        %v4409 = vand.u32 %v767, 4294901760
        %4410 = vmatpush1.msra.mxu0 %v4409
        %4411 = vmatprep.subr.mxu0 0.0
        %v4412 = vand.u32 %v768, 4294901760
        %4413 = vmatpush1.msra.mxu0 %v4412
        %4414 = vmatprep.subr.mxu0 0.0
        %v4415 = vand.u32 %v769, 4294901760
        %4416 = vmatpush1.msra.mxu0 %v4415
        %4417 = vmatprep.subr.mxu0 0.0
        %v4418 = vand.u32 %v770, 4294901760
        %4419 = vmatpush1.msra.mxu0 %v4418
        %4420 = vmatprep.subr.mxu0 0.0
        %v4421 = vand.u32 %v771, 4294901760
        %4422 = vmatpush1.msra.mxu0 %v4421
        %4423 = vmatprep.subr.mxu0 0.0
        %v4424 = vand.u32 %v772, 4294901760
        %4425 = vmatpush1.msra.mxu0 %v4424
        %4426 = vmatprep.subr.mxu0 0.0
        %v4427 = vand.u32 %v773, 4294901760
        %4428 = vmatpush1.msra.mxu0 %v4427
        %4429 = vmatprep.subr.mxu0 0.0
        %v4430 = vand.u32 %v774, 4294901760
        %4431 = vmatpush1.msra.mxu0 %v4430
        %4432 = vmatprep.subr.mxu0 0.0
        %v4433 = vand.u32 %v775, 4294901760
        %4434 = vmatpush1.msra.mxu0 %v4433
        %4435 = vmatprep.subr.mxu0 0.0
        %v4436 = vand.u32 %v776, 4294901760
        %4437 = vmatpush1.msra.mxu0 %v4436
        %4438 = vmatprep.subr.mxu0 0.0
        %v4439 = vand.u32 %v777, 4294901760
        %4440 = vmatpush1.msra.mxu0 %v4439
        %4441 = vmatprep.subr.mxu0 0.0
        %v4442 = vand.u32 %v778, 4294901760
        %4443 = vmatpush1.msra.mxu0 %v4442
        %4444 = vmatprep.subr.mxu0 0.0
        %v4445 = vand.u32 %v779, 4294901760
        %4446 = vmatpush1.msra.mxu0 %v4445
        %4447 = vmatprep.subr.mxu0 0.0
        %v4448 = vand.u32 %v780, 4294901760
        %4449 = vmatpush1.msra.mxu0 %v4448
        %4450 = vmatprep.subr.mxu0 0.0
        %v4451 = vand.u32 %v781, 4294901760
        %4452 = vmatpush1.msra.mxu0 %v4451
        %4453 = vmatprep.subr.mxu0 0.0
        %v4454 = vand.u32 %v782, 4294901760
        %4455 = vmatpush1.msra.mxu0 %v4454
        %4456 = vmatprep.subr.mxu0 0.0
        %v4457 = vand.u32 %v783, 4294901760
        %4458 = vmatpush1.msra.mxu0 %v4457
        %4459 = vmatprep.subr.mxu0 0.0
        %v4460 = vand.u32 %v784, 4294901760
        %4461 = vmatpush1.msra.mxu0 %v4460
        %4462 = vmatprep.subr.mxu0 0.0
        %v4463 = vand.u32 %v785, 4294901760
        %4464 = vmatpush1.msra.mxu0 %v4463
        %4465 = vmatprep.subr.mxu0 0.0
        %v4466 = vand.u32 %v786, 4294901760
        %4467 = vmatpush1.msra.mxu0 %v4466
        %4468 = vmatprep.subr.mxu0 0.0
        %v4469 = vand.u32 %v787, 4294901760
        %4470 = vmatpush1.msra.mxu0 %v4469
        %4471 = vmatprep.subr.mxu0 0.0
        %v4472 = vand.u32 %v788, 4294901760
        %4473 = vmatpush1.msra.mxu0 %v4472
        %4474 = vmatprep.subr.mxu0 0.0
        %v4475 = vand.u32 %v789, 4294901760
        %4476 = vmatpush1.msra.mxu0 %v4475
        %4477 = vmatprep.subr.mxu0 0.0
        %v4478 = vand.u32 %v790, 4294901760
        %4479 = vmatpush1.msra.mxu0 %v4478
        %4480 = vmatprep.subr.mxu0 0.0
        %v4481 = vand.u32 %v791, 4294901760
        %4482 = vmatpush1.msra.mxu0 %v4481
        %4483 = vmatprep.subr.mxu0 0.0
        %v4484 = vand.u32 %v792, 4294901760
        %4485 = vmatpush1.msra.mxu0 %v4484
        %4486 = vmatprep.subr.mxu0 0.0
        %v4487 = vand.u32 %v793, 4294901760
        %4488 = vmatpush1.msra.mxu0 %v4487
        %4489 = vmatprep.subr.mxu0 0.0
        %v4490 = vand.u32 %v794, 4294901760
        %4491 = vmatpush1.msra.mxu0 %v4490
        %4492 = vmatprep.subr.mxu0 0.0
        %v4493 = vand.u32 %v795, 4294901760
        %4494 = vmatpush1.msra.mxu0 %v4493
        %4495 = vmatprep.subr.mxu0 0.0
        %v4496 = vand.u32 %v796, 4294901760
        %4497 = vmatpush1.msra.mxu0 %v4496
        %4498 = vmatprep.subr.mxu0 0.0
        %v4499 = vand.u32 %v797, 4294901760
        %4500 = vmatpush1.msra.mxu0 %v4499
        %4501 = vmatprep.subr.mxu0 0.0
        %v4502 = vand.u32 %v798, 4294901760
        %4503 = vmatpush1.msra.mxu0 %v4502
        %v4504 = vand.u32 %v660, 4294901760
        %4505 = vmatprep.mubr.f32.mxu0 %v4504
        %v4506 = vand.u32 %v659, 4294901760
        %4507 = vmatmul.mubr.f32.gmra.mrb[0].mxu0 %v4506
        %v4508 = vpop.f32.mrb[0].mxu0
        %v4509 = vadd.f32 %v4356, %v4508
        %v4510 = vpop.f32.mrb[0].mxu0
        %v4511 = vand.u32 %v666, 4294901760
        %4512 = vmatprep.mubr.f32.mxu0 %v4511
        %v4513 = vand.u32 %v665, 4294901760
        %4514 = vmatmul.mubr.f32.gmra.mrb[0].mxu0 %v4513
        %v4515 = vpop.f32.mrb[0].mxu0
        %v4516 = vadd.f32 %v4363, %v4515
        %v4517 = vpop.f32.mrb[0].mxu0
        %v4518 = vand.u32 %v672, 4294901760
        %4519 = vmatprep.mubr.f32.mxu0 %v4518
        %v4520 = vand.u32 %v671, 4294901760
        %4521 = vmatmul.mubr.f32.gmra.mrb[0].mxu0 %v4520
        %v4522 = vpop.f32.mrb[0].mxu0
        %v4523 = vadd.f32 %v4370, %v4522
        %v4524 = vpop.f32.mrb[0].mxu0
        %v4525 = vand.u32 %v678, 4294901760
        %4526 = vmatprep.mubr.f32.mxu0 %v4525
        %v4527 = vand.u32 %v677, 4294901760
        %4528 = vmatmul.mubr.f32.gmra.mrb[0].mxu0 %v4527
        %v4529 = vpop.f32.mrb[0].mxu0
        %v4530 = vadd.f32 %v4377, %v4529
        %v4531 = vpop.f32.mrb[0].mxu0
        %v4532 = vand.u32 %v684, 4294901760
        %4533 = vmatprep.mubr.f32.mxu0 %v4532
        %v4534 = vand.u32 %v683, 4294901760
        %4535 = vmatmul.mubr.f32.gmra.mrb[0].mxu0 %v4534
        %v4536 = vpop.f32.mrb[0].mxu0
        %v4537 = vadd.f32 %v4384, %v4536
        %v4538 = vpop.f32.mrb[0].mxu0
        %v4539 = vand.u32 %v690, 4294901760
        %4540 = vmatprep.mubr.f32.mxu0 %v4539
        %v4541 = vand.u32 %v689, 4294901760
        %4542 = vmatmul.mubr.f32.gmra.mrb[0].mxu0 %v4541
        %v4543 = vpop.f32.mrb[0].mxu0
        %v4544 = vadd.f32 %v4391, %v4543
        %v4545 = vpop.f32.mrb[0].mxu0
        %v4546 = vand.u32 %v696, 4294901760
        %4547 = vmatprep.mubr.f32.mxu0 %v4546
        %v4548 = vand.u32 %v695, 4294901760
        %4549 = vmatmul.mubr.f32.gmra.mrb[0].mxu0 %v4548
        %v4550 = vpop.f32.mrb[0].mxu0
        %v4551 = vadd.f32 %v4398, %v4550
        %v4552 = vpop.f32.mrb[0].mxu0
        %v4553 = vand.u32 %v702, 4294901760
        %4554 = vmatprep.mubr.f32.mxu0 %v4553
        %v4555 = vand.u32 %v701, 4294901760
        %4556 = vmatmul.mubr.f32.gmra.mrb[0].mxu0 %v4555
        %v4557 = vpop.f32.mrb[0].mxu0
        %v4558 = vadd.f32 %v4405, %v4557
        %v4559 = vpop.f32.mrb[0].mxu0
        %4560 = vdwg.mxu0
        %4561 = vst [vmem:[%s152] sm:$0xff] %v4509
        %4562 = vst [vmem:[%s152 + $0x8] sm:$0xff] %v4516
        %4563 = vst [vmem:[%s152 + $0x10] sm:$0xff] %v4523
        %4564 = vst [vmem:[%s152 + $0x18] sm:$0xff] %v4530
        %4565 = vst [vmem:[%s152 + $0x20] sm:$0xff] %v4537
        %4566 = vst [vmem:[%s152 + $0x28] sm:$0xff] %v4544
        %4567 = vst [vmem:[%s152 + $0x30] sm:$0xff] %v4551
        %4568 = vst [vmem:[%s152 + $0x38] sm:$0xff] %v4558
        %s4569 = sand.u32 %s72, 1
        %s4570 = scalar_lea.sflag [#allocation4], %s4569
        %s4571 = sand.u32 %s72, 1
        %s4572 = smul.addr %s4571, 64
        %s4573 = scalar_lea.vmem [#allocation5], %s4572
        // Predicated region
        $region33: #{tpu_custom_call.1} parent=27 // pred_check
          %p4574 = pneg %p82
        $region34: #{tpu_custom_call.1} parent=27 // pred_check_branch
          %4576 = sbr.rel (%p4574) target = $region36
        $region35: #{tpu_custom_call.1} parent=27 // pred_region
          %s4577 = smul.u32 8, %s17
          %s4579 = ssub.s32 1024, 1024
          %4580 = vsyncadd %s4570, %s4579
          %s4581 = smul.addr %s4577, 128
          %s4582 = scalar_lea.hbm %s2, %s4581
          %s4583 = sshll.u32 %s4573, 4
          %s4584 = int_to_ptr.vmem [resolvable:$true] %s4583
          %4589 = dma.vmem_to_hbm [thread:$0]  %s4584, 1024, %s4582, %s4570, 128, 128, 8
        $region36: #{tpu_custom_call.1} parent=27 // pred_fallthru
          _
      $region28: #{tpu_custom_call.1} parent=5 // pred_fallthru
        _
      %p4590 = scmp.le.s32.totalorder 2, %s12
      // Predicated region
      $region37: #{tpu_custom_call.1} parent=5 // pred_check
        %p4591 = pneg %p4590
      $region38: #{tpu_custom_call.1} parent=5 // pred_check_branch
        %4593 = sbr.rel (%p4591) target = $region40
      $region39: #{tpu_custom_call.1} parent=5 // pred_region
        %s4594 = ssub.s32 %s12, 2
        // Predicated region
        $region41: #{tpu_custom_call.1} parent=39 // pred_check
          %p4595 = pneg %p88
        $region42: #{tpu_custom_call.1} parent=39 // pred_check_branch
          %4597 = sbr.rel (%p4595) target = $region44
        $region43: #{tpu_custom_call.1} parent=39 // pred_region
          %s4598 = sand.u32 %s73, 1
          %s4599 = scalar_lea.sflag [#allocation4], %s4598
          %s4600 = sand.u32 %s73, 1
          %s4601 = smul.addr %s4600, 64
          %s4602 = scalar_lea.vmem [#allocation5], %s4601
          %4603 = dma.done %s4599, 1024
        $region44: #{tpu_custom_call.1} parent=39 // pred_fallthru
          _
      $region40: #{tpu_custom_call.1} parent=5 // pred_fallthru
        _
    $region6: #{tpu_custom_call.1} parent=1 // loop_footer
      %s16 = sadd.s32 1, %s12
    $region7: #{tpu_custom_call.1} parent=1 // loop_footer_branch
      %11 = sbr.rel target = $region3
    $region8: #{tpu_custom_call.1} parent=1 // loop_exit
      _
    %4604 = vsyncpa [#allocation3], 1
    %s4605 = scalar_lea.sflag [#allocation3], 1
    %4606 = vsyncpa %s4605, 1
    %4607 = vsyncpa [#allocation4], 1
    %s4608 = scalar_lea.sflag [#allocation4], 1
    %4609 = vsyncpa %s4608, 1

</llo_original>
